<compile_context>
chip_gen: v7x
topology: tpu7x:2x2x1
jax: 0.10.0
libtpu: 0.0.40
codegen_flags: <defaults>
</compile_context>

<pallas_src>
import math

import jax
import jax.numpy as jnp
from jax.experimental import pallas as pl
from jax.experimental.pallas import tpu as pltpu

LN_EPS = 1e-5        # torch.nn.LayerNorm default
NEG_SLOPE = 1e-2     # leakyrelu_neg_slope
NUM_RBF = 15         # len(all_sigmas_dist), sigma_k = 1.5**k
SKIP_H = 0.5         # skip_weight_h       (constructor hyperparameter)
X_CONN = 0.25        # x_connection_init   (constructor hyperparameter)


# --------------------------------------------------------------------------
# small helpers
# --------------------------------------------------------------------------
def _leaky_relu(x):
    return jnp.where(x > 0, x, NEG_SLOPE * x)


def _layernorm(x, g, b):
    mu = jnp.mean(x, axis=-1, keepdims=True)
    var = jnp.mean((x - mu) ** 2, axis=-1, keepdims=True)
    return (x - mu) * jax.lax.rsqrt(var + LN_EPS) * g + b


def _round_up(x, m):
    return (x + m - 1) // m * m


def _pick_tile(total, cap):
    """Largest row tile <= cap that divides `total` (multiple of 8 when possible).

    Invariant: the return value always divides `total` (grid = total // tile);
    when no multiple-of-8 divisor <= cap exists it falls back to the full dim.
    """
    if total <= cap:
        return total
    t = (cap // 8) * 8
    while t >= 8:
        if total % t == 0:
            return t
        t -= 8
    return total


def _vmem_budget_bytes():
    """Generation-aware scoped-VMEM budget.

    v5e/v6e: 128 MiB physical -> ~76 MiB budget; v7x: 64 MiB/TC -> ~38 MiB.
    Falls back conservatively (64 MiB physical) if the query is unavailable.
    """
    phys = 64 * 1024 * 1024
    try:
        phys = int(pltpu.get_tpu_info().vmem_capacity_bytes)
    except Exception:
        pass
    return max(16 * 1024 * 1024, min(int(phys * 0.6), 96 * 1024 * 1024))


def _edge_tile_cap(n_p, C, Fe, budget):
    """Rough live-VMEM model per destination row of the edge pipeline -> TM cap."""
    c_lane = _round_up(max(C, 128), 128)
    n_lane = _round_up(max(n_p, 128), 128)
    q = Fe + NUM_RBF
    per_row = (
        5 * 4 * n_p * c_lane          # ~5 live f32 [n, C]-shaped per-edge tensors
        + 2 * n_p * c_lane            # one bf16 copy feeding the MXU
        + (4 + 2) * q * n_lane        # lane-dense (edge_feat | rbf) planes f32+bf16
        + 2 * 4 * n_lane * (1 + Fe)   # double-buffered adj + edge_feat input blocks
        + 4 * 4 * (c_lane + 16)       # per-row streamed blocks (coarse_h, pool_h, ...)
    )
    fixed = 4 * n_lane * (c_lane + 16) + 16 * C * c_lane * 4   # shared inputs + weights
    cap = int(max(8, (budget - fixed) // max(per_row, 1)))
    return max(8, (cap // 8) * 8)


def _full_spec(shape):
    idx = (0,) * len(shape)
    return pl.BlockSpec(shape, lambda b, i, _idx=idx: _idx)


# --------------------------------------------------------------------------
# Kernel 1: per-edge MLPs + masked means + fused coarse-node update
# --------------------------------------------------------------------------
def edge_coarse_kernel(adj_ref, src_term_ref, coarse_h_ref, fine_xT_ref,
                       coarse_x_ref, px_fine_ref, efeatT_ref,
                       pool_hc_ref, og_xc_ref,
                       w_dst_ref, w_qc_ref, e_w2_ref, c_w1_ref,
                       n_w1a_ref, n_w1b_ref, n_w2_ref,
                       evec_ref, nvec_ref, inv_sig_ref,
                       xev_ref, hnew_ref):
    f32 = jnp.float32
    bf16 = jnp.bfloat16

    adj = adj_ref[0]                  # [TM, n]  adjacency mask (dst-major)
    coarse_x = coarse_x_ref[0]        # [TM, 3]  x_now(dst) == x_coarse(dst)
    fine_xT = fine_xT_ref[0]          # [3, n]   x_fine(src), coordinate-major
    TM, n = adj.shape
    C = e_w2_ref.shape[0]
    Fe = efeatT_ref.shape[1]
    K = NUM_RBF

    evec = evec_ref[...]              # [11, C] edge/coords-MLP vectors (f32)
    nvec = nvec_ref[...]              # [8, C]  node-MLP / final-LN vectors (f32)
    # evec rows: 0 e_b1 | 1 e_ln1_g | 2 e_ln1_b | 3 e_b2 | 4 e_ln2_g | 5 e_ln2_b
    #            6 c_b1 | 7 c_ln_g  | 8 c_ln_b  | 9 c_w2 row | 10 c_b2 (broadcast)
    # nvec rows: 0 n_b1 | 1 n_ln1_g | 2 n_ln1_b | 3 n_b2 | 4 n_ln2_g | 5 n_ln2_b
    #            6 f_ln_g | 7 f_ln_b

    # ---- squared distance ||x_fine(src) - x_coarse(dst)||^2, sources on lanes
    d2 = jnp.zeros((TM, n), f32)
    for c in range(3):
        diff = fine_xT[c][None, :] - coarse_x[:, c][:, None]
        d2 = d2 + diff * diff

    # ---- lane-dense RBF planes exp(-d2 * 1.5**-k): [K, TM, n] (EUP at full lanes)
    rbf = jnp.exp(-(inv_sig_ref[...] * d2[None, :, :]))

    # ---- mask non-edge edge-features early (robust to junk on non-edges) and
    #      fuse (edge_feat | rbf) channels into a single [Fe+K, C] contraction
    efeat = efeatT_ref[0] * adj[None, :, :]                          # [Fe, TM, n]
    q = jnp.concatenate([efeat, rbf], axis=0).astype(bf16)           # [Fe+K, TM, n]
    efrbf = jax.lax.dot_general(
        q.reshape(Fe + K, TM * n), w_qc_ref[...],
        (((0,), (0,)), ((), ())), preferred_element_type=f32)        # [TM*n, C]

    # ---- first edge-MLP linear, decomposed over the concatenated input
    #      (src term hoisted to the wrapper; bias b1 folded into the dst term)
    dst_term = jnp.dot(coarse_h_ref[0].astype(bf16), w_dst_ref[...],
                       preferred_element_type=f32) + evec[0:1]       # [TM, C]
    pre = (efrbf.reshape(TM, n, C)
           + src_term_ref[0][None, :, :] + dst_term[:, None, :])

    h1 = _leaky_relu(_layernorm(pre, evec[1:2], evec[2:3]))
    # dropout: eval mode -> identity
    msg = _layernorm(
        jnp.dot(h1.reshape(TM * n, C).astype(bf16), e_w2_ref[...],
                preferred_element_type=f32) + evec[3:4],
        evec[4:5], evec[5:6])                                        # [TM*n, C]

    # ---- coords MLP -> per-edge scalar coefficient (last linear as lane reduce)
    hc = _leaky_relu(_layernorm(
        jnp.dot(msg.astype(bf16), c_w1_ref[...],
                preferred_element_type=f32) + evec[6:7],
        evec[7:8], evec[8:9]))
    coef = (jnp.sum(hc.reshape(TM, n, C) * evec[9:10], axis=-1)
            + evec[10:11, 0:1])                                      # [TM, n]

    # ---- adjacency-masked means over incoming edges (DGL fn.mean)
    deg = jnp.sum(adj, axis=1, keepdims=True)                        # [TM, 1]
    inv_deg = jnp.where(deg > 0, 1.0 / jnp.maximum(deg, 1.0), 0.0)

    aggr = jnp.sum(adj[:, :, None] * msg.reshape(TM, n, C), axis=1) * inv_deg

    # mean of x_rel * coef with x_rel = x_now(src) - x_now(dst); never materialized
    w = adj * coef                                                   # [TM, n]
    s0 = jnp.sum(w, axis=1, keepdims=True)
    sx = jnp.dot(w, px_fine_ref[0], preferred_element_type=f32)      # [TM, 3]
    xupd = (sx - coarse_x * s0) * inv_deg

    # ---- fused coarse-node update: node MLP + skip + final LN + coord update
    ph = pool_hc_ref[0]                                              # [TM, D] 'feat'
    x = (jnp.dot(ph.astype(bf16), n_w1a_ref[...], preferred_element_type=f32)
         + jnp.dot(aggr.astype(bf16), n_w1b_ref[...], preferred_element_type=f32)
         + nvec[0:1])
    x = _leaky_relu(_layernorm(x, nvec[1:2], nvec[2:3]))
    # dropout: eval mode -> identity
    x = jnp.dot(x.astype(bf16), n_w2_ref[...], preferred_element_type=f32) + nvec[3:4]
    x = _layernorm(x, nvec[4:5], nvec[5:6])
    h_new = SKIP_H * x + (1.0 - SKIP_H) * ph
    hnew_ref[0] = _layernorm(h_new, nvec[6:7], nvec[7:8])            # apply_norm 'LN'
    xev_ref[0] = X_CONN * og_xc_ref[0] + (1.0 - X_CONN) * coarse_x + xupd


def edge_aggregate_coarse_update(adjT, src_term, coarse_h, fine_xT, coarse_x,
                                 px_fine, efeatT, pool_h_coarse, og_x_coarse,
                                 p, vmem_budget):
    B, N, n_p = adjT.shape
    D = coarse_h.shape[-1]
    Fe = efeatT.shape[1]
    C = p['e_w2'].shape[0]

    TM = _pick_tile(N, _edge_tile_cap(n_p, C, Fe, vmem_budget))
    grid = (B, N // TM)

    data_specs = [
        pl.BlockSpec((1, TM, n_p), lambda b, i: (b, i, 0)),          # adjT
        pl.BlockSpec((1, n_p, C), lambda b, i: (b, 0, 0)),           # src_term (hoisted)
        pl.BlockSpec((1, TM, D), lambda b, i: (b, i, 0)),            # coarse_h
        pl.BlockSpec((1, 3, n_p), lambda b, i: (b, 0, 0)),           # fine_x (coord-major)
        pl.BlockSpec((1, TM, 3), lambda b, i: (b, i, 0)),            # coarse_x == x_now(dst)
        pl.BlockSpec((1, n_p, 3), lambda b, i: (b, 0, 0)),           # x_now(fine)
        pl.BlockSpec((1, Fe, TM, n_p), lambda b, i: (b, 0, i, 0)),   # edge feat (lane-dense)
        pl.BlockSpec((1, TM, D), lambda b, i: (b, i, 0)),            # pool_h (coarse rows)
        pl.BlockSpec((1, TM, 3), lambda b, i: (b, i, 0)),            # og_pool_x (coarse rows)
    ]
    w_names = ['w_dst', 'w_efrbf', 'e_w2', 'c_w1', 'n_w1a', 'n_w1b', 'n_w2',
               'evec', 'nvec', 'inv_sig']
    weights = [p[k] for k in w_names]
    w_specs = [_full_spec(w.shape) for w in weights]

    x_ev_c, h_new_c = pl.pallas_call(
        edge_coarse_kernel,
        out_shape=(jax.ShapeDtypeStruct((B, N, 3), jnp.float32),
                   jax.ShapeDtypeStruct((B, N, C), jnp.float32)),
        grid=grid,
        in_specs=data_specs + w_specs,
        out_specs=(pl.BlockSpec((1, TM, 3), lambda b, i: (b, i, 0)),
                   pl.BlockSpec((1, TM, C), lambda b, i: (b, i, 0))),
        compiler_params=pltpu.CompilerParams(
            # branch axis B=2 keeps both v7x TensorCores busy
            dimension_semantics=("parallel", "parallel"),
            vmem_limit_bytes=vmem_budget),
    )(adjT, src_term, coarse_h, fine_xT, coarse_x, px_fine, efeatT,
      pool_h_coarse, og_x_coarse, *weights)
    return x_ev_c, h_new_c


# --------------------------------------------------------------------------
# Kernel 2: fine-node update (aggr_msg == 0 there, so no aggr input needed)
# --------------------------------------------------------------------------
def fine_node_kernel(ph_ref, w1a_ref, w2_ref, nvec_ref, hnew_ref):
    f32 = jnp.float32
    bf16 = jnp.bfloat16
    ph = ph_ref[0]                    # [TR, D]  'feat' (node_norm == Identity)
    nvec = nvec_ref[...]

    # fine nodes receive no edges -> aggr_msg == 0 -> the w1b term vanishes
    x = jnp.dot(ph.astype(bf16), w1a_ref[...], preferred_element_type=f32) + nvec[0:1]
    x = _leaky_relu(_layernorm(x, nvec[1:2], nvec[2:3]))
    # dropout: eval mode -> identity
    x = jnp.dot(x.astype(bf16), w2_ref[...], preferred_element_type=f32) + nvec[3:4]
    x = _layernorm(x, nvec[4:5], nvec[5:6])
    h_new = SKIP_H * x + (1.0 - SKIP_H) * ph
    hnew_ref[0] = _layernorm(h_new, nvec[6:7], nvec[7:8])


def fine_node_update(pool_h_fine, p, vmem_budget, tile_cap=1024):
    B, nf, D = pool_h_fine.shape
    C = p['n_w2'].shape[1]
    TR = _pick_tile(nf, tile_cap)
    grid = (B, nf // TR)

    weights = [p['n_w1a'], p['n_w2'], p['nvec']]
    h_fine = pl.pallas_call(
        fine_node_kernel,
        out_shape=jax.ShapeDtypeStruct((B, nf, C), jnp.float32),
        grid=grid,
        in_specs=[pl.BlockSpec((1, TR, D), lambda b, i: (b, i, 0))]
                 + [_full_spec(w.shape) for w in weights],
        out_specs=pl.BlockSpec((1, TR, C), lambda b, i: (b, i, 0)),
        compiler_params=pltpu.CompilerParams(
            dimension_semantics=("parallel", "parallel"),
            vmem_limit_bytes=vmem_budget),
    )(pool_h_fine, *weights)
    return h_fine


# --------------------------------------------------------------------------
# full forward (A and B branches batched on the leading axis, shared weights)
# --------------------------------------------------------------------------
def pooling_3d_layer(params, adjT, fine_h, coarse_h, fine_x,
                     pool_h, pool_x, og_pool_x, edge_feat):
    B, N, n = adjT.shape
    M = pool_h.shape[1]
    assert M == n + N

    budget = _vmem_budget_bytes()

    coarse_x = pool_x[:, n:, :]          # x_coarse == x_now on the coarse nodes
    px_fine = pool_x[:, :n, :]           # x_now on the fine nodes
    pool_h_coarse = pool_h[:, n:, :]
    og_x_coarse = og_pool_x[:, n:, :]

    # hoisted src-feature term of the edge-MLP first linear (branch-only; reused
    # by every destination tile inside kernel 1)
    src_term = jax.lax.dot_general(
        fine_h.astype(jnp.bfloat16), params['w_src'],
        (((2,), (0,)), ((), ())), preferred_element_type=jnp.float32)   # [B, n, C]

    # pad the fine-source axis to a sublane multiple so the in-kernel
    # (TM,n,C)<->(TM*n,C) reshapes stay layout-preserving; padded columns have
    # adj == 0 and never reach the masked means.
    n_p = _round_up(n, 8)
    pad = n_p - n
    if pad:
        def padn(a, ax):
            return jnp.pad(a, [(0, pad) if k == ax else (0, 0)
                               for k in range(a.ndim)])
        adjT_p = padn(adjT, 2)
        src_term_p = padn(src_term, 1)
        fine_x_p = padn(fine_x, 1)
        px_fine_p = padn(px_fine, 1)
        edge_feat_p = padn(edge_feat, 2)
    else:
        adjT_p, src_term_p, fine_x_p, px_fine_p, edge_feat_p = (
            adjT, src_term, fine_x, px_fine, edge_feat)

    fine_xT = jnp.transpose(fine_x_p, (0, 2, 1))           # [B, 3, n_p]
    # lane-dense edge-feature layout: [B, Fe, N, n_p] (sources on the lane axis)
    efeatT = jnp.transpose(edge_feat_p, (0, 3, 1, 2))

    x_ev_coarse, h_coarse = edge_aggregate_coarse_update(
        adjT_p, src_term_p, coarse_h, fine_xT, coarse_x, px_fine_p, efeatT,
        pool_h_coarse, og_x_coarse, params, budget)

    # fine nodes: no incoming edges -> aggr_msg == 0 and x_update == 0, so the
    # coordinate update is a trivial elementwise op (plain XLA) and the node MLP
    # needs no aggr input.
    h_fine = fine_node_update(pool_h[:, :n, :], params, budget)
    x_ev_fine = X_CONN * og_pool_x[:, :n, :] + (1.0 - X_CONN) * pool_x[:, :n, :]

    x_evolved = jnp.concatenate([x_ev_fine, x_ev_coarse], axis=1)
    node_upd = jnp.concatenate([h_fine, h_coarse], axis=1)
    return x_evolved, node_upd


# --------------------------------------------------------------------------
# deterministic parameters: torch layout init + one-time kernel-ready re-layout
# --------------------------------------------------------------------------
def init_params(key, D, Fe):
    """Torch-layout parameters (Linear weight = [out, in]); xavier-normal / zeros."""
    C = D                    # out_feats_dim_h == invar_feats_dim_h (required by forward)
    K = NUM_RBF
    keys = iter(jax.random.split(key, 8))

    def xavier(k, out_dim, in_dim):
        std = math.sqrt(2.0 / (in_dim + out_dim))
        return std * jax.random.normal(k, (out_dim, in_dim), dtype=jnp.float32)

    p = {}
    edge_in = 2 * D + Fe + K
    p['edge_w1'] = xavier(next(keys), C, edge_in); p['edge_b1'] = jnp.zeros((C,), jnp.float32)
    p['edge_ln1_g'] = jnp.ones((C,), jnp.float32); p['edge_ln1_b'] = jnp.zeros((C,), jnp.float32)
    p['edge_w2'] = xavier(next(keys), C, C);       p['edge_b2'] = jnp.zeros((C,), jnp.float32)
    p['edge_ln2_g'] = jnp.ones((C,), jnp.float32); p['edge_ln2_b'] = jnp.zeros((C,), jnp.float32)
    p['coord_w1'] = xavier(next(keys), C, C);      p['coord_b1'] = jnp.zeros((C,), jnp.float32)
    p['coord_ln_g'] = jnp.ones((C,), jnp.float32); p['coord_ln_b'] = jnp.zeros((C,), jnp.float32)
    p['coord_w2'] = xavier(next(keys), 1, C);      p['coord_b2'] = jnp.zeros((1,), jnp.float32)
    p['node_w1'] = xavier(next(keys), D, D + C);   p['node_b1'] = jnp.zeros((D,), jnp.float32)
    p['node_ln1_g'] = jnp.ones((D,), jnp.float32); p['node_ln1_b'] = jnp.zeros((D,), jnp.float32)
    p['node_w2'] = xavier(next(keys), C, D);       p['node_b2'] = jnp.zeros((C,), jnp.float32)
    p['node_ln2_g'] = jnp.ones((C,), jnp.float32); p['node_ln2_b'] = jnp.zeros((C,), jnp.float32)
    p['final_ln_g'] = jnp.ones((C,), jnp.float32); p['final_ln_b'] = jnp.zeros((C,), jnp.float32)
    return p


def prepare_params(p, D, Fe):
    """One-time re-layout: transpose to [in, out], split/fuse the edge-MLP first
    linear by input segment (src feat | dst feat | edge feat+rbf), cast matmul
    weights to bf16 (f32 accumulation in-kernel), pack the per-kernel bias/LN
    vectors into single [V, C] slabs."""
    K = NUM_RBF
    C = p['edge_w2'].shape[0]
    assert C == D, "forward() requires invar_feats_dim_h == out_feats_dim_h"
    bf = lambda a: a.astype(jnp.bfloat16)

    w1 = p['edge_w1'].T.astype(jnp.float32)            # [2D+Fe+K, C]
    assert w1.shape[0] == 2 * D + Fe + K
    nw1 = p['node_w1'].T.astype(jnp.float32)           # [D+C, D]

    evec = jnp.stack([
        p['edge_b1'], p['edge_ln1_g'], p['edge_ln1_b'],
        p['edge_b2'], p['edge_ln2_g'], p['edge_ln2_b'],
        p['coord_b1'], p['coord_ln_g'], p['coord_ln_b'],
        p['coord_w2'][0],                               # Linear(C,1) weight as a row
        jnp.broadcast_to(p['coord_b2'], (C,)),          # its bias, broadcast
    ], axis=0).astype(jnp.float32)                      # [11, C]
    nvec = jnp.stack([
        p['node_b1'], p['node_ln1_g'], p['node_ln1_b'],
        p['node_b2'], p['node_ln2_g'], p['node_ln2_b'],
        p['final_ln_g'], p['final_ln_b'],
    ], axis=0).astype(jnp.float32)                      # [8, C]

    return {
        'w_src': bf(w1[:D]),                            # [D, C]   (hoisted src term)
        'w_dst': bf(w1[D:2 * D]),                       # [D, C]
        'w_efrbf': bf(w1[2 * D:]),                      # [Fe+K, C] fused edge-feat|rbf
        'e_w2': bf(p['edge_w2'].T),                     # [C, C]
        'c_w1': bf(p['coord_w1'].T),                    # [C, C]
        'n_w1a': bf(nw1[:D]),                           # [D, D]
        'n_w1b': bf(nw1[D:]),                           # [C, D]
        'n_w2': bf(p['node_w2'].T),                     # [D, C]
        'evec': evec,
        'nvec': nvec,
        'inv_sig': (1.5 ** (-jnp.arange(K, dtype=jnp.float32))).reshape(K, 1, 1),
    }


if __name__ == "__main__":
    n, N, D, Fe, B = 16, 8, 32, 4, 2     # fine nodes, coarse nodes, feat dim, edge-feat dim, branches
    M = n + N

    key = jax.random.PRNGKey(0)
    k_par, k_dat = jax.random.split(key)
    params = prepare_params(init_params(k_par, D, Fe), D, Fe)

    dk = jax.random.split(k_dat, 7)
    fine_h = jax.random.normal(dk[0], (B, n, D), jnp.float32)
    coarse_h = jax.random.normal(dk[1], (B, N, D), jnp.float32)
    fine_x = jax.random.normal(dk[2], (B, n, 3), jnp.float32)
    pool_h = jax.random.normal(dk[3], (B, M, D), jnp.float32)
    pool_x = jax.random.normal(dk[4], (B, M, 3), jnp.float32)
    og_pool_x = jax.random.normal(dk[5], (B, M, 3), jnp.float32)
    edge_feat = jax.random.normal(dk[6], (B, N, n, Fe), jnp.float32)

    # deterministic pooling graph: fine node i -> coarse nodes i % N and (i + 3) % N
    src = jnp.arange(n)
    adj = jnp.zeros((N, n), jnp.float32)
    adj = adj.at[src % N, src].set(1.0)
    adj = adj.at[(src + 3) % N, src].set(1.0)
    adjT = jnp.broadcast_to(adj, (B, N, n))

    fwd = jax.jit(pooling_3d_layer)
    x_evolved, node_upd = fwd(params, adjT, fine_h, coarse_h, fine_x,
                              pool_h, pool_x, og_pool_x, edge_feat)
    x_evolved, node_upd = jax.block_until_ready((x_evolved, node_upd))

    # forward() returns (x_evolved_A, node_upd_A, x_evolved_B, node_upd_B, None, 0)
    outs = (x_evolved[0], node_upd[0], x_evolved[1], node_upd[1], None, 0)
    assert outs[0].shape == (M, 3) and outs[1].shape == (M, D)
    assert outs[2].shape == (M, 3) and outs[3].shape == (M, D)
    assert all(bool(jnp.all(jnp.isfinite(o))) for o in outs[:4])
    print("KERNEL_OK")
</pallas_src>

<mosaic_0001>
module attributes {stable_mosaic.version = 11 : i64} {
  func.func @fine_node_kernel(%arg0: i32, %arg1: i32, %arg2: memref<1x16x32xf32, #tpu.memory_space<vmem>>, %arg3: memref<32x32xbf16, #tpu.memory_space<vmem>>, %arg4: memref<32x32xbf16, #tpu.memory_space<vmem>>, %arg5: memref<8x32xf32, #tpu.memory_space<vmem>>, %arg6: memref<1x16x32xf32, #tpu.memory_space<vmem>>) attributes {dimension_semantics = [#tpu.dimension_semantics<parallel>, #tpu.dimension_semantics<parallel>], iteration_bounds = array<i64: 2, 1>, scalar_prefetch = 0 : i64, scratch_operands = 0 : i64, tpu.core_type = #tpu.core_type<tc>, window_params = [{transform_indices = @transform_0, window_bounds = array<i64: 1, 16, 32>}, {pipeline_mode = #tpu.pipeline_mode<synchronous>, transform_indices = @transform_1, window_bounds = array<i64: 32, 32>}, {pipeline_mode = #tpu.pipeline_mode<synchronous>, transform_indices = @transform_2, window_bounds = array<i64: 32, 32>}, {pipeline_mode = #tpu.pipeline_mode<synchronous>, transform_indices = @transform_3, window_bounds = array<i64: 8, 32>}, {transform_indices = @transform_4, window_bounds = array<i64: 1, 16, 32>}]} {
    %c0 = arith.constant 0 : index
    %c0_0 = arith.constant 0 : index
    %c0_1 = arith.constant 0 : index
    %0 = vector.load %arg2[%c0, %c0_0, %c0_1] : memref<1x16x32xf32, #tpu.memory_space<vmem>>, vector<1x16x32xf32>
    %1 = vector.shape_cast %0 : vector<1x16x32xf32> to vector<16x32xf32>
    %c0_2 = arith.constant 0 : index
    %c0_3 = arith.constant 0 : index
    %2 = vector.load %arg5[%c0_2, %c0_3] : memref<8x32xf32, #tpu.memory_space<vmem>>, vector<8x32xf32>
    %3 = arith.truncf %1 : vector<16x32xf32> to vector<16x32xbf16>
    %c0_4 = arith.constant 0 : index
    %c0_5 = arith.constant 0 : index
    %4 = vector.load %arg3[%c0_4, %c0_5] : memref<32x32xbf16, #tpu.memory_space<vmem>>, vector<32x32xbf16>
    %cst = arith.constant dense<0.000000e+00> : vector<16x32xf32>
    %5 = tpu.matmul %3, %4, %cst {dimension_numbers = #tpu.dot_dimension_numbers<[1], [0], [0], [1], [0, 0, 1, 1], [], []>} : vector<16x32xbf16>, vector<32x32xbf16>, vector<16x32xf32> -> vector<16x32xf32>
    %6 = vector.extract_strided_slice %2 {offsets = [0, 0], sizes = [1, 32], strides = [1, 1]} : vector<8x32xf32> to vector<1x32xf32>
    %7 = vector.broadcast %6 : vector<1x32xf32> to vector<16x32xf32>
    %8 = arith.addf %5, %7 : vector<16x32xf32>
    %9 = vector.extract_strided_slice %2 {offsets = [1, 0], sizes = [1, 32], strides = [1, 1]} : vector<8x32xf32> to vector<1x32xf32>
    %10 = vector.extract_strided_slice %2 {offsets = [2, 0], sizes = [1, 32], strides = [1, 1]} : vector<8x32xf32> to vector<1x32xf32>
    %cst_6 = arith.constant dense<0.000000e+00> : vector<16xf32>
    %11 = vector.multi_reduction <add>, %8, %cst_6 [1] : vector<16x32xf32> to vector<16xf32>
    %12 = vector.shape_cast %11 : vector<16xf32> to vector<16x1xf32>
    %cst_7 = arith.constant 3.200000e+01 : f32
    %13 = vector.broadcast %cst_7 : f32 to vector<16x1xf32>
    %14 = arith.divf %12, %13 : vector<16x1xf32>
    %15 = vector.broadcast %14 : vector<16x1xf32> to vector<16x32xf32>
    %16 = arith.subf %8, %15 : vector<16x32xf32>
    %17 = arith.mulf %16, %16 : vector<16x32xf32>
    %cst_8 = arith.constant dense<0.000000e+00> : vector<16xf32>
    %18 = vector.multi_reduction <add>, %17, %cst_8 [1] : vector<16x32xf32> to vector<16xf32>
    %19 = vector.shape_cast %18 : vector<16xf32> to vector<16x1xf32>
    %cst_9 = arith.constant 3.200000e+01 : f32
    %20 = vector.broadcast %cst_9 : f32 to vector<16x1xf32>
    %21 = arith.divf %19, %20 : vector<16x1xf32>
    %22 = vector.broadcast %14 : vector<16x1xf32> to vector<16x32xf32>
    %23 = arith.subf %8, %22 : vector<16x32xf32>
    %cst_10 = arith.constant 9.99999974E-6 : f32
    %24 = vector.broadcast %cst_10 : f32 to vector<16x1xf32>
    %25 = arith.addf %21, %24 : vector<16x1xf32>
    %26 = math.rsqrt %25 : vector<16x1xf32>
    %27 = vector.broadcast %26 : vector<16x1xf32> to vector<16x32xf32>
    %28 = arith.mulf %23, %27 : vector<16x32xf32>
    %29 = vector.broadcast %9 : vector<1x32xf32> to vector<16x32xf32>
    %30 = arith.mulf %28, %29 : vector<16x32xf32>
    %31 = vector.broadcast %10 : vector<1x32xf32> to vector<16x32xf32>
    %32 = arith.addf %30, %31 : vector<16x32xf32>
    %cst_11 = arith.constant 0.000000e+00 : f32
    %33 = vector.broadcast %cst_11 : f32 to vector<16x32xf32>
    %34 = arith.cmpf ogt, %32, %33 : vector<16x32xf32>
    %cst_12 = arith.constant 0.00999999977 : f32
    %35 = vector.broadcast %cst_12 : f32 to vector<16x32xf32>
    %36 = arith.mulf %35, %32 : vector<16x32xf32>
    %37 = arith.select %34, %32, %36 : vector<16x32xi1>, vector<16x32xf32>
    %38 = arith.truncf %37 : vector<16x32xf32> to vector<16x32xbf16>
    %c0_13 = arith.constant 0 : index
    %c0_14 = arith.constant 0 : index
    %39 = vector.load %arg4[%c0_13, %c0_14] : memref<32x32xbf16, #tpu.memory_space<vmem>>, vector<32x32xbf16>
    %cst_15 = arith.constant dense<0.000000e+00> : vector<16x32xf32>
    %40 = tpu.matmul %38, %39, %cst_15 {dimension_numbers = #tpu.dot_dimension_numbers<[1], [0], [0], [1], [0, 0, 1, 1], [], []>} : vector<16x32xbf16>, vector<32x32xbf16>, vector<16x32xf32> -> vector<16x32xf32>
    %41 = vector.extract_strided_slice %2 {offsets = [3, 0], sizes = [1, 32], strides = [1, 1]} : vector<8x32xf32> to vector<1x32xf32>
    %42 = vector.broadcast %41 : vector<1x32xf32> to vector<16x32xf32>
    %43 = arith.addf %40, %42 : vector<16x32xf32>
    %44 = vector.extract_strided_slice %2 {offsets = [4, 0], sizes = [1, 32], strides = [1, 1]} : vector<8x32xf32> to vector<1x32xf32>
    %45 = vector.extract_strided_slice %2 {offsets = [5, 0], sizes = [1, 32], strides = [1, 1]} : vector<8x32xf32> to vector<1x32xf32>
    %cst_16 = arith.constant dense<0.000000e+00> : vector<16xf32>
    %46 = vector.multi_reduction <add>, %43, %cst_16 [1] : vector<16x32xf32> to vector<16xf32>
    %47 = vector.shape_cast %46 : vector<16xf32> to vector<16x1xf32>
    %cst_17 = arith.constant 3.200000e+01 : f32
    %48 = vector.broadcast %cst_17 : f32 to vector<16x1xf32>
    %49 = arith.divf %47, %48 : vector<16x1xf32>
    %50 = vector.broadcast %49 : vector<16x1xf32> to vector<16x32xf32>
    %51 = arith.subf %43, %50 : vector<16x32xf32>
    %52 = arith.mulf %51, %51 : vector<16x32xf32>
    %cst_18 = arith.constant dense<0.000000e+00> : vector<16xf32>
    %53 = vector.multi_reduction <add>, %52, %cst_18 [1] : vector<16x32xf32> to vector<16xf32>
    %54 = vector.shape_cast %53 : vector<16xf32> to vector<16x1xf32>
    %cst_19 = arith.constant 3.200000e+01 : f32
    %55 = vector.broadcast %cst_19 : f32 to vector<16x1xf32>
    %56 = arith.divf %54, %55 : vector<16x1xf32>
    %57 = vector.broadcast %49 : vector<16x1xf32> to vector<16x32xf32>
    %58 = arith.subf %43, %57 : vector<16x32xf32>
    %cst_20 = arith.constant 9.99999974E-6 : f32
    %59 = vector.broadcast %cst_20 : f32 to vector<16x1xf32>
    %60 = arith.addf %56, %59 : vector<16x1xf32>
    %61 = math.rsqrt %60 : vector<16x1xf32>
    %62 = vector.broadcast %61 : vector<16x1xf32> to vector<16x32xf32>
    %63 = arith.mulf %58, %62 : vector<16x32xf32>
    %64 = vector.broadcast %44 : vector<1x32xf32> to vector<16x32xf32>
    %65 = arith.mulf %63, %64 : vector<16x32xf32>
    %66 = vector.broadcast %45 : vector<1x32xf32> to vector<16x32xf32>
    %67 = arith.addf %65, %66 : vector<16x32xf32>
    %cst_21 = arith.constant 5.000000e-01 : f32
    %68 = vector.broadcast %cst_21 : f32 to vector<16x32xf32>
    %69 = arith.mulf %68, %67 : vector<16x32xf32>
    %cst_22 = arith.constant 5.000000e-01 : f32
    %70 = vector.broadcast %cst_22 : f32 to vector<16x32xf32>
    %71 = arith.mulf %70, %1 : vector<16x32xf32>
    %72 = arith.addf %69, %71 : vector<16x32xf32>
    %73 = vector.extract_strided_slice %2 {offsets = [6, 0], sizes = [1, 32], strides = [1, 1]} : vector<8x32xf32> to vector<1x32xf32>
    %74 = vector.extract_strided_slice %2 {offsets = [7, 0], sizes = [1, 32], strides = [1, 1]} : vector<8x32xf32> to vector<1x32xf32>
    %cst_23 = arith.constant dense<0.000000e+00> : vector<16xf32>
    %75 = vector.multi_reduction <add>, %72, %cst_23 [1] : vector<16x32xf32> to vector<16xf32>
    %76 = vector.shape_cast %75 : vector<16xf32> to vector<16x1xf32>
    %cst_24 = arith.constant 3.200000e+01 : f32
    %77 = vector.broadcast %cst_24 : f32 to vector<16x1xf32>
    %78 = arith.divf %76, %77 : vector<16x1xf32>
    %79 = vector.broadcast %78 : vector<16x1xf32> to vector<16x32xf32>
    %80 = arith.subf %72, %79 : vector<16x32xf32>
    %81 = arith.mulf %80, %80 : vector<16x32xf32>
    %cst_25 = arith.constant dense<0.000000e+00> : vector<16xf32>
    %82 = vector.multi_reduction <add>, %81, %cst_25 [1] : vector<16x32xf32> to vector<16xf32>
    %83 = vector.shape_cast %82 : vector<16xf32> to vector<16x1xf32>
    %cst_26 = arith.constant 3.200000e+01 : f32
    %84 = vector.broadcast %cst_26 : f32 to vector<16x1xf32>
    %85 = arith.divf %83, %84 : vector<16x1xf32>
    %86 = vector.broadcast %78 : vector<16x1xf32> to vector<16x32xf32>
    %87 = arith.subf %72, %86 : vector<16x32xf32>
    %cst_27 = arith.constant 9.99999974E-6 : f32
    %88 = vector.broadcast %cst_27 : f32 to vector<16x1xf32>
    %89 = arith.addf %85, %88 : vector<16x1xf32>
    %90 = math.rsqrt %89 : vector<16x1xf32>
    %91 = vector.broadcast %90 : vector<16x1xf32> to vector<16x32xf32>
    %92 = arith.mulf %87, %91 : vector<16x32xf32>
    %93 = vector.broadcast %73 : vector<1x32xf32> to vector<16x32xf32>
    %94 = arith.mulf %92, %93 : vector<16x32xf32>
    %95 = vector.broadcast %74 : vector<1x32xf32> to vector<16x32xf32>
    %96 = arith.addf %94, %95 : vector<16x32xf32>
    %c0_28 = arith.constant 0 : index
    %c0_29 = arith.constant 0 : index
    %c0_30 = arith.constant 0 : index
    %97 = vector.load %arg6[%c0_28, %c0_29, %c0_30] : memref<1x16x32xf32, #tpu.memory_space<vmem>>, vector<1x16x32xf32>
    %98 = vector.shape_cast %97 : vector<1x16x32xf32> to vector<16x32xf32>
    %99 = vector.shape_cast %96 : vector<16x32xf32> to vector<1x16x32xf32>
    tpu.vector_store %arg6[%c0_28, %c0_29, %c0_30], %99 {strides = array<i32>} : memref<1x16x32xf32, #tpu.memory_space<vmem>>, vector<1x16x32xf32>,
    return
  }
  func.func @transform_0(%arg0: i32, %arg1: i32) -> (i32, i32, i32) {
    %c0_i32 = arith.constant 0 : i32
    %c0_i32_0 = arith.constant 0 : i32
    return %arg0, %arg1, %c0_i32 : i32, i32, i32
  }
  func.func @transform_1(%arg0: i32, %arg1: i32) -> (i32, i32) {
    %c0_i32 = arith.constant 0 : i32
    %c0_i32_0 = arith.constant 0 : i32
    %c0_i32_1 = arith.constant 0 : i32
    return %c0_i32, %c0_i32_0 : i32, i32
  }
  func.func @transform_2(%arg0: i32, %arg1: i32) -> (i32, i32) {
    %c0_i32 = arith.constant 0 : i32
    %c0_i32_0 = arith.constant 0 : i32
    %c0_i32_1 = arith.constant 0 : i32
    return %c0_i32, %c0_i32_0 : i32, i32
  }
  func.func @transform_3(%arg0: i32, %arg1: i32) -> (i32, i32) {
    %c0_i32 = arith.constant 0 : i32
    %c0_i32_0 = arith.constant 0 : i32
    %c0_i32_1 = arith.constant 0 : i32
    return %c0_i32, %c0_i32_0 : i32, i32
  }
  func.func @transform_4(%arg0: i32, %arg1: i32) -> (i32, i32, i32) {
    %c0_i32 = arith.constant 0 : i32
    %c0_i32_0 = arith.constant 0 : i32
    return %arg0, %arg1, %c0_i32 : i32, i32, i32
  }
}

module attributes {stable_mosaic.version = 11 : i64} {
  func.func @edge_coarse_kernel(%arg0: i32, %arg1: i32, %arg2: memref<1x8x16xf32, #tpu.memory_space<vmem>>, %arg3: memref<1x16x32xf32, #tpu.memory_space<vmem>>, %arg4: memref<1x8x32xf32, #tpu.memory_space<vmem>>, %arg5: memref<1x3x16xf32, #tpu.memory_space<vmem>>, %arg6: memref<1x8x3xf32, #tpu.memory_space<vmem>>, %arg7: memref<1x16x3xf32, #tpu.memory_space<vmem>>, %arg8: memref<1x4x8x16xf32, #tpu.memory_space<vmem>>, %arg9: memref<1x8x32xf32, #tpu.memory_space<vmem>>, %arg10: memref<1x8x3xf32, #tpu.memory_space<vmem>>, %arg11: memref<32x32xbf16, #tpu.memory_space<vmem>>, %arg12: memref<19x32xbf16, #tpu.memory_space<vmem>>, %arg13: memref<32x32xbf16, #tpu.memory_space<vmem>>, %arg14: memref<32x32xbf16, #tpu.memory_space<vmem>>, %arg15: memref<32x32xbf16, #tpu.memory_space<vmem>>, %arg16: memref<32x32xbf16, #tpu.memory_space<vmem>>, %arg17: memref<32x32xbf16, #tpu.memory_space<vmem>>, %arg18: memref<11x32xf32, #tpu.memory_space<vmem>>, %arg19: memref<8x32xf32, #tpu.memory_space<vmem>>, %arg20: memref<15x1x1xf32, #tpu.memory_space<vmem>>, %arg21: memref<1x8x3xf32, #tpu.memory_space<vmem>>, %arg22: memref<1x8x32xf32, #tpu.memory_space<vmem>>) attributes {dimension_semantics = [#tpu.dimension_semantics<parallel>, #tpu.dimension_semantics<parallel>], iteration_bounds = array<i64: 2, 1>, scalar_prefetch = 0 : i64, scratch_operands = 0 : i64, tpu.core_type = #tpu.core_type<tc>, window_params = [{transform_indices = @transform_0, window_bounds = array<i64: 1, 8, 16>}, {transform_indices = @transform_1, window_bounds = array<i64: 1, 16, 32>}, {transform_indices = @transform_2, window_bounds = array<i64: 1, 8, 32>}, {transform_indices = @transform_3, window_bounds = array<i64: 1, 3, 16>}, {transform_indices = @transform_4, window_bounds = array<i64: 1, 8, 3>}, {transform_indices = @transform_5, window_bounds = array<i64: 1, 16, 3>}, {transform_indices = @transform_6, window_bounds = array<i64: 1, 4, 8, 16>}, {transform_indices = @transform_7, window_bounds = array<i64: 1, 8, 32>}, {transform_indices = @transform_8, window_bounds = array<i64: 1, 8, 3>}, {pipeline_mode = #tpu.pipeline_mode<synchronous>, transform_indices = @transform_9, window_bounds = array<i64: 32, 32>}, {pipeline_mode = #tpu.pipeline_mode<synchronous>, transform_indices = @transform_10, window_bounds = array<i64: 19, 32>}, {pipeline_mode = #tpu.pipeline_mode<synchronous>, transform_indices = @transform_11, window_bounds = array<i64: 32, 32>}, {pipeline_mode = #tpu.pipeline_mode<synchronous>, transform_indices = @transform_12, window_bounds = array<i64: 32, 32>}, {pipeline_mode = #tpu.pipeline_mode<synchronous>, transform_indices = @transform_13, window_bounds = array<i64: 32, 32>}, {pipeline_mode = #tpu.pipeline_mode<synchronous>, transform_indices = @transform_14, window_bounds = array<i64: 32, 32>}, {pipeline_mode = #tpu.pipeline_mode<synchronous>, transform_indices = @transform_15, window_bounds = array<i64: 32, 32>}, {pipeline_mode = #tpu.pipeline_mode<synchronous>, transform_indices = @transform_16, window_bounds = array<i64: 11, 32>}, {pipeline_mode = #tpu.pipeline_mode<synchronous>, transform_indices = @transform_17, window_bounds = array<i64: 8, 32>}, {pipeline_mode = #tpu.pipeline_mode<synchronous>, transform_indices = @transform_18, window_bounds = array<i64: 15, 1, 1>}, {transform_indices = @transform_19, window_bounds = array<i64: 1, 8, 3>}, {transform_indices = @transform_20, window_bounds = array<i64: 1, 8, 32>}]} {
    %c0 = arith.constant 0 : index
    %c0_0 = arith.constant 0 : index
    %c0_1 = arith.constant 0 : index
    %0 = vector.load %arg2[%c0, %c0_0, %c0_1] : memref<1x8x16xf32, #tpu.memory_space<vmem>>, vector<1x8x16xf32>
    %1 = vector.shape_cast %0 : vector<1x8x16xf32> to vector<8x16xf32>
    %c0_2 = arith.constant 0 : index
    %c0_3 = arith.constant 0 : index
    %c0_4 = arith.constant 0 : index
    %2 = vector.load %arg6[%c0_2, %c0_3, %c0_4] : memref<1x8x3xf32, #tpu.memory_space<vmem>>, vector<1x8x3xf32>
    %3 = vector.shape_cast %2 : vector<1x8x3xf32> to vector<8x3xf32>
    %c0_5 = arith.constant 0 : index
    %c0_6 = arith.constant 0 : index
    %c0_7 = arith.constant 0 : index
    %4 = vector.load %arg5[%c0_5, %c0_6, %c0_7] : memref<1x3x16xf32, #tpu.memory_space<vmem>>, vector<1x3x16xf32>
    %5 = vector.shape_cast %4 : vector<1x3x16xf32> to vector<3x16xf32>
    %c0_8 = arith.constant 0 : index
    %c0_9 = arith.constant 0 : index
    %6 = vector.load %arg18[%c0_8, %c0_9] : memref<11x32xf32, #tpu.memory_space<vmem>>, vector<11x32xf32>
    %c0_10 = arith.constant 0 : index
    %c0_11 = arith.constant 0 : index
    %7 = vector.load %arg19[%c0_10, %c0_11] : memref<8x32xf32, #tpu.memory_space<vmem>>, vector<8x32xf32>
    %cst = arith.constant 0.000000e+00 : f32
    %8 = vector.broadcast %cst : f32 to vector<8x16xf32>
    %9 = vector.extract_strided_slice %5 {offsets = [0, 0], sizes = [1, 16], strides = [1, 1]} : vector<3x16xf32> to vector<1x16xf32>
    %10 = vector.shape_cast %9 : vector<1x16xf32> to vector<16xf32>
    %11 = vector.shape_cast %10 : vector<16xf32> to vector<1x16xf32>
    %12 = vector.extract_strided_slice %3 {offsets = [0, 0], sizes = [8, 1], strides = [1, 1]} : vector<8x3xf32> to vector<8x1xf32>
    %13 = vector.shape_cast %12 : vector<8x1xf32> to vector<8xf32>
    %14 = vector.shape_cast %13 : vector<8xf32> to vector<8x1xf32>
    %15 = vector.broadcast %11 : vector<1x16xf32> to vector<8x16xf32>
    %16 = vector.broadcast %14 : vector<8x1xf32> to vector<8x16xf32>
    %17 = arith.subf %15, %16 : vector<8x16xf32>
    %18 = arith.mulf %17, %17 : vector<8x16xf32>
    %19 = arith.addf %8, %18 : vector<8x16xf32>
    %20 = vector.extract_strided_slice %5 {offsets = [1, 0], sizes = [1, 16], strides = [1, 1]} : vector<3x16xf32> to vector<1x16xf32>
    %21 = vector.shape_cast %20 : vector<1x16xf32> to vector<16xf32>
    %22 = vector.shape_cast %21 : vector<16xf32> to vector<1x16xf32>
    %23 = vector.extract_strided_slice %3 {offsets = [0, 1], sizes = [8, 1], strides = [1, 1]} : vector<8x3xf32> to vector<8x1xf32>
    %24 = vector.shape_cast %23 : vector<8x1xf32> to vector<8xf32>
    %25 = vector.shape_cast %24 : vector<8xf32> to vector<8x1xf32>
    %26 = vector.broadcast %22 : vector<1x16xf32> to vector<8x16xf32>
    %27 = vector.broadcast %25 : vector<8x1xf32> to vector<8x16xf32>
    %28 = arith.subf %26, %27 : vector<8x16xf32>
    %29 = arith.mulf %28, %28 : vector<8x16xf32>
    %30 = arith.addf %19, %29 : vector<8x16xf32>
    %31 = vector.extract_strided_slice %5 {offsets = [2, 0], sizes = [1, 16], strides = [1, 1]} : vector<3x16xf32> to vector<1x16xf32>
    %32 = vector.shape_cast %31 : vector<1x16xf32> to vector<16xf32>
    %33 = vector.shape_cast %32 : vector<16xf32> to vector<1x16xf32>
    %34 = vector.extract_strided_slice %3 {offsets = [0, 2], sizes = [8, 1], strides = [1, 1]} : vector<8x3xf32> to vector<8x1xf32>
    %35 = vector.shape_cast %34 : vector<8x1xf32> to vector<8xf32>
    %36 = vector.shape_cast %35 : vector<8xf32> to vector<8x1xf32>
    %37 = vector.broadcast %33 : vector<1x16xf32> to vector<8x16xf32>
    %38 = vector.broadcast %36 : vector<8x1xf32> to vector<8x16xf32>
    %39 = arith.subf %37, %38 : vector<8x16xf32>
    %40 = arith.mulf %39, %39 : vector<8x16xf32>
    %41 = arith.addf %30, %40 : vector<8x16xf32>
    %c0_12 = arith.constant 0 : index
    %c0_13 = arith.constant 0 : index
    %c0_14 = arith.constant 0 : index
    %42 = vector.load %arg20[%c0_12, %c0_13, %c0_14] : memref<15x1x1xf32, #tpu.memory_space<vmem>>, vector<15x1x1xf32>
    %43 = vector.shape_cast %41 : vector<8x16xf32> to vector<1x8x16xf32>
    %44 = vector.broadcast %42 : vector<15x1x1xf32> to vector<15x8x16xf32>
    %45 = vector.broadcast %43 : vector<1x8x16xf32> to vector<15x8x16xf32>
    %46 = arith.mulf %44, %45 : vector<15x8x16xf32>
    %cst_15 = arith.constant 0.000000e+00 : f32
    %47 = vector.broadcast %cst_15 : f32 to vector<15x8x16xf32>
    %48 = arith.subf %47, %46 : vector<15x8x16xf32>
    %49 = math.exp %48 : vector<15x8x16xf32>
    %c0_16 = arith.constant 0 : index
    %c0_17 = arith.constant 0 : index
    %c0_18 = arith.constant 0 : index
    %c0_19 = arith.constant 0 : index
    %50 = vector.load %arg8[%c0_16, %c0_17, %c0_18, %c0_19] : memref<1x4x8x16xf32, #tpu.memory_space<vmem>>, vector<1x4x8x16xf32>
    %51 = vector.shape_cast %50 : vector<1x4x8x16xf32> to vector<4x8x16xf32>
    %52 = vector.shape_cast %1 : vector<8x16xf32> to vector<1x8x16xf32>
    %53 = vector.broadcast %52 : vector<1x8x16xf32> to vector<4x8x16xf32>
    %54 = arith.mulf %51, %53 : vector<4x8x16xf32>
    %55 = tpu.concatenate %54, %49 in 0 : vector<4x8x16xf32>, vector<15x8x16xf32> -> vector<19x8x16xf32>
    %56 = arith.truncf %55 : vector<19x8x16xf32> to vector<19x8x16xbf16>
    %57 = vector.shape_cast %56 : vector<19x8x16xbf16> to vector<19x128xbf16>
    %c0_20 = arith.constant 0 : index
    %c0_21 = arith.constant 0 : index
    %58 = vector.load %arg12[%c0_20, %c0_21] : memref<19x32xbf16, #tpu.memory_space<vmem>>, vector<19x32xbf16>
    %cst_22 = arith.constant dense<0.000000e+00> : vector<128x32xf32>
    %59 = tpu.matmul %57, %58, %cst_22 {dimension_numbers = #tpu.dot_dimension_numbers<[0], [0], [1], [1], [0, 1, 1, 1], [], []>} : vector<19x128xbf16>, vector<19x32xbf16>, vector<128x32xf32> -> vector<128x32xf32>
    %c0_23 = arith.constant 0 : index
    %c0_24 = arith.constant 0 : index
    %c0_25 = arith.constant 0 : index
    %60 = vector.load %arg4[%c0_23, %c0_24, %c0_25] : memref<1x8x32xf32, #tpu.memory_space<vmem>>, vector<1x8x32xf32>
    %61 = vector.shape_cast %60 : vector<1x8x32xf32> to vector<8x32xf32>
    %62 = arith.truncf %61 : vector<8x32xf32> to vector<8x32xbf16>
    %c0_26 = arith.constant 0 : index
    %c0_27 = arith.constant 0 : index
    %63 = vector.load %arg11[%c0_26, %c0_27] : memref<32x32xbf16, #tpu.memory_space<vmem>>, vector<32x32xbf16>
    %cst_28 = arith.constant dense<0.000000e+00> : vector<8x32xf32>
    %64 = tpu.matmul %62, %63, %cst_28 {dimension_numbers = #tpu.dot_dimension_numbers<[1], [0], [0], [1], [0, 0, 1, 1], [], []>} : vector<8x32xbf16>, vector<32x32xbf16>, vector<8x32xf32> -> vector<8x32xf32>
    %65 = vector.extract_strided_slice %6 {offsets = [0, 0], sizes = [1, 32], strides = [1, 1]} : vector<11x32xf32> to vector<1x32xf32>
    %66 = vector.broadcast %65 : vector<1x32xf32> to vector<8x32xf32>
    %67 = arith.addf %64, %66 : vector<8x32xf32>
    %68 = vector.shape_cast %59 : vector<128x32xf32> to vector<8x16x32xf32>
    %c0_29 = arith.constant 0 : index
    %c0_30 = arith.constant 0 : index
    %c0_31 = arith.constant 0 : index
    %69 = vector.load %arg3[%c0_29, %c0_30, %c0_31] : memref<1x16x32xf32, #tpu.memory_space<vmem>>, vector<1x16x32xf32>
    %70 = vector.shape_cast %69 : vector<1x16x32xf32> to vector<16x32xf32>
    %71 = vector.shape_cast %70 : vector<16x32xf32> to vector<1x16x32xf32>
    %72 = vector.broadcast %71 : vector<1x16x32xf32> to vector<8x16x32xf32>
    %73 = arith.addf %68, %72 : vector<8x16x32xf32>
    %74 = vector.shape_cast %67 : vector<8x32xf32> to vector<8x1x32xf32>
    %75 = vector.broadcast %74 : vector<8x1x32xf32> to vector<8x16x32xf32>
    %76 = arith.addf %73, %75 : vector<8x16x32xf32>
    %77 = vector.extract_strided_slice %6 {offsets = [1, 0], sizes = [1, 32], strides = [1, 1]} : vector<11x32xf32> to vector<1x32xf32>
    %78 = vector.extract_strided_slice %6 {offsets = [2, 0], sizes = [1, 32], strides = [1, 1]} : vector<11x32xf32> to vector<1x32xf32>
    %cst_32 = arith.constant dense<0.000000e+00> : vector<8x16xf32>
    %79 = vector.multi_reduction <add>, %76, %cst_32 [2] : vector<8x16x32xf32> to vector<8x16xf32>
    %80 = vector.shape_cast %79 : vector<8x16xf32> to vector<8x16x1xf32>
    %cst_33 = arith.constant 3.200000e+01 : f32
    %81 = vector.broadcast %cst_33 : f32 to vector<8x16x1xf32>
    %82 = arith.divf %80, %81 : vector<8x16x1xf32>
    %83 = vector.broadcast %82 : vector<8x16x1xf32> to vector<8x16x32xf32>
    %84 = arith.subf %76, %83 : vector<8x16x32xf32>
    %85 = arith.mulf %84, %84 : vector<8x16x32xf32>
    %cst_34 = arith.constant dense<0.000000e+00> : vector<8x16xf32>
    %86 = vector.multi_reduction <add>, %85, %cst_34 [2] : vector<8x16x32xf32> to vector<8x16xf32>
    %87 = vector.shape_cast %86 : vector<8x16xf32> to vector<8x16x1xf32>
    %cst_35 = arith.constant 3.200000e+01 : f32
    %88 = vector.broadcast %cst_35 : f32 to vector<8x16x1xf32>
    %89 = arith.divf %87, %88 : vector<8x16x1xf32>
    %90 = vector.broadcast %82 : vector<8x16x1xf32> to vector<8x16x32xf32>
    %91 = arith.subf %76, %90 : vector<8x16x32xf32>
    %cst_36 = arith.constant 9.99999974E-6 : f32
    %92 = vector.broadcast %cst_36 : f32 to vector<8x16x1xf32>
    %93 = arith.addf %89, %92 : vector<8x16x1xf32>
    %94 = math.rsqrt %93 : vector<8x16x1xf32>
    %95 = vector.broadcast %94 : vector<8x16x1xf32> to vector<8x16x32xf32>
    %96 = arith.mulf %91, %95 : vector<8x16x32xf32>
    %97 = vector.shape_cast %77 : vector<1x32xf32> to vector<1x1x32xf32>
    %98 = vector.broadcast %97 : vector<1x1x32xf32> to vector<8x16x32xf32>
    %99 = arith.mulf %96, %98 : vector<8x16x32xf32>
    %100 = vector.shape_cast %78 : vector<1x32xf32> to vector<1x1x32xf32>
    %101 = vector.broadcast %100 : vector<1x1x32xf32> to vector<8x16x32xf32>
    %102 = arith.addf %99, %101 : vector<8x16x32xf32>
    %cst_37 = arith.constant 0.000000e+00 : f32
    %103 = vector.broadcast %cst_37 : f32 to vector<8x16x32xf32>
    %104 = arith.cmpf ogt, %102, %103 : vector<8x16x32xf32>
    %cst_38 = arith.constant 0.00999999977 : f32
    %105 = vector.broadcast %cst_38 : f32 to vector<8x16x32xf32>
    %106 = arith.mulf %105, %102 : vector<8x16x32xf32>
    %107 = arith.select %104, %102, %106 : vector<8x16x32xi1>, vector<8x16x32xf32>
    %108 = vector.shape_cast %107 : vector<8x16x32xf32> to vector<128x32xf32>
    %109 = arith.truncf %108 : vector<128x32xf32> to vector<128x32xbf16>
    %c0_39 = arith.constant 0 : index
    %c0_40 = arith.constant 0 : index
    %110 = vector.load %arg13[%c0_39, %c0_40] : memref<32x32xbf16, #tpu.memory_space<vmem>>, vector<32x32xbf16>
    %cst_41 = arith.constant dense<0.000000e+00> : vector<128x32xf32>
    %111 = tpu.matmul %109, %110, %cst_41 {dimension_numbers = #tpu.dot_dimension_numbers<[1], [0], [0], [1], [0, 0, 1, 1], [], []>} : vector<128x32xbf16>, vector<32x32xbf16>, vector<128x32xf32> -> vector<128x32xf32>
    %112 = vector.extract_strided_slice %6 {offsets = [3, 0], sizes = [1, 32], strides = [1, 1]} : vector<11x32xf32> to vector<1x32xf32>
    %113 = vector.broadcast %112 : vector<1x32xf32> to vector<128x32xf32>
    %114 = arith.addf %111, %113 : vector<128x32xf32>
    %115 = vector.extract_strided_slice %6 {offsets = [4, 0], sizes = [1, 32], strides = [1, 1]} : vector<11x32xf32> to vector<1x32xf32>
    %116 = vector.extract_strided_slice %6 {offsets = [5, 0], sizes = [1, 32], strides = [1, 1]} : vector<11x32xf32> to vector<1x32xf32>
    %cst_42 = arith.constant dense<0.000000e+00> : vector<128xf32>
    %117 = vector.multi_reduction <add>, %114, %cst_42 [1] : vector<128x32xf32> to vector<128xf32>
    %118 = vector.shape_cast %117 : vector<128xf32> to vector<128x1xf32>
    %cst_43 = arith.constant 3.200000e+01 : f32
    %119 = vector.broadcast %cst_43 : f32 to vector<128x1xf32>
    %120 = arith.divf %118, %119 : vector<128x1xf32>
    %121 = vector.broadcast %120 : vector<128x1xf32> to vector<128x32xf32>
    %122 = arith.subf %114, %121 : vector<128x32xf32>
    %123 = arith.mulf %122, %122 : vector<128x32xf32>
    %cst_44 = arith.constant dense<0.000000e+00> : vector<128xf32>
    %124 = vector.multi_reduction <add>, %123, %cst_44 [1] : vector<128x32xf32> to vector<128xf32>
    %125 = vector.shape_cast %124 : vector<128xf32> to vector<128x1xf32>
    %cst_45 = arith.constant 3.200000e+01 : f32
    %126 = vector.broadcast %cst_45 : f32 to vector<128x1xf32>
    %127 = arith.divf %125, %126 : vector<128x1xf32>
    %128 = vector.broadcast %120 : vector<128x1xf32> to vector<128x32xf32>
    %129 = arith.subf %114, %128 : vector<128x32xf32>
    %cst_46 = arith.constant 9.99999974E-6 : f32
    %130 = vector.broadcast %cst_46 : f32 to vector<128x1xf32>
    %131 = arith.addf %127, %130 : vector<128x1xf32>
    %132 = math.rsqrt %131 : vector<128x1xf32>
    %133 = vector.broadcast %132 : vector<128x1xf32> to vector<128x32xf32>
    %134 = arith.mulf %129, %133 : vector<128x32xf32>
    %135 = vector.broadcast %115 : vector<1x32xf32> to vector<128x32xf32>
    %136 = arith.mulf %134, %135 : vector<128x32xf32>
    %137 = vector.broadcast %116 : vector<1x32xf32> to vector<128x32xf32>
    %138 = arith.addf %136, %137 : vector<128x32xf32>
    %139 = arith.truncf %138 : vector<128x32xf32> to vector<128x32xbf16>
    %c0_47 = arith.constant 0 : index
    %c0_48 = arith.constant 0 : index
    %140 = vector.load %arg14[%c0_47, %c0_48] : memref<32x32xbf16, #tpu.memory_space<vmem>>, vector<32x32xbf16>
    %cst_49 = arith.constant dense<0.000000e+00> : vector<128x32xf32>
    %141 = tpu.matmul %139, %140, %cst_49 {dimension_numbers = #tpu.dot_dimension_numbers<[1], [0], [0], [1], [0, 0, 1, 1], [], []>} : vector<128x32xbf16>, vector<32x32xbf16>, vector<128x32xf32> -> vector<128x32xf32>
    %142 = vector.extract_strided_slice %6 {offsets = [6, 0], sizes = [1, 32], strides = [1, 1]} : vector<11x32xf32> to vector<1x32xf32>
    %143 = vector.broadcast %142 : vector<1x32xf32> to vector<128x32xf32>
    %144 = arith.addf %141, %143 : vector<128x32xf32>
    %145 = vector.extract_strided_slice %6 {offsets = [7, 0], sizes = [1, 32], strides = [1, 1]} : vector<11x32xf32> to vector<1x32xf32>
    %146 = vector.extract_strided_slice %6 {offsets = [8, 0], sizes = [1, 32], strides = [1, 1]} : vector<11x32xf32> to vector<1x32xf32>
    %cst_50 = arith.constant dense<0.000000e+00> : vector<128xf32>
    %147 = vector.multi_reduction <add>, %144, %cst_50 [1] : vector<128x32xf32> to vector<128xf32>
    %148 = vector.shape_cast %147 : vector<128xf32> to vector<128x1xf32>
    %cst_51 = arith.constant 3.200000e+01 : f32
    %149 = vector.broadcast %cst_51 : f32 to vector<128x1xf32>
    %150 = arith.divf %148, %149 : vector<128x1xf32>
    %151 = vector.broadcast %150 : vector<128x1xf32> to vector<128x32xf32>
    %152 = arith.subf %144, %151 : vector<128x32xf32>
    %153 = arith.mulf %152, %152 : vector<128x32xf32>
    %cst_52 = arith.constant dense<0.000000e+00> : vector<128xf32>
    %154 = vector.multi_reduction <add>, %153, %cst_52 [1] : vector<128x32xf32> to vector<128xf32>
    %155 = vector.shape_cast %154 : vector<128xf32> to vector<128x1xf32>
    %cst_53 = arith.constant 3.200000e+01 : f32
    %156 = vector.broadcast %cst_53 : f32 to vector<128x1xf32>
    %157 = arith.divf %155, %156 : vector<128x1xf32>
    %158 = vector.broadcast %150 : vector<128x1xf32> to vector<128x32xf32>
    %159 = arith.subf %144, %158 : vector<128x32xf32>
    %cst_54 = arith.constant 9.99999974E-6 : f32
    %160 = vector.broadcast %cst_54 : f32 to vector<128x1xf32>
    %161 = arith.addf %157, %160 : vector<128x1xf32>
    %162 = math.rsqrt %161 : vector<128x1xf32>
    %163 = vector.broadcast %162 : vector<128x1xf32> to vector<128x32xf32>
    %164 = arith.mulf %159, %163 : vector<128x32xf32>
    %165 = vector.broadcast %145 : vector<1x32xf32> to vector<128x32xf32>
    %166 = arith.mulf %164, %165 : vector<128x32xf32>
    %167 = vector.broadcast %146 : vector<1x32xf32> to vector<128x32xf32>
    %168 = arith.addf %166, %167 : vector<128x32xf32>
    %cst_55 = arith.constant 0.000000e+00 : f32
    %169 = vector.broadcast %cst_55 : f32 to vector<128x32xf32>
    %170 = arith.cmpf ogt, %168, %169 : vector<128x32xf32>
    %cst_56 = arith.constant 0.00999999977 : f32
    %171 = vector.broadcast %cst_56 : f32 to vector<128x32xf32>
    %172 = arith.mulf %171, %168 : vector<128x32xf32>
    %173 = arith.select %170, %168, %172 : vector<128x32xi1>, vector<128x32xf32>
    %174 = vector.shape_cast %173 : vector<128x32xf32> to vector<8x16x32xf32>
    %175 = vector.extract_strided_slice %6 {offsets = [9, 0], sizes = [1, 32], strides = [1, 1]} : vector<11x32xf32> to vector<1x32xf32>
    %176 = vector.shape_cast %175 : vector<1x32xf32> to vector<1x1x32xf32>
    %177 = vector.broadcast %176 : vector<1x1x32xf32> to vector<8x16x32xf32>
    %178 = arith.mulf %174, %177 : vector<8x16x32xf32>
    %cst_57 = arith.constant dense<0.000000e+00> : vector<8x16xf32>
    %179 = vector.multi_reduction <add>, %178, %cst_57 [2] : vector<8x16x32xf32> to vector<8x16xf32>
    %180 = vector.extract_strided_slice %6 {offsets = [10, 0], sizes = [1, 1], strides = [1, 1]} : vector<11x32xf32> to vector<1x1xf32>
    %181 = vector.broadcast %180 : vector<1x1xf32> to vector<8x16xf32>
    %182 = arith.addf %179, %181 : vector<8x16xf32>
    %cst_58 = arith.constant dense<0.000000e+00> : vector<8xf32>
    %183 = vector.multi_reduction <add>, %1, %cst_58 [1] : vector<8x16xf32> to vector<8xf32>
    %184 = vector.shape_cast %183 : vector<8xf32> to vector<8x1xf32>
    %cst_59 = arith.constant 0.000000e+00 : f32
    %185 = vector.broadcast %cst_59 : f32 to vector<8x1xf32>
    %186 = arith.cmpf ogt, %184, %185 : vector<8x1xf32>
    %cst_60 = arith.constant 1.000000e+00 : f32
    %187 = vector.broadcast %cst_60 : f32 to vector<8x1xf32>
    %188 = arith.maximumf %184, %187 : vector<8x1xf32>
    %cst_61 = arith.constant 1.000000e+00 : f32
    %189 = vector.broadcast %cst_61 : f32 to vector<8x1xf32>
    %190 = arith.divf %189, %188 : vector<8x1xf32>
    %cst_62 = arith.constant 0.000000e+00 : f32
    %191 = vector.broadcast %cst_62 : f32 to vector<8x1xf32>
    %192 = arith.select %186, %190, %191 : vector<8x1xi1>, vector<8x1xf32>
    %193 = vector.shape_cast %1 : vector<8x16xf32> to vector<8x16x1xf32>
    %194 = vector.shape_cast %138 : vector<128x32xf32> to vector<8x16x32xf32>
    %195 = vector.broadcast %193 : vector<8x16x1xf32> to vector<8x16x32xf32>
    %196 = arith.mulf %195, %194 : vector<8x16x32xf32>
    %cst_63 = arith.constant dense<0.000000e+00> : vector<8x32xf32>
    %197 = vector.multi_reduction <add>, %196, %cst_63 [1] : vector<8x16x32xf32> to vector<8x32xf32>
    %198 = vector.broadcast %192 : vector<8x1xf32> to vector<8x32xf32>
    %199 = arith.mulf %197, %198 : vector<8x32xf32>
    %200 = arith.mulf %1, %182 : vector<8x16xf32>
    %cst_64 = arith.constant dense<0.000000e+00> : vector<8xf32>
    %201 = vector.multi_reduction <add>, %200, %cst_64 [1] : vector<8x16xf32> to vector<8xf32>
    %202 = vector.shape_cast %201 : vector<8xf32> to vector<8x1xf32>
    %c0_65 = arith.constant 0 : index
    %c0_66 = arith.constant 0 : index
    %c0_67 = arith.constant 0 : index
    %203 = vector.load %arg7[%c0_65, %c0_66, %c0_67] : memref<1x16x3xf32, #tpu.memory_space<vmem>>, vector<1x16x3xf32>
    %204 = vector.shape_cast %203 : vector<1x16x3xf32> to vector<16x3xf32>
    %cst_68 = arith.constant dense<0.000000e+00> : vector<8x3xf32>
    %205 = tpu.matmul %200, %204, %cst_68 {dimension_numbers = #tpu.dot_dimension_numbers<[1], [0], [0], [1], [0, 0, 1, 1], [], []>} : vector<8x16xf32>, vector<16x3xf32>, vector<8x3xf32> -> vector<8x3xf32>
    %206 = vector.broadcast %202 : vector<8x1xf32> to vector<8x3xf32>
    %207 = arith.mulf %3, %206 : vector<8x3xf32>
    %208 = arith.subf %205, %207 : vector<8x3xf32>
    %209 = vector.broadcast %192 : vector<8x1xf32> to vector<8x3xf32>
    %210 = arith.mulf %208, %209 : vector<8x3xf32>
    %c0_69 = arith.constant 0 : index
    %c0_70 = arith.constant 0 : index
    %c0_71 = arith.constant 0 : index
    %211 = vector.load %arg9[%c0_69, %c0_70, %c0_71] : memref<1x8x32xf32, #tpu.memory_space<vmem>>, vector<1x8x32xf32>
    %212 = vector.shape_cast %211 : vector<1x8x32xf32> to vector<8x32xf32>
    %213 = arith.truncf %212 : vector<8x32xf32> to vector<8x32xbf16>
    %c0_72 = arith.constant 0 : index
    %c0_73 = arith.constant 0 : index
    %214 = vector.load %arg15[%c0_72, %c0_73] : memref<32x32xbf16, #tpu.memory_space<vmem>>, vector<32x32xbf16>
    %cst_74 = arith.constant dense<0.000000e+00> : vector<8x32xf32>
    %215 = tpu.matmul %213, %214, %cst_74 {dimension_numbers = #tpu.dot_dimension_numbers<[1], [0], [0], [1], [0, 0, 1, 1], [], []>} : vector<8x32xbf16>, vector<32x32xbf16>, vector<8x32xf32> -> vector<8x32xf32>
    %216 = arith.truncf %199 : vector<8x32xf32> to vector<8x32xbf16>
    %c0_75 = arith.constant 0 : index
    %c0_76 = arith.constant 0 : index
    %217 = vector.load %arg16[%c0_75, %c0_76] : memref<32x32xbf16, #tpu.memory_space<vmem>>, vector<32x32xbf16>
    %cst_77 = arith.constant dense<0.000000e+00> : vector<8x32xf32>
    %218 = tpu.matmul %216, %217, %cst_77 {dimension_numbers = #tpu.dot_dimension_numbers<[1], [0], [0], [1], [0, 0, 1, 1], [], []>} : vector<8x32xbf16>, vector<32x32xbf16>, vector<8x32xf32> -> vector<8x32xf32>
    %219 = arith.addf %215, %218 : vector<8x32xf32>
    %220 = vector.extract_strided_slice %7 {offsets = [0, 0], sizes = [1, 32], strides = [1, 1]} : vector<8x32xf32> to vector<1x32xf32>
    %221 = vector.broadcast %220 : vector<1x32xf32> to vector<8x32xf32>
    %222 = arith.addf %219, %221 : vector<8x32xf32>
    %223 = vector.extract_strided_slice %7 {offsets = [1, 0], sizes = [1, 32], strides = [1, 1]} : vector<8x32xf32> to vector<1x32xf32>
    %224 = vector.extract_strided_slice %7 {offsets = [2, 0], sizes = [1, 32], strides = [1, 1]} : vector<8x32xf32> to vector<1x32xf32>
    %cst_78 = arith.constant dense<0.000000e+00> : vector<8xf32>
    %225 = vector.multi_reduction <add>, %222, %cst_78 [1] : vector<8x32xf32> to vector<8xf32>
    %226 = vector.shape_cast %225 : vector<8xf32> to vector<8x1xf32>
    %cst_79 = arith.constant 3.200000e+01 : f32
    %227 = vector.broadcast %cst_79 : f32 to vector<8x1xf32>
    %228 = arith.divf %226, %227 : vector<8x1xf32>
    %229 = vector.broadcast %228 : vector<8x1xf32> to vector<8x32xf32>
    %230 = arith.subf %222, %229 : vector<8x32xf32>
    %231 = arith.mulf %230, %230 : vector<8x32xf32>
    %cst_80 = arith.constant dense<0.000000e+00> : vector<8xf32>
    %232 = vector.multi_reduction <add>, %231, %cst_80 [1] : vector<8x32xf32> to vector<8xf32>
    %233 = vector.shape_cast %232 : vector<8xf32> to vector<8x1xf32>
    %cst_81 = arith.constant 3.200000e+01 : f32
    %234 = vector.broadcast %cst_81 : f32 to vector<8x1xf32>
    %235 = arith.divf %233, %234 : vector<8x1xf32>
    %236 = vector.broadcast %228 : vector<8x1xf32> to vector<8x32xf32>
    %237 = arith.subf %222, %236 : vector<8x32xf32>
    %cst_82 = arith.constant 9.99999974E-6 : f32
    %238 = vector.broadcast %cst_82 : f32 to vector<8x1xf32>
    %239 = arith.addf %235, %238 : vector<8x1xf32>
    %240 = math.rsqrt %239 : vector<8x1xf32>
    %241 = vector.broadcast %240 : vector<8x1xf32> to vector<8x32xf32>
    %242 = arith.mulf %237, %241 : vector<8x32xf32>
    %243 = vector.broadcast %223 : vector<1x32xf32> to vector<8x32xf32>
    %244 = arith.mulf %242, %243 : vector<8x32xf32>
    %245 = vector.broadcast %224 : vector<1x32xf32> to vector<8x32xf32>
    %246 = arith.addf %244, %245 : vector<8x32xf32>
    %cst_83 = arith.constant 0.000000e+00 : f32
    %247 = vector.broadcast %cst_83 : f32 to vector<8x32xf32>
    %248 = arith.cmpf ogt, %246, %247 : vector<8x32xf32>
    %cst_84 = arith.constant 0.00999999977 : f32
    %249 = vector.broadcast %cst_84 : f32 to vector<8x32xf32>
    %250 = arith.mulf %249, %246 : vector<8x32xf32>
    %251 = arith.select %248, %246, %250 : vector<8x32xi1>, vector<8x32xf32>
    %252 = arith.truncf %251 : vector<8x32xf32> to vector<8x32xbf16>
    %c0_85 = arith.constant 0 : index
    %c0_86 = arith.constant 0 : index
    %253 = vector.load %arg17[%c0_85, %c0_86] : memref<32x32xbf16, #tpu.memory_space<vmem>>, vector<32x32xbf16>
    %cst_87 = arith.constant dense<0.000000e+00> : vector<8x32xf32>
    %254 = tpu.matmul %252, %253, %cst_87 {dimension_numbers = #tpu.dot_dimension_numbers<[1], [0], [0], [1], [0, 0, 1, 1], [], []>} : vector<8x32xbf16>, vector<32x32xbf16>, vector<8x32xf32> -> vector<8x32xf32>
    %255 = vector.extract_strided_slice %7 {offsets = [3, 0], sizes = [1, 32], strides = [1, 1]} : vector<8x32xf32> to vector<1x32xf32>
    %256 = vector.broadcast %255 : vector<1x32xf32> to vector<8x32xf32>
    %257 = arith.addf %254, %256 : vector<8x32xf32>
    %258 = vector.extract_strided_slice %7 {offsets = [4, 0], sizes = [1, 32], strides = [1, 1]} : vector<8x32xf32> to vector<1x32xf32>
    %259 = vector.extract_strided_slice %7 {offsets = [5, 0], sizes = [1, 32], strides = [1, 1]} : vector<8x32xf32> to vector<1x32xf32>
    %cst_88 = arith.constant dense<0.000000e+00> : vector<8xf32>
    %260 = vector.multi_reduction <add>, %257, %cst_88 [1] : vector<8x32xf32> to vector<8xf32>
    %261 = vector.shape_cast %260 : vector<8xf32> to vector<8x1xf32>
    %cst_89 = arith.constant 3.200000e+01 : f32
    %262 = vector.broadcast %cst_89 : f32 to vector<8x1xf32>
    %263 = arith.divf %261, %262 : vector<8x1xf32>
    %264 = vector.broadcast %263 : vector<8x1xf32> to vector<8x32xf32>
    %265 = arith.subf %257, %264 : vector<8x32xf32>
    %266 = arith.mulf %265, %265 : vector<8x32xf32>
    %cst_90 = arith.constant dense<0.000000e+00> : vector<8xf32>
    %267 = vector.multi_reduction <add>, %266, %cst_90 [1] : vector<8x32xf32> to vector<8xf32>
    %268 = vector.shape_cast %267 : vector<8xf32> to vector<8x1xf32>
    %cst_91 = arith.constant 3.200000e+01 : f32
    %269 = vector.broadcast %cst_91 : f32 to vector<8x1xf32>
    %270 = arith.divf %268, %269 : vector<8x1xf32>
    %271 = vector.broadcast %263 : vector<8x1xf32> to vector<8x32xf32>
    %272 = arith.subf %257, %271 : vector<8x32xf32>
    %cst_92 = arith.constant 9.99999974E-6 : f32
    %273 = vector.broadcast %cst_92 : f32 to vector<8x1xf32>
    %274 = arith.addf %270, %273 : vector<8x1xf32>
    %275 = math.rsqrt %274 : vector<8x1xf32>
    %276 = vector.broadcast %275 : vector<8x1xf32> to vector<8x32xf32>
    %277 = arith.mulf %272, %276 : vector<8x32xf32>
    %278 = vector.broadcast %258 : vector<1x32xf32> to vector<8x32xf32>
    %279 = arith.mulf %277, %278 : vector<8x32xf32>
    %280 = vector.broadcast %259 : vector<1x32xf32> to vector<8x32xf32>
    %281 = arith.addf %279, %280 : vector<8x32xf32>
    %cst_93 = arith.constant 5.000000e-01 : f32
    %282 = vector.broadcast %cst_93 : f32 to vector<8x32xf32>
    %283 = arith.mulf %282, %281 : vector<8x32xf32>
    %cst_94 = arith.constant 5.000000e-01 : f32
    %284 = vector.broadcast %cst_94 : f32 to vector<8x32xf32>
    %285 = arith.mulf %284, %212 : vector<8x32xf32>
    %286 = arith.addf %283, %285 : vector<8x32xf32>
    %287 = vector.extract_strided_slice %7 {offsets = [6, 0], sizes = [1, 32], strides = [1, 1]} : vector<8x32xf32> to vector<1x32xf32>
    %288 = vector.extract_strided_slice %7 {offsets = [7, 0], sizes = [1, 32], strides = [1, 1]} : vector<8x32xf32> to vector<1x32xf32>
    %cst_95 = arith.constant dense<0.000000e+00> : vector<8xf32>
    %289 = vector.multi_reduction <add>, %286, %cst_95 [1] : vector<8x32xf32> to vector<8xf32>
    %290 = vector.shape_cast %289 : vector<8xf32> to vector<8x1xf32>
    %cst_96 = arith.constant 3.200000e+01 : f32
    %291 = vector.broadcast %cst_96 : f32 to vector<8x1xf32>
    %292 = arith.divf %290, %291 : vector<8x1xf32>
    %293 = vector.broadcast %292 : vector<8x1xf32> to vector<8x32xf32>
    %294 = arith.subf %286, %293 : vector<8x32xf32>
    %295 = arith.mulf %294, %294 : vector<8x32xf32>
    %cst_97 = arith.constant dense<0.000000e+00> : vector<8xf32>
    %296 = vector.multi_reduction <add>, %295, %cst_97 [1] : vector<8x32xf32> to vector<8xf32>
    %297 = vector.shape_cast %296 : vector<8xf32> to vector<8x1xf32>
    %cst_98 = arith.constant 3.200000e+01 : f32
    %298 = vector.broadcast %cst_98 : f32 to vector<8x1xf32>
    %299 = arith.divf %297, %298 : vector<8x1xf32>
    %300 = vector.broadcast %292 : vector<8x1xf32> to vector<8x32xf32>
    %301 = arith.subf %286, %300 : vector<8x32xf32>
    %cst_99 = arith.constant 9.99999974E-6 : f32
    %302 = vector.broadcast %cst_99 : f32 to vector<8x1xf32>
    %303 = arith.addf %299, %302 : vector<8x1xf32>
    %304 = math.rsqrt %303 : vector<8x1xf32>
    %305 = vector.broadcast %304 : vector<8x1xf32> to vector<8x32xf32>
    %306 = arith.mulf %301, %305 : vector<8x32xf32>
    %307 = vector.broadcast %287 : vector<1x32xf32> to vector<8x32xf32>
    %308 = arith.mulf %306, %307 : vector<8x32xf32>
    %309 = vector.broadcast %288 : vector<1x32xf32> to vector<8x32xf32>
    %310 = arith.addf %308, %309 : vector<8x32xf32>
    %c0_100 = arith.constant 0 : index
    %c0_101 = arith.constant 0 : index
    %c0_102 = arith.constant 0 : index
    %311 = vector.load %arg22[%c0_100, %c0_101, %c0_102] : memref<1x8x32xf32, #tpu.memory_space<vmem>>, vector<1x8x32xf32>
    %312 = vector.shape_cast %311 : vector<1x8x32xf32> to vector<8x32xf32>
    %313 = vector.shape_cast %310 : vector<8x32xf32> to vector<1x8x32xf32>
    tpu.vector_store %arg22[%c0_100, %c0_101, %c0_102], %313 {strides = array<i32>} : memref<1x8x32xf32, #tpu.memory_space<vmem>>, vector<1x8x32xf32>,
    %c0_103 = arith.constant 0 : index
    %c0_104 = arith.constant 0 : index
    %c0_105 = arith.constant 0 : index
    %314 = vector.load %arg10[%c0_103, %c0_104, %c0_105] : memref<1x8x3xf32, #tpu.memory_space<vmem>>, vector<1x8x3xf32>
    %315 = vector.shape_cast %314 : vector<1x8x3xf32> to vector<8x3xf32>
    %cst_106 = arith.constant 2.500000e-01 : f32
    %316 = vector.broadcast %cst_106 : f32 to vector<8x3xf32>
    %317 = arith.mulf %316, %315 : vector<8x3xf32>
    %cst_107 = arith.constant 7.500000e-01 : f32
    %318 = vector.broadcast %cst_107 : f32 to vector<8x3xf32>
    %319 = arith.mulf %318, %3 : vector<8x3xf32>
    %320 = arith.addf %317, %319 : vector<8x3xf32>
    %321 = arith.addf %320, %210 : vector<8x3xf32>
    %c0_108 = arith.constant 0 : index
    %c0_109 = arith.constant 0 : index
    %c0_110 = arith.constant 0 : index
    %322 = vector.load %arg21[%c0_108, %c0_109, %c0_110] : memref<1x8x3xf32, #tpu.memory_space<vmem>>, vector<1x8x3xf32>
    %323 = vector.shape_cast %322 : vector<1x8x3xf32> to vector<8x3xf32>
    %324 = vector.shape_cast %321 : vector<8x3xf32> to vector<1x8x3xf32>
    tpu.vector_store %arg21[%c0_108, %c0_109, %c0_110], %324 {strides = array<i32>} : memref<1x8x3xf32, #tpu.memory_space<vmem>>, vector<1x8x3xf32>,
    return
  }
  func.func @transform_0(%arg0: i32, %arg1: i32) -> (i32, i32, i32) {
    %c0_i32 = arith.constant 0 : i32
    %c0_i32_0 = arith.constant 0 : i32
    return %arg0, %arg1, %c0_i32 : i32, i32, i32
  }
  func.func @transform_1(%arg0: i32, %arg1: i32) -> (i32, i32, i32) {
    %c0_i32 = arith.constant 0 : i32
    %c0_i32_0 = arith.constant 0 : i32
    %c0_i32_1 = arith.constant 0 : i32
    return %arg0, %c0_i32, %c0_i32_0 : i32, i32, i32
  }
  func.func @transform_2(%arg0: i32, %arg1: i32) -> (i32, i32, i32) {
    %c0_i32 = arith.constant 0 : i32
    %c0_i32_0 = arith.constant 0 : i32
    return %arg0, %arg1, %c0_i32 : i32, i32, i32
  }
  func.func @transform_3(%arg0: i32, %arg1: i32) -> (i32, i32, i32) {
    %c0_i32 = arith.constant 0 : i32
    %c0_i32_0 = arith.constant 0 : i32
    %c0_i32_1 = arith.constant 0 : i32
    return %arg0, %c0_i32, %c0_i32_0 : i32, i32, i32
  }
  func.func @transform_4(%arg0: i32, %arg1: i32) -> (i32, i32, i32) {
    %c0_i32 = arith.constant 0 : i32
    %c0_i32_0 = arith.constant 0 : i32
    return %arg0, %arg1, %c0_i32 : i32, i32, i32
  }
  func.func @transform_5(%arg0: i32, %arg1: i32) -> (i32, i32, i32) {
    %c0_i32 = arith.constant 0 : i32
    %c0_i32_0 = arith.constant 0 : i32
    %c0_i32_1 = arith.constant 0 : i32
    return %arg0, %c0_i32, %c0_i32_0 : i32, i32, i32
  }
  func.func @transform_6(%arg0: i32, %arg1: i32) -> (i32, i32, i32, i32) {
    %c0_i32 = arith.constant 0 : i32
    %c0_i32_0 = arith.constant 0 : i32
    %c0_i32_1 = arith.constant 0 : i32
    return %arg0, %c0_i32, %arg1, %c0_i32_0 : i32, i32, i32, i32
  }
  func.func @transform_7(%arg0: i32, %arg1: i32) -> (i32, i32, i32) {
    %c0_i32 = arith.constant 0 : i32
    %c0_i32_0 = arith.constant 0 : i32
    return %arg0, %arg1, %c0_i32 : i32, i32, i32
  }
  func.func @transform_8(%arg0: i32, %arg1: i32) -> (i32, i32, i32) {
    %c0_i32 = arith.constant 0 : i32
    %c0_i32_0 = arith.constant 0 : i32
    return %arg0, %arg1, %c0_i32 : i32, i32, i32
  }
  func.func @transform_9(%arg0: i32, %arg1: i32) -> (i32, i32) {
    %c0_i32 = arith.constant 0 : i32
    %c0_i32_0 = arith.constant 0 : i32
    %c0_i32_1 = arith.constant 0 : i32
    return %c0_i32, %c0_i32_0 : i32, i32
  }
  func.func @transform_10(%arg0: i32, %arg1: i32) -> (i32, i32) {
    %c0_i32 = arith.constant 0 : i32
    %c0_i32_0 = arith.constant 0 : i32
    %c0_i32_1 = arith.constant 0 : i32
    return %c0_i32, %c0_i32_0 : i32, i32
  }
  func.func @transform_11(%arg0: i32, %arg1: i32) -> (i32, i32) {
    %c0_i32 = arith.constant 0 : i32
    %c0_i32_0 = arith.constant 0 : i32
    %c0_i32_1 = arith.constant 0 : i32
    return %c0_i32, %c0_i32_0 : i32, i32
  }
  func.func @transform_12(%arg0: i32, %arg1: i32) -> (i32, i32) {
    %c0_i32 = arith.constant 0 : i32
    %c0_i32_0 = arith.constant 0 : i32
    %c0_i32_1 = arith.constant 0 : i32
    return %c0_i32, %c0_i32_0 : i32, i32
  }
  func.func @transform_13(%arg0: i32, %arg1: i32) -> (i32, i32) {
    %c0_i32 = arith.constant 0 : i32
    %c0_i32_0 = arith.constant 0 : i32
    %c0_i32_1 = arith.constant 0 : i32
    return %c0_i32, %c0_i32_0 : i32, i32
  }
  func.func @transform_14(%arg0: i32, %arg1: i32) -> (i32, i32) {
    %c0_i32 = arith.constant 0 : i32
    %c0_i32_0 = arith.constant 0 : i32
    %c0_i32_1 = arith.constant 0 : i32
    return %c0_i32, %c0_i32_0 : i32, i32
  }
  func.func @transform_15(%arg0: i32, %arg1: i32) -> (i32, i32) {
    %c0_i32 = arith.constant 0 : i32
    %c0_i32_0 = arith.constant 0 : i32
    %c0_i32_1 = arith.constant 0 : i32
    return %c0_i32, %c0_i32_0 : i32, i32
  }
  func.func @transform_16(%arg0: i32, %arg1: i32) -> (i32, i32) {
    %c0_i32 = arith.constant 0 : i32
    %c0_i32_0 = arith.constant 0 : i32
    %c0_i32_1 = arith.constant 0 : i32
    return %c0_i32, %c0_i32_0 : i32, i32
  }
  func.func @transform_17(%arg0: i32, %arg1: i32) -> (i32, i32) {
    %c0_i32 = arith.constant 0 : i32
    %c0_i32_0 = arith.constant 0 : i32
    %c0_i32_1 = arith.constant 0 : i32
    return %c0_i32, %c0_i32_0 : i32, i32
  }
  func.func @transform_18(%arg0: i32, %arg1: i32) -> (i32, i32, i32) {
    %c0_i32 = arith.constant 0 : i32
    %c0_i32_0 = arith.constant 0 : i32
    %c0_i32_1 = arith.constant 0 : i32
    %c0_i32_2 = arith.constant 0 : i32
    return %c0_i32, %c0_i32_0, %c0_i32_1 : i32, i32, i32
  }
  func.func @transform_19(%arg0: i32, %arg1: i32) -> (i32, i32, i32) {
    %c0_i32 = arith.constant 0 : i32
    %c0_i32_0 = arith.constant 0 : i32
    return %arg0, %arg1, %c0_i32 : i32, i32, i32
  }
  func.func @transform_20(%arg0: i32, %arg1: i32) -> (i32, i32, i32) {
    %c0_i32 = arith.constant 0 : i32
    %c0_i32_0 = arith.constant 0 : i32
    return %arg0, %arg1, %c0_i32 : i32, i32, i32
  }
}

</mosaic_0001>

<llo_original>
// kernel: pooling_3d_layer.3
$region0: #{pooling_3d_layer.3}
  #allocation0 [shape = 'u32[]', space=smem, size = 0x4, offset = 0x4, fixed_abs, tag = 'smem constant byte address 0x4 - core index']
  #allocation1 [shape = 'u32[144,128]{1,0:T(1,128)}', space=vmem, size = 0x12000, scoped, tag = 'internal scratch']
  %s0 = inlined_call_operand.vmem [shape: f32[2,16,32], index: 0, kind: input, shape index: {}]
  %s1 = inlined_call_operand.vmem [shape: bf16[32,32], index: 1, kind: input, shape index: {}]
  %s2 = inlined_call_operand.vmem [shape: bf16[32,32], index: 2, kind: input, shape index: {}]
  %s3 = inlined_call_operand.vmem [shape: f32[8,32], index: 3, kind: input, shape index: {}]
  %s4 = inlined_call_operand.vmem [shape: f32[2,16,32], index: 4, kind: output, shape index: {}]
  %s5 = sld [smem:[#allocation0]]
  $region49: #{pooling_3d_layer.3} parent=0
    _
  %s7 = ssub.s32 1, %s5
  %s8 = scalar_select 0, %s7, %s5
  loop: start=0, step=1, limit=4
  $region2: #{pooling_3d_layer.3} parent=0 // loop_pre_header
    _
  $region3: #{pooling_3d_layer.3} parent=0 // loop_header
    %s10 = sphi 0, %s14
    %p11 = scmp.ge.s32.totalorder %s10, 4
    %s17 = sphi 0, %s29
    %s18 = sphi 0, %s25
    %s19 = sphi 0, %s17
    %s20 = sphi 0, %s18
    %s21 = sphi 0, %s19
    %s22 = sphi 0, %s20
    %s34 = sphi 0, %s36
    %s37 = sphi 0, %s34
    %s38 = sphi 0, %s37
    %s54 = sphi 0, %s38
    %s58 = sphi 0, %s58
    %s60 = sphi 0, %s58
    %s61 = sphi 0, %s60
    %s75 = sphi 0, %s61
    %s79 = sphi 0, %s79
    %s81 = sphi 0, %s79
    %s82 = sphi 0, %s81
    %s96 = sphi 0, %s82
    %s100 = sphi 0, %s100
    %s102 = sphi 0, %s100
    %s103 = sphi 0, %s102
    %s117 = sphi 0, %s103
    %s125 = sphi 0, %s127
    %s128 = sphi 0, %s125
    %s129 = sphi 0, %s128
    %s145 = sphi 0, %s129
  $region4: #{pooling_3d_layer.3} parent=0 // loop_header_branch
    %13 = sbr.rel (%p11) target = $region8
  $region5: #{pooling_3d_layer.3} parent=0 // loop_body
    %s15 = ssub.s32 %s10, 1
    %s16 = ssub.s32 %s10, 2
    %s23 = sadd.s32 1, %s18
    %p24 = scmp.ge.s32.totalorder %s23, 1
    %s25 = scalar_select %p24, 0, %s23
    %s26 = sadd.s32 1, %s17
    %s27 = scalar_select %p24, %s26, %s17
    %p28 = scmp.ge.s32.totalorder %s27, 2
    %s29 = scalar_select %p28, 0, %s27
    %s30 = ssub.s32 %s17, %s29
    %s31 = ssub.s32 %s18, %s25
    %s32 = sor.u32 %s30, %s31
    %p33 = scmp.eq.s32.totalorder %s32, 0
    %s35 = sadd.s32 %s34, 1
    %s36 = scalar_select %p33, %s34, %s35
    %p39 = pneg %p33
    %p40 = scmp.eq.s32.totalorder %s10, 1
    %p41 = por %p39, %p40
    %p42 = scmp.ne.s32.totalorder %s34, %s37
    %p43 = scmp.eq.s32.totalorder %s10, 0
    %p44 = por %p42, %p43
    %p45 = scmp.ne.s32.totalorder %s34, %s37
    %p46 = scmp.eq.s32.totalorder %s15, 1
    %p47 = por %p45, %p46
    %p48 = scmp.ne.s32.totalorder %s37, %s38
    %p49 = scmp.eq.s32.totalorder %s15, 0
    %p50 = por %p48, %p49
    %p51 = scmp.ne.s32.totalorder %s37, %s38
    %p52 = scmp.eq.s32.totalorder %s16, 1
    %p53 = por %p51, %p52
    %p55 = scmp.ne.s32.totalorder %s38, %s54
    %p56 = scmp.eq.s32.totalorder %s16, 0
    %p57 = por %p55, %p56
    %s59 = sadd.s32 %s58, 1
    %p62 = scmp.eq.s32.totalorder %s10, 1
    %p63 = scmp.ne.s32.totalorder %s58, %s60
    %p64 = scmp.eq.s32.totalorder %s10, 0
    %p65 = por %p63, %p64
    %p66 = scmp.ne.s32.totalorder %s58, %s60
    %p67 = scmp.eq.s32.totalorder %s15, 1
    %p68 = por %p66, %p67
    %p69 = scmp.ne.s32.totalorder %s60, %s61
    %p70 = scmp.eq.s32.totalorder %s15, 0
    %p71 = por %p69, %p70
    %p72 = scmp.ne.s32.totalorder %s60, %s61
    %p73 = scmp.eq.s32.totalorder %s16, 1
    %p74 = por %p72, %p73
    %p76 = scmp.ne.s32.totalorder %s61, %s75
    %p77 = scmp.eq.s32.totalorder %s16, 0
    %p78 = por %p76, %p77
    %s80 = sadd.s32 %s79, 1
    %p83 = scmp.eq.s32.totalorder %s10, 1
    %p84 = scmp.ne.s32.totalorder %s79, %s81
    %p85 = scmp.eq.s32.totalorder %s10, 0
    %p86 = por %p84, %p85
    %p87 = scmp.ne.s32.totalorder %s79, %s81
    %p88 = scmp.eq.s32.totalorder %s15, 1
    %p89 = por %p87, %p88
    %p90 = scmp.ne.s32.totalorder %s81, %s82
    %p91 = scmp.eq.s32.totalorder %s15, 0
    %p92 = por %p90, %p91
    %p93 = scmp.ne.s32.totalorder %s81, %s82
    %p94 = scmp.eq.s32.totalorder %s16, 1
    %p95 = por %p93, %p94
    %p97 = scmp.ne.s32.totalorder %s82, %s96
    %p98 = scmp.eq.s32.totalorder %s16, 0
    %p99 = por %p97, %p98
    %s101 = sadd.s32 %s100, 1
    %p104 = scmp.eq.s32.totalorder %s10, 1
    %p105 = scmp.ne.s32.totalorder %s100, %s102
    %p106 = scmp.eq.s32.totalorder %s10, 0
    %p107 = por %p105, %p106
    %p108 = scmp.ne.s32.totalorder %s100, %s102
    %p109 = scmp.eq.s32.totalorder %s15, 1
    %p110 = por %p108, %p109
    %p111 = scmp.ne.s32.totalorder %s102, %s103
    %p112 = scmp.eq.s32.totalorder %s15, 0
    %p113 = por %p111, %p112
    %p114 = scmp.ne.s32.totalorder %s102, %s103
    %p115 = scmp.eq.s32.totalorder %s16, 1
    %p116 = por %p114, %p115
    %p118 = scmp.ne.s32.totalorder %s103, %s117
    %p119 = scmp.eq.s32.totalorder %s16, 0
    %p120 = por %p118, %p119
    %s121 = ssub.s32 %s17, %s29
    %s122 = ssub.s32 %s18, %s25
    %s123 = sor.u32 %s121, %s122
    %p124 = scmp.eq.s32.totalorder %s123, 0
    %s126 = sadd.s32 %s125, 1
    %s127 = scalar_select %p124, %s125, %s126
    %p130 = pneg %p124
    %p131 = scmp.eq.s32.totalorder %s10, 1
    %p132 = por %p130, %p131
    %p133 = scmp.ne.s32.totalorder %s125, %s128
    %p134 = scmp.eq.s32.totalorder %s10, 0
    %p135 = por %p133, %p134
    %p136 = scmp.ne.s32.totalorder %s125, %s128
    %p137 = scmp.eq.s32.totalorder %s15, 1
    %p138 = por %p136, %p137
    %p139 = scmp.ne.s32.totalorder %s128, %s129
    %p140 = scmp.eq.s32.totalorder %s15, 0
    %p141 = por %p139, %p140
    %p142 = scmp.ne.s32.totalorder %s128, %s129
    %p143 = scmp.eq.s32.totalorder %s16, 1
    %p144 = por %p142, %p143
    %p146 = scmp.ne.s32.totalorder %s129, %s145
    %p147 = scmp.eq.s32.totalorder %s16, 0
    %p148 = por %p146, %p147
    %p149 = scmp.le.s32.totalorder 1, %s10
    %p150 = scmp.lt.s32.totalorder %s10, 3
    %p151 = pnand %p149, %p150
    %p152 = pneg %p151
    // Predicated region
    $region9: #{pooling_3d_layer.3} parent=5 // pred_check
      _
    $region10: #{pooling_3d_layer.3} parent=5 // pred_check_branch
      %154 = sbr.rel (%p151) target = $region12
    $region11: #{pooling_3d_layer.3} parent=5 // pred_region
      %s155 = ssub.s32 %s10, 1
      // Predicated region
      $region13: #{pooling_3d_layer.3} parent=11 // pred_check
        %p156 = pneg %p71
      $region14: #{pooling_3d_layer.3} parent=11 // pred_check_branch
        %158 = sbr.rel (%p156) target = $region16
      $region15: #{pooling_3d_layer.3} parent=11 // pred_region
        _
      $region16: #{pooling_3d_layer.3} parent=11 // pred_fallthru
        _
      // Predicated region
      $region17: #{pooling_3d_layer.3} parent=11 // pred_check
        %p159 = pneg %p92
      $region18: #{pooling_3d_layer.3} parent=11 // pred_check_branch
        %161 = sbr.rel (%p159) target = $region20
      $region19: #{pooling_3d_layer.3} parent=11 // pred_region
        _
      $region20: #{pooling_3d_layer.3} parent=11 // pred_fallthru
        _
      // Predicated region
      $region21: #{pooling_3d_layer.3} parent=11 // pred_check
        %p162 = pneg %p113
      $region22: #{pooling_3d_layer.3} parent=11 // pred_check_branch
        %164 = sbr.rel (%p162) target = $region24
      $region23: #{pooling_3d_layer.3} parent=11 // pred_region
        _
      $region24: #{pooling_3d_layer.3} parent=11 // pred_fallthru
        _
    $region12: #{pooling_3d_layer.3} parent=5 // pred_fallthru
      _
    %p165 = scmp.lt.s32.totalorder %s10, 2
    // Predicated region
    $region25: #{pooling_3d_layer.3} parent=5 // pred_check
      %p166 = pneg %p165
    $region26: #{pooling_3d_layer.3} parent=5 // pred_check_branch
      %168 = sbr.rel (%p166) target = $region28
    $region27: #{pooling_3d_layer.3} parent=5 // pred_region
      // Predicated region
      $region29: #{pooling_3d_layer.3} parent=27 // pred_check
        %p169 = pneg %p44
      $region30: #{pooling_3d_layer.3} parent=27 // pred_check_branch
        %171 = sbr.rel (%p169) target = $region32
      $region31: #{pooling_3d_layer.3} parent=27 // pred_region
        %s172 = smul.u32 2, %s18
        %p173 = scmp.lt.s32.totalorder %s17, 1
        %s174 = scalar_select %p173, %s17, 1
        %p175 = scmp.lt.s32.totalorder %s172, 1
        %s176 = scalar_select %p175, %s172, 1
        %s177 = smul.addr %s174, 2
        %s178 = sadd.s32 %s176, %s177
        %s179 = smul.addr %s178, 8
        %s180 = scalar_lea.vmem %s0, %s179
        %s181 = smul.u32 2, %s18
      $region32: #{pooling_3d_layer.3} parent=27 // pred_fallthru
        _
    $region28: #{pooling_3d_layer.3} parent=5 // pred_fallthru
      _
    %p182 = scmp.le.s32.totalorder 1, %s10
    %p183 = scmp.lt.s32.totalorder %s10, 3
    %p184 = pnand %p182, %p183
    %p185 = pneg %p184
    // Predicated region
    $region33: #{pooling_3d_layer.3} parent=5 // pred_check
      _
    $region34: #{pooling_3d_layer.3} parent=5 // pred_check_branch
      %187 = sbr.rel (%p184) target = $region36
    $region35: #{pooling_3d_layer.3} parent=5 // pred_region
      %s188 = ssub.s32 %s10, 1
      %s189 = smul.u32 2, %s20
      %p190 = scmp.lt.s32.totalorder %s19, 1
      %s191 = scalar_select %p190, %s19, 1
      %p192 = scmp.lt.s32.totalorder %s189, 1
      %s193 = scalar_select %p192, %s189, 1
      %s194 = smul.addr %s191, 2
      %s195 = sadd.s32 %s193, %s194
      %s196 = smul.addr %s195, 8
      %s197 = scalar_lea.vmem %s0, %s196
      %p198 = pneg %p50
      %p199 = pneg %p47
      %p200 = pneg %p71
      %p201 = pneg %p68
      %p202 = pneg %p92
      %p203 = pneg %p89
      %p204 = pneg %p113
      %p205 = pneg %p110
      %p206 = pneg %p141
      %p207 = pneg %p138
      %s208 = smul.u32 2, %s20
      %p209 = scmp.lt.s32.totalorder %s19, 1
      %s210 = scalar_select %p209, %s19, 1
      %p211 = scmp.lt.s32.totalorder %s208, 1
      %s212 = scalar_select %p211, %s208, 1
      %s213 = smul.addr %s210, 2
      %s214 = sadd.s32 %s212, %s213
      %s215 = smul.addr %s214, 8
      %s216 = scalar_lea.vmem %s4, %s215
      %s217 = smul.u32 2, %s20
      %p218 = scmp.lt.s32.totalorder %s19, 1
      %s219 = scalar_select %p218, %s19, 1
      %p220 = scmp.lt.s32.totalorder %s217, 1
      %s221 = scalar_select %p220, %s217, 1
      %s222 = smul.addr %s219, 2
      %s223 = sadd.s32 %s221, %s222
      %s224 = smul.addr %s223, 8
      %s225 = scalar_lea.vmem %s0, %s224
      %s226 = smul.u32 2, %s20
      %s227 = smul.u32 2, %s20
      %p228 = scmp.lt.s32.totalorder %s19, 1
      %s229 = scalar_select %p228, %s19, 1
      %p230 = scmp.lt.s32.totalorder %s227, 1
      %s231 = scalar_select %p230, %s227, 1
      %s232 = smul.addr %s229, 2
      %s233 = sadd.s32 %s231, %s232
      %s234 = smul.addr %s233, 8
      %s235 = scalar_lea.vmem %s4, %s234
      %s236 = smul.u32 2, %s20
      %v238 = vld [vmem:[%s225] sm:$0xff]
      %v239 = vld [vmem:[%s225 + $0x8] sm:$0xff]
      %v240 = vld [vmem:[%s3] sm:$0xff]
      %v241 = vpack.c.bf16 %v239, %v238
      %v242 = vld [vmem:[%s1] sm:$0xf]
      %v243 = vld [vmem:[%s1 + $0x4] sm:$0xf]
      %v244 = vld [vmem:[%s1 + $0x8] sm:$0xf]
      %v245 = vld [vmem:[%s1 + $0xc] sm:$0xf]
      %v246 = vlaneseq
      %v247 = vshrl.u32 %v246, 7
      %v248 = vsub.s32 0, %v247
      %v249 = vrot.slane %v240, %v248
      %v254 = vunpack.c.l.b16 %v242
      %v255 = vunpack.c.l.b16 %v243
      %v256 = vunpack.c.l.b16 %v244
      %v257 = vunpack.c.l.b16 %v245
      %v258 = vpack.c.b16 %v255, %v254
      %v259 = vpack.c.b16 %v257, %v256
      %vm262 = vcmask 261120
      %v264 = vsel %vm262, %v241, 0
      %266 = vmatprep.subr.bf16.mxu0 0
      %267 = vmatpush1.bf16.msra.mxu0 %v258
      %268 = vmatprep.subr.bf16.mxu0 0
      %269 = vmatpush1.bf16.msra.mxu0 %v259
      %270 = vmatprep.subr.bf16.mxu0 0
      %271 = vmatpush1.bf16.msra.mxu0 0
      %272 = vmatprep.subr.bf16.mxu0 0
      %273 = vmatpush1.bf16.msra.mxu0 0
      %274 = vmatprep.subr.bf16.mxu0 0
      %275 = vmatpush1.bf16.msra.mxu0 0
      %276 = vmatprep.subr.bf16.mxu0 0
      %277 = vmatpush1.bf16.msra.mxu0 0
      %278 = vmatprep.subr.bf16.mxu0 0
      %279 = vmatpush1.bf16.msra.mxu0 0
      %280 = vmatprep.subr.bf16.mxu0 0
      %281 = vmatpush1.bf16.msra.mxu0 0
      %282 = vmatprep.subr.bf16.mxu0 0
      %283 = vmatpush1.bf16.msra.mxu0 0
      %284 = vmatprep.subr.bf16.mxu0 0
      %285 = vmatpush1.bf16.msra.mxu0 0
      %286 = vmatprep.subr.bf16.mxu0 0
      %287 = vmatpush1.bf16.msra.mxu0 0
      %288 = vmatprep.subr.bf16.mxu0 0
      %289 = vmatpush1.bf16.msra.mxu0 0
      %290 = vmatprep.subr.bf16.mxu0 0
      %291 = vmatpush1.bf16.msra.mxu0 0
      %292 = vmatprep.subr.bf16.mxu0 0
      %293 = vmatpush1.bf16.msra.mxu0 0
      %294 = vmatprep.subr.bf16.mxu0 0
      %295 = vmatpush1.bf16.msra.mxu0 0
      %296 = vmatprep.subr.bf16.mxu0 0
      %297 = vmatpush1.bf16.msra.mxu0 0
      %298 = vmatprep.mubr.bf16.mxu0 0
      %299 = vmatmul.mubr.bf16.gmra.mrb[0].mxu0 %v264
      %v300 = vpop.f32.mrb[0].mxu0
      %v301 = vadd.f32 %v249, %v300
      %v302 = vpop.f32.mrb[0].mxu0
      %v303 = vpop.f32.mrb[0].mxu0
      %v304 = vadd.f32 %v249, %v303
      %v305 = vpop.f32.mrb[0].mxu0
      %306 = vdwg.mxu0
      %v307 = vsel %vm262, %v301, 0.0
      %308 = vadd.xlane.f32.xlu0 %v307
      %v309 = vpop.xlane.xlu0 %308
      %v310 = vsel %vm262, %v304, 0.0
      %311 = vadd.xlane.f32.xlu0 %v310
      %v312 = vpop.xlane.xlu0 %311
      %v313 = vrcp.pop 32.0
      %v314 = vmul.f32 %v309, %v313
      %v315 = vmul.f32 %v312, %v313
      %v316 = vsub.f32 %v301, %v314
      %v317 = vsub.f32 %v304, %v315
      %v318 = vmul.f32 %v316, %v316
      %v319 = vmul.f32 %v317, %v317
      %v320 = vsel %vm262, %v318, 0.0
      %321 = vadd.xlane.f32.xlu0 %v320
      %v322 = vpop.xlane.xlu0 %321
      %v323 = vsel %vm262, %v319, 0.0
      %324 = vadd.xlane.f32.xlu0 %v323
      %v325 = vpop.xlane.xlu0 %324
      %v326 = vmul.f32 %v322, %v313
      %v327 = vmul.f32 %v325, %v313
      %v328 = vadd.f32 %v326, 1e-05
      %v329 = vadd.f32 %v327, 1e-05
      %v330 = vrsqrt.pop %v328
      %v331 = vrsqrt.pop %v329
      %v332 = vmul.f32 %v316, %v330
      %v333 = vmul.f32 %v317, %v331
      %v334 = vlaneseq
      %v335 = vshrl.u32 %v334, 7
      %v336 = vsub.s32 1, %v335
      %v337 = vrot.slane %v240, %v336
      %v338 = vmul.f32 %v332, %v337
      %v339 = vmul.f32 %v333, %v337
      %v340 = vlaneseq
      %v341 = vshrl.u32 %v340, 7
      %v342 = vsub.s32 2, %v341
      %v343 = vrot.slane %v240, %v342
      %v344 = vadd.f32 %v338, %v343
      %v345 = vadd.f32 %v339, %v343
      %vm346 = vcmp.gt.f32.partialorder %v344, 0.0
      %vm347 = vcmp.gt.f32.partialorder %v345, 0.0
      %v348 = vmul.f32 %v344, 0.01
      %v349 = vmul.f32 %v345, 0.01
      %v350 = vsel %vm346, %v344, %v348
      %v351 = vsel %vm347, %v345, %v349
      %v352 = vpack.c.bf16 %v351, %v350
      %v353 = vld [vmem:[%s2] sm:$0xf]
      %v354 = vld [vmem:[%s2 + $0x4] sm:$0xf]
      %v355 = vld [vmem:[%s2 + $0x8] sm:$0xf]
      %v356 = vld [vmem:[%s2 + $0xc] sm:$0xf]
      %v357 = vlaneseq
      %v358 = vshrl.u32 %v357, 7
      %v359 = vsub.s32 3, %v358
      %v360 = vrot.slane %v240, %v359
      %v365 = vunpack.c.l.b16 %v353
      %v366 = vunpack.c.l.b16 %v354
      %v367 = vunpack.c.l.b16 %v355
      %v368 = vunpack.c.l.b16 %v356
      %v369 = vpack.c.b16 %v366, %v365
      %v370 = vpack.c.b16 %v368, %v367
      %v374 = vsel %vm262, %v352, 0
      %376 = vmatprep.subr.bf16.mxu0 0
      %377 = vmatpush1.bf16.msra.mxu0 %v369
      %378 = vmatprep.subr.bf16.mxu0 0
      %379 = vmatpush1.bf16.msra.mxu0 %v370
      %380 = vmatprep.subr.bf16.mxu0 0
      %381 = vmatpush1.bf16.msra.mxu0 0
      %382 = vmatprep.subr.bf16.mxu0 0
      %383 = vmatpush1.bf16.msra.mxu0 0
      %384 = vmatprep.subr.bf16.mxu0 0
      %385 = vmatpush1.bf16.msra.mxu0 0
      %386 = vmatprep.subr.bf16.mxu0 0
      %387 = vmatpush1.bf16.msra.mxu0 0
      %388 = vmatprep.subr.bf16.mxu0 0
      %389 = vmatpush1.bf16.msra.mxu0 0
      %390 = vmatprep.subr.bf16.mxu0 0
      %391 = vmatpush1.bf16.msra.mxu0 0
      %392 = vmatprep.subr.bf16.mxu0 0
      %393 = vmatpush1.bf16.msra.mxu0 0
      %394 = vmatprep.subr.bf16.mxu0 0
      %395 = vmatpush1.bf16.msra.mxu0 0
      %396 = vmatprep.subr.bf16.mxu0 0
      %397 = vmatpush1.bf16.msra.mxu0 0
      %398 = vmatprep.subr.bf16.mxu0 0
      %399 = vmatpush1.bf16.msra.mxu0 0
      %400 = vmatprep.subr.bf16.mxu0 0
      %401 = vmatpush1.bf16.msra.mxu0 0
      %402 = vmatprep.subr.bf16.mxu0 0
      %403 = vmatpush1.bf16.msra.mxu0 0
      %404 = vmatprep.subr.bf16.mxu0 0
      %405 = vmatpush1.bf16.msra.mxu0 0
      %406 = vmatprep.subr.bf16.mxu0 0
      %407 = vmatpush1.bf16.msra.mxu0 0
      %408 = vmatprep.mubr.bf16.mxu0 0
      %409 = vmatmul.mubr.bf16.gmra.mrb[0].mxu0 %v374
      %v410 = vpop.f32.mrb[0].mxu0
      %v411 = vadd.f32 %v360, %v410
      %v412 = vpop.f32.mrb[0].mxu0
      %v413 = vpop.f32.mrb[0].mxu0
      %v414 = vadd.f32 %v360, %v413
      %v415 = vpop.f32.mrb[0].mxu0
      %416 = vdwg.mxu0
      %v417 = vsel %vm262, %v411, 0.0
      %418 = vadd.xlane.f32.xlu0 %v417
      %v419 = vpop.xlane.xlu0 %418
      %v420 = vsel %vm262, %v414, 0.0
      %421 = vadd.xlane.f32.xlu0 %v420
      %v422 = vpop.xlane.xlu0 %421
      %v423 = vmul.f32 %v419, %v313
      %v424 = vmul.f32 %v422, %v313
      %v425 = vsub.f32 %v411, %v423
      %v426 = vsub.f32 %v414, %v424
      %v427 = vmul.f32 %v425, %v425
      %v428 = vmul.f32 %v426, %v426
      %v429 = vsel %vm262, %v427, 0.0
      %430 = vadd.xlane.f32.xlu0 %v429
      %v431 = vpop.xlane.xlu0 %430
      %v432 = vsel %vm262, %v428, 0.0
      %433 = vadd.xlane.f32.xlu0 %v432
      %v434 = vpop.xlane.xlu0 %433
      %v435 = vmul.f32 %v431, %v313
      %v436 = vmul.f32 %v434, %v313
      %v437 = vadd.f32 %v435, 1e-05
      %v438 = vadd.f32 %v436, 1e-05
      %v439 = vrsqrt.pop %v437
      %v440 = vrsqrt.pop %v438
      %v441 = vmul.f32 %v425, %v439
      %v442 = vmul.f32 %v426, %v440
      %v443 = vlaneseq
      %v444 = vshrl.u32 %v443, 7
      %v445 = vsub.s32 4, %v444
      %v446 = vrot.slane %v240, %v445
      %v447 = vmul.f32 %v441, %v446
      %v448 = vmul.f32 %v442, %v446
      %v449 = vlaneseq
      %v450 = vshrl.u32 %v449, 7
      %v451 = vsub.s32 5, %v450
      %v452 = vrot.slane %v240, %v451
      %v453 = vadd.f32 %v447, %v452
      %v454 = vadd.f32 %v448, %v452
      %v455 = vmul.f32 %v453, 0.5
      %v456 = vmul.f32 %v454, 0.5
      %v457 = vmul.f32 %v238, 0.5
      %v458 = vmul.f32 %v239, 0.5
      %v459 = vadd.f32 %v455, %v457
      %v460 = vadd.f32 %v456, %v458
      %v461 = vsel %vm262, %v459, 0.0
      %462 = vadd.xlane.f32.xlu0 %v461
      %v463 = vpop.xlane.xlu0 %462
      %v464 = vsel %vm262, %v460, 0.0
      %465 = vadd.xlane.f32.xlu0 %v464
      %v466 = vpop.xlane.xlu0 %465
      %v467 = vmul.f32 %v463, %v313
      %v468 = vmul.f32 %v466, %v313
      %v469 = vsub.f32 %v459, %v467
      %v470 = vsub.f32 %v460, %v468
      %v471 = vmul.f32 %v469, %v469
      %v472 = vmul.f32 %v470, %v470
      %v473 = vsel %vm262, %v471, 0.0
      %474 = vadd.xlane.f32.xlu0 %v473
      %v475 = vpop.xlane.xlu0 %474
      %v476 = vsel %vm262, %v472, 0.0
      %477 = vadd.xlane.f32.xlu0 %v476
      %v478 = vpop.xlane.xlu0 %477
      %v479 = vmul.f32 %v475, %v313
      %v480 = vmul.f32 %v478, %v313
      %v481 = vadd.f32 %v479, 1e-05
      %v482 = vadd.f32 %v480, 1e-05
      %v483 = vrsqrt.pop %v481
      %v484 = vrsqrt.pop %v482
      %v485 = vmul.f32 %v469, %v483
      %v486 = vmul.f32 %v470, %v484
      %v487 = vlaneseq
      %v488 = vshrl.u32 %v487, 7
      %v489 = vsub.s32 6, %v488
      %v490 = vrot.slane %v240, %v489
      %v491 = vmul.f32 %v485, %v490
      %v492 = vmul.f32 %v486, %v490
      %v493 = vlaneseq
      %v494 = vshrl.u32 %v493, 7
      %v495 = vsub.s32 7, %v494
      %v496 = vrot.slane %v240, %v495
      %v497 = vadd.f32 %v491, %v496
      %v498 = vadd.f32 %v492, %v496
      %499 = vst.msk [vmem:[%s235] sm:$0xff] %vm262, %v497
      %500 = vst.msk [vmem:[%s235 + $0x8] sm:$0xff] %vm262, %v498
      %s501 = smul.u32 2, %s20
      %p502 = scmp.lt.s32.totalorder %s19, 1
      %s503 = scalar_select %p502, %s19, 1
      %p504 = scmp.lt.s32.totalorder %s501, 1
      %s505 = scalar_select %p504, %s501, 1
      %s506 = smul.addr %s503, 2
      %s507 = sadd.s32 %s505, %s506
      %s508 = smul.addr %s507, 8
      %s509 = scalar_lea.vmem %s4, %s508
      // Predicated region
      $region37: #{pooling_3d_layer.3} parent=35 // pred_check
        %p510 = pneg %p138
      $region38: #{pooling_3d_layer.3} parent=35 // pred_check_branch
        %512 = sbr.rel (%p510) target = $region40
      $region39: #{pooling_3d_layer.3} parent=35 // pred_region
        %s513 = smul.u32 2, %s20
      $region40: #{pooling_3d_layer.3} parent=35 // pred_fallthru
        _
    $region36: #{pooling_3d_layer.3} parent=5 // pred_fallthru
      _
    %p514 = scmp.le.s32.totalorder 2, %s10
    // Predicated region
    $region41: #{pooling_3d_layer.3} parent=5 // pred_check
      %p515 = pneg %p514
    $region42: #{pooling_3d_layer.3} parent=5 // pred_check_branch
      %517 = sbr.rel (%p515) target = $region44
    $region43: #{pooling_3d_layer.3} parent=5 // pred_region
      %s518 = ssub.s32 %s10, 2
      // Predicated region
      $region45: #{pooling_3d_layer.3} parent=43 // pred_check
        %p519 = pneg %p144
      $region46: #{pooling_3d_layer.3} parent=43 // pred_check_branch
        %521 = sbr.rel (%p519) target = $region48
      $region47: #{pooling_3d_layer.3} parent=43 // pred_region
        %s522 = smul.u32 2, %s22
        %p523 = scmp.lt.s32.totalorder %s21, 1
        %s524 = scalar_select %p523, %s21, 1
        %p525 = scmp.lt.s32.totalorder %s522, 1
        %s526 = scalar_select %p525, %s522, 1
        %s527 = smul.addr %s524, 2
        %s528 = sadd.s32 %s526, %s527
        %s529 = smul.addr %s528, 8
        %s530 = scalar_lea.vmem %s4, %s529
      $region48: #{pooling_3d_layer.3} parent=43 // pred_fallthru
        _
    $region44: #{pooling_3d_layer.3} parent=5 // pred_fallthru
      _
  $region6: #{pooling_3d_layer.3} parent=0 // loop_footer
    %s14 = sadd.s32 1, %s10
  $region7: #{pooling_3d_layer.3} parent=0 // loop_footer_branch
    %9 = sbr.rel target = $region3
  $region8: #{pooling_3d_layer.3} parent=0 // loop_exit
    _

// kernel: pooling_3d_layer.2
$region0: #{pooling_3d_layer.2}
  #allocation0 [shape = 'u32[]', space=smem, size = 0x4, offset = 0x4, fixed_abs, tag = 'smem constant byte address 0x4 - core index']
  #allocation1 [shape = 'u32[144,128]{1,0:T(1,128)}', space=vmem, size = 0x12000, scoped, tag = 'internal scratch']
  %s0 = inlined_call_operand.vmem [shape: f32[2,8,16], index: 0, kind: input, shape index: {}]
  %s1 = inlined_call_operand.vmem [shape: f32[2,16,32], index: 1, kind: input, shape index: {}]
  %s2 = inlined_call_operand.vmem [shape: f32[2,8,32], index: 2, kind: input, shape index: {}]
  %s3 = inlined_call_operand.vmem [shape: f32[2,3,16], index: 3, kind: input, shape index: {}]
  %s4 = inlined_call_operand.vmem [shape: f32[2,8,3], index: 4, kind: input, shape index: {}]
  %s5 = inlined_call_operand.vmem [shape: f32[2,16,3], index: 5, kind: input, shape index: {}]
  %s6 = inlined_call_operand.vmem [shape: f32[2,4,8,16], index: 6, kind: input, shape index: {}]
  %s7 = inlined_call_operand.vmem [shape: f32[2,8,32], index: 7, kind: input, shape index: {}]
  %s8 = inlined_call_operand.vmem [shape: f32[2,8,3], index: 8, kind: input, shape index: {}]
  %s9 = inlined_call_operand.vmem [shape: bf16[32,32], index: 9, kind: input, shape index: {}]
  %s10 = inlined_call_operand.vmem [shape: bf16[19,32], index: 10, kind: input, shape index: {}]
  %s11 = inlined_call_operand.vmem [shape: bf16[32,32], index: 11, kind: input, shape index: {}]
  %s12 = inlined_call_operand.vmem [shape: bf16[32,32], index: 12, kind: input, shape index: {}]
  %s13 = inlined_call_operand.vmem [shape: bf16[32,32], index: 13, kind: input, shape index: {}]
  %s14 = inlined_call_operand.vmem [shape: bf16[32,32], index: 14, kind: input, shape index: {}]
  %s15 = inlined_call_operand.vmem [shape: bf16[32,32], index: 15, kind: input, shape index: {}]
  %s16 = inlined_call_operand.vmem [shape: f32[11,32], index: 16, kind: input, shape index: {}]
  %s17 = inlined_call_operand.vmem [shape: f32[8,32], index: 17, kind: input, shape index: {}]
  %s18 = inlined_call_operand.vmem [shape: f32[15,1,1], index: 18, kind: input, shape index: {}]
  %s19 = inlined_call_operand.vmem [shape: f32[2,8,3], index: 19, kind: output, shape index: {0}]
  %s20 = inlined_call_operand.vmem [shape: f32[2,8,32], index: 20, kind: output, shape index: {1}]
  %21 = xla_tuple %s19, %s20
  %s22 = sld [smem:[#allocation0]]
  $region117: #{pooling_3d_layer.2} parent=0
    _
  %s24 = ssub.s32 1, %s22
  %s25 = scalar_select 0, %s24, %s22
  loop: start=0, step=1, limit=4
  $region2: #{pooling_3d_layer.2} parent=0 // loop_pre_header
    _
  $region3: #{pooling_3d_layer.2} parent=0 // loop_header
    %s27 = sphi 0, %s31
    %p28 = scmp.ge.s32.totalorder %s27, 4
    %s34 = sphi 0, %s46
    %s35 = sphi 0, %s42
    %s36 = sphi 0, %s34
    %s37 = sphi 0, %s35
    %s38 = sphi 0, %s36
    %s39 = sphi 0, %s37
    %s51 = sphi 0, %s53
    %s54 = sphi 0, %s51
    %s55 = sphi 0, %s54
    %s71 = sphi 0, %s55
    %s77 = sphi 0, %s79
    %s80 = sphi 0, %s77
    %s81 = sphi 0, %s80
    %s97 = sphi 0, %s81
    %s105 = sphi 0, %s107
    %s108 = sphi 0, %s105
    %s109 = sphi 0, %s108
    %s125 = sphi 0, %s109
    %s131 = sphi 0, %s133
    %s134 = sphi 0, %s131
    %s135 = sphi 0, %s134
    %s151 = sphi 0, %s135
    %s159 = sphi 0, %s161
    %s162 = sphi 0, %s159
    %s163 = sphi 0, %s162
    %s179 = sphi 0, %s163
    %s185 = sphi 0, %s187
    %s188 = sphi 0, %s185
    %s189 = sphi 0, %s188
    %s205 = sphi 0, %s189
    %s213 = sphi 0, %s215
    %s216 = sphi 0, %s213
    %s217 = sphi 0, %s216
    %s233 = sphi 0, %s217
    %s241 = sphi 0, %s243
    %s244 = sphi 0, %s241
    %s245 = sphi 0, %s244
    %s261 = sphi 0, %s245
    %s269 = sphi 0, %s271
    %s272 = sphi 0, %s269
    %s273 = sphi 0, %s272
    %s289 = sphi 0, %s273
    %s293 = sphi 0, %s293
    %s295 = sphi 0, %s293
    %s296 = sphi 0, %s295
    %s310 = sphi 0, %s296
    %s314 = sphi 0, %s314
    %s316 = sphi 0, %s314
    %s317 = sphi 0, %s316
    %s331 = sphi 0, %s317
    %s335 = sphi 0, %s335
    %s337 = sphi 0, %s335
    %s338 = sphi 0, %s337
    %s352 = sphi 0, %s338
    %s356 = sphi 0, %s356
    %s358 = sphi 0, %s356
    %s359 = sphi 0, %s358
    %s373 = sphi 0, %s359
    %s377 = sphi 0, %s377
    %s379 = sphi 0, %s377
    %s380 = sphi 0, %s379
    %s394 = sphi 0, %s380
    %s398 = sphi 0, %s398
    %s400 = sphi 0, %s398
    %s401 = sphi 0, %s400
    %s415 = sphi 0, %s401
    %s419 = sphi 0, %s419
    %s421 = sphi 0, %s419
    %s422 = sphi 0, %s421
    %s436 = sphi 0, %s422
    %s440 = sphi 0, %s440
    %s442 = sphi 0, %s440
    %s443 = sphi 0, %s442
    %s457 = sphi 0, %s443
    %s461 = sphi 0, %s461
    %s463 = sphi 0, %s461
    %s464 = sphi 0, %s463
    %s478 = sphi 0, %s464
    %s482 = sphi 0, %s482
    %s484 = sphi 0, %s482
    %s485 = sphi 0, %s484
    %s499 = sphi 0, %s485
    %s507 = sphi 0, %s509
    %s510 = sphi 0, %s507
    %s511 = sphi 0, %s510
    %s527 = sphi 0, %s511
    %s535 = sphi 0, %s537
    %s538 = sphi 0, %s535
    %s539 = sphi 0, %s538
    %s555 = sphi 0, %s539
  $region4: #{pooling_3d_layer.2} parent=0 // loop_header_branch
    %30 = sbr.rel (%p28) target = $region8
  $region5: #{pooling_3d_layer.2} parent=0 // loop_body
    %s32 = ssub.s32 %s27, 1
    %s33 = ssub.s32 %s27, 2
    %s40 = sadd.s32 1, %s35
    %p41 = scmp.ge.s32.totalorder %s40, 1
    %s42 = scalar_select %p41, 0, %s40
    %s43 = sadd.s32 1, %s34
    %s44 = scalar_select %p41, %s43, %s34
    %p45 = scmp.ge.s32.totalorder %s44, 2
    %s46 = scalar_select %p45, 0, %s44
    %s47 = ssub.s32 %s34, %s46
    %s48 = ssub.s32 %s35, %s42
    %s49 = sor.u32 %s47, %s48
    %p50 = scmp.eq.s32.totalorder %s49, 0
    %s52 = sadd.s32 %s51, 1
    %s53 = scalar_select %p50, %s51, %s52
    %p56 = pneg %p50
    %p57 = scmp.eq.s32.totalorder %s27, 1
    %p58 = por %p56, %p57
    %p59 = scmp.ne.s32.totalorder %s51, %s54
    %p60 = scmp.eq.s32.totalorder %s27, 0
    %p61 = por %p59, %p60
    %p62 = scmp.ne.s32.totalorder %s51, %s54
    %p63 = scmp.eq.s32.totalorder %s32, 1
    %p64 = por %p62, %p63
    %p65 = scmp.ne.s32.totalorder %s54, %s55
    %p66 = scmp.eq.s32.totalorder %s32, 0
    %p67 = por %p65, %p66
    %p68 = scmp.ne.s32.totalorder %s54, %s55
    %p69 = scmp.eq.s32.totalorder %s33, 1
    %p70 = por %p68, %p69
    %p72 = scmp.ne.s32.totalorder %s55, %s71
    %p73 = scmp.eq.s32.totalorder %s33, 0
    %p74 = por %p72, %p73
    %s75 = ssub.s32 %s34, %s46
    %p76 = scmp.eq.s32.totalorder %s75, 0
    %s78 = sadd.s32 %s77, 1
    %s79 = scalar_select %p76, %s77, %s78
    %p82 = pneg %p76
    %p83 = scmp.eq.s32.totalorder %s27, 1
    %p84 = por %p82, %p83
    %p85 = scmp.ne.s32.totalorder %s77, %s80
    %p86 = scmp.eq.s32.totalorder %s27, 0
    %p87 = por %p85, %p86
    %p88 = scmp.ne.s32.totalorder %s77, %s80
    %p89 = scmp.eq.s32.totalorder %s32, 1
    %p90 = por %p88, %p89
    %p91 = scmp.ne.s32.totalorder %s80, %s81
    %p92 = scmp.eq.s32.totalorder %s32, 0
    %p93 = por %p91, %p92
    %p94 = scmp.ne.s32.totalorder %s80, %s81
    %p95 = scmp.eq.s32.totalorder %s33, 1
    %p96 = por %p94, %p95
    %p98 = scmp.ne.s32.totalorder %s81, %s97
    %p99 = scmp.eq.s32.totalorder %s33, 0
    %p100 = por %p98, %p99
    %s101 = ssub.s32 %s34, %s46
    %s102 = ssub.s32 %s35, %s42
    %s103 = sor.u32 %s101, %s102
    %p104 = scmp.eq.s32.totalorder %s103, 0
    %s106 = sadd.s32 %s105, 1
    %s107 = scalar_select %p104, %s105, %s106
    %p110 = pneg %p104
    %p111 = scmp.eq.s32.totalorder %s27, 1
    %p112 = por %p110, %p111
    %p113 = scmp.ne.s32.totalorder %s105, %s108
    %p114 = scmp.eq.s32.totalorder %s27, 0
    %p115 = por %p113, %p114
    %p116 = scmp.ne.s32.totalorder %s105, %s108
    %p117 = scmp.eq.s32.totalorder %s32, 1
    %p118 = por %p116, %p117
    %p119 = scmp.ne.s32.totalorder %s108, %s109
    %p120 = scmp.eq.s32.totalorder %s32, 0
    %p121 = por %p119, %p120
    %p122 = scmp.ne.s32.totalorder %s108, %s109
    %p123 = scmp.eq.s32.totalorder %s33, 1
    %p124 = por %p122, %p123
    %p126 = scmp.ne.s32.totalorder %s109, %s125
    %p127 = scmp.eq.s32.totalorder %s33, 0
    %p128 = por %p126, %p127
    %s129 = ssub.s32 %s34, %s46
    %p130 = scmp.eq.s32.totalorder %s129, 0
    %s132 = sadd.s32 %s131, 1
    %s133 = scalar_select %p130, %s131, %s132
    %p136 = pneg %p130
    %p137 = scmp.eq.s32.totalorder %s27, 1
    %p138 = por %p136, %p137
    %p139 = scmp.ne.s32.totalorder %s131, %s134
    %p140 = scmp.eq.s32.totalorder %s27, 0
    %p141 = por %p139, %p140
    %p142 = scmp.ne.s32.totalorder %s131, %s134
    %p143 = scmp.eq.s32.totalorder %s32, 1
    %p144 = por %p142, %p143
    %p145 = scmp.ne.s32.totalorder %s134, %s135
    %p146 = scmp.eq.s32.totalorder %s32, 0
    %p147 = por %p145, %p146
    %p148 = scmp.ne.s32.totalorder %s134, %s135
    %p149 = scmp.eq.s32.totalorder %s33, 1
    %p150 = por %p148, %p149
    %p152 = scmp.ne.s32.totalorder %s135, %s151
    %p153 = scmp.eq.s32.totalorder %s33, 0
    %p154 = por %p152, %p153
    %s155 = ssub.s32 %s34, %s46
    %s156 = ssub.s32 %s35, %s42
    %s157 = sor.u32 %s155, %s156
    %p158 = scmp.eq.s32.totalorder %s157, 0
    %s160 = sadd.s32 %s159, 1
    %s161 = scalar_select %p158, %s159, %s160
    %p164 = pneg %p158
    %p165 = scmp.eq.s32.totalorder %s27, 1
    %p166 = por %p164, %p165
    %p167 = scmp.ne.s32.totalorder %s159, %s162
    %p168 = scmp.eq.s32.totalorder %s27, 0
    %p169 = por %p167, %p168
    %p170 = scmp.ne.s32.totalorder %s159, %s162
    %p171 = scmp.eq.s32.totalorder %s32, 1
    %p172 = por %p170, %p171
    %p173 = scmp.ne.s32.totalorder %s162, %s163
    %p174 = scmp.eq.s32.totalorder %s32, 0
    %p175 = por %p173, %p174
    %p176 = scmp.ne.s32.totalorder %s162, %s163
    %p177 = scmp.eq.s32.totalorder %s33, 1
    %p178 = por %p176, %p177
    %p180 = scmp.ne.s32.totalorder %s163, %s179
    %p181 = scmp.eq.s32.totalorder %s33, 0
    %p182 = por %p180, %p181
    %s183 = ssub.s32 %s34, %s46
    %p184 = scmp.eq.s32.totalorder %s183, 0
    %s186 = sadd.s32 %s185, 1
    %s187 = scalar_select %p184, %s185, %s186
    %p190 = pneg %p184
    %p191 = scmp.eq.s32.totalorder %s27, 1
    %p192 = por %p190, %p191
    %p193 = scmp.ne.s32.totalorder %s185, %s188
    %p194 = scmp.eq.s32.totalorder %s27, 0
    %p195 = por %p193, %p194
    %p196 = scmp.ne.s32.totalorder %s185, %s188
    %p197 = scmp.eq.s32.totalorder %s32, 1
    %p198 = por %p196, %p197
    %p199 = scmp.ne.s32.totalorder %s188, %s189
    %p200 = scmp.eq.s32.totalorder %s32, 0
    %p201 = por %p199, %p200
    %p202 = scmp.ne.s32.totalorder %s188, %s189
    %p203 = scmp.eq.s32.totalorder %s33, 1
    %p204 = por %p202, %p203
    %p206 = scmp.ne.s32.totalorder %s189, %s205
    %p207 = scmp.eq.s32.totalorder %s33, 0
    %p208 = por %p206, %p207
    %s209 = ssub.s32 %s34, %s46
    %s210 = ssub.s32 %s35, %s42
    %s211 = sor.u32 %s209, %s210
    %p212 = scmp.eq.s32.totalorder %s211, 0
    %s214 = sadd.s32 %s213, 1
    %s215 = scalar_select %p212, %s213, %s214
    %p218 = pneg %p212
    %p219 = scmp.eq.s32.totalorder %s27, 1
    %p220 = por %p218, %p219
    %p221 = scmp.ne.s32.totalorder %s213, %s216
    %p222 = scmp.eq.s32.totalorder %s27, 0
    %p223 = por %p221, %p222
    %p224 = scmp.ne.s32.totalorder %s213, %s216
    %p225 = scmp.eq.s32.totalorder %s32, 1
    %p226 = por %p224, %p225
    %p227 = scmp.ne.s32.totalorder %s216, %s217
    %p228 = scmp.eq.s32.totalorder %s32, 0
    %p229 = por %p227, %p228
    %p230 = scmp.ne.s32.totalorder %s216, %s217
    %p231 = scmp.eq.s32.totalorder %s33, 1
    %p232 = por %p230, %p231
    %p234 = scmp.ne.s32.totalorder %s217, %s233
    %p235 = scmp.eq.s32.totalorder %s33, 0
    %p236 = por %p234, %p235
    %s237 = ssub.s32 %s34, %s46
    %s238 = ssub.s32 %s35, %s42
    %s239 = sor.u32 %s237, %s238
    %p240 = scmp.eq.s32.totalorder %s239, 0
    %s242 = sadd.s32 %s241, 1
    %s243 = scalar_select %p240, %s241, %s242
    %p246 = pneg %p240
    %p247 = scmp.eq.s32.totalorder %s27, 1
    %p248 = por %p246, %p247
    %p249 = scmp.ne.s32.totalorder %s241, %s244
    %p250 = scmp.eq.s32.totalorder %s27, 0
    %p251 = por %p249, %p250
    %p252 = scmp.ne.s32.totalorder %s241, %s244
    %p253 = scmp.eq.s32.totalorder %s32, 1
    %p254 = por %p252, %p253
    %p255 = scmp.ne.s32.totalorder %s244, %s245
    %p256 = scmp.eq.s32.totalorder %s32, 0
    %p257 = por %p255, %p256
    %p258 = scmp.ne.s32.totalorder %s244, %s245
    %p259 = scmp.eq.s32.totalorder %s33, 1
    %p260 = por %p258, %p259
    %p262 = scmp.ne.s32.totalorder %s245, %s261
    %p263 = scmp.eq.s32.totalorder %s33, 0
    %p264 = por %p262, %p263
    %s265 = ssub.s32 %s34, %s46
    %s266 = ssub.s32 %s35, %s42
    %s267 = sor.u32 %s265, %s266
    %p268 = scmp.eq.s32.totalorder %s267, 0
    %s270 = sadd.s32 %s269, 1
    %s271 = scalar_select %p268, %s269, %s270
    %p274 = pneg %p268
    %p275 = scmp.eq.s32.totalorder %s27, 1
    %p276 = por %p274, %p275
    %p277 = scmp.ne.s32.totalorder %s269, %s272
    %p278 = scmp.eq.s32.totalorder %s27, 0
    %p279 = por %p277, %p278
    %p280 = scmp.ne.s32.totalorder %s269, %s272
    %p281 = scmp.eq.s32.totalorder %s32, 1
    %p282 = por %p280, %p281
    %p283 = scmp.ne.s32.totalorder %s272, %s273
    %p284 = scmp.eq.s32.totalorder %s32, 0
    %p285 = por %p283, %p284
    %p286 = scmp.ne.s32.totalorder %s272, %s273
    %p287 = scmp.eq.s32.totalorder %s33, 1
    %p288 = por %p286, %p287
    %p290 = scmp.ne.s32.totalorder %s273, %s289
    %p291 = scmp.eq.s32.totalorder %s33, 0
    %p292 = por %p290, %p291
    %s294 = sadd.s32 %s293, 1
    %p297 = scmp.eq.s32.totalorder %s27, 1
    %p298 = scmp.ne.s32.totalorder %s293, %s295
    %p299 = scmp.eq.s32.totalorder %s27, 0
    %p300 = por %p298, %p299
    %p301 = scmp.ne.s32.totalorder %s293, %s295
    %p302 = scmp.eq.s32.totalorder %s32, 1
    %p303 = por %p301, %p302
    %p304 = scmp.ne.s32.totalorder %s295, %s296
    %p305 = scmp.eq.s32.totalorder %s32, 0
    %p306 = por %p304, %p305
    %p307 = scmp.ne.s32.totalorder %s295, %s296
    %p308 = scmp.eq.s32.totalorder %s33, 1
    %p309 = por %p307, %p308
    %p311 = scmp.ne.s32.totalorder %s296, %s310
    %p312 = scmp.eq.s32.totalorder %s33, 0
    %p313 = por %p311, %p312
    %s315 = sadd.s32 %s314, 1
    %p318 = scmp.eq.s32.totalorder %s27, 1
    %p319 = scmp.ne.s32.totalorder %s314, %s316
    %p320 = scmp.eq.s32.totalorder %s27, 0
    %p321 = por %p319, %p320
    %p322 = scmp.ne.s32.totalorder %s314, %s316
    %p323 = scmp.eq.s32.totalorder %s32, 1
    %p324 = por %p322, %p323
    %p325 = scmp.ne.s32.totalorder %s316, %s317
    %p326 = scmp.eq.s32.totalorder %s32, 0
    %p327 = por %p325, %p326
    %p328 = scmp.ne.s32.totalorder %s316, %s317
    %p329 = scmp.eq.s32.totalorder %s33, 1
    %p330 = por %p328, %p329
    %p332 = scmp.ne.s32.totalorder %s317, %s331
    %p333 = scmp.eq.s32.totalorder %s33, 0
    %p334 = por %p332, %p333
    %s336 = sadd.s32 %s335, 1
    %p339 = scmp.eq.s32.totalorder %s27, 1
    %p340 = scmp.ne.s32.totalorder %s335, %s337
    %p341 = scmp.eq.s32.totalorder %s27, 0
    %p342 = por %p340, %p341
    %p343 = scmp.ne.s32.totalorder %s335, %s337
    %p344 = scmp.eq.s32.totalorder %s32, 1
    %p345 = por %p343, %p344
    %p346 = scmp.ne.s32.totalorder %s337, %s338
    %p347 = scmp.eq.s32.totalorder %s32, 0
    %p348 = por %p346, %p347
    %p349 = scmp.ne.s32.totalorder %s337, %s338
    %p350 = scmp.eq.s32.totalorder %s33, 1
    %p351 = por %p349, %p350
    %p353 = scmp.ne.s32.totalorder %s338, %s352
    %p354 = scmp.eq.s32.totalorder %s33, 0
    %p355 = por %p353, %p354
    %s357 = sadd.s32 %s356, 1
    %p360 = scmp.eq.s32.totalorder %s27, 1
    %p361 = scmp.ne.s32.totalorder %s356, %s358
    %p362 = scmp.eq.s32.totalorder %s27, 0
    %p363 = por %p361, %p362
    %p364 = scmp.ne.s32.totalorder %s356, %s358
    %p365 = scmp.eq.s32.totalorder %s32, 1
    %p366 = por %p364, %p365
    %p367 = scmp.ne.s32.totalorder %s358, %s359
    %p368 = scmp.eq.s32.totalorder %s32, 0
    %p369 = por %p367, %p368
    %p370 = scmp.ne.s32.totalorder %s358, %s359
    %p371 = scmp.eq.s32.totalorder %s33, 1
    %p372 = por %p370, %p371
    %p374 = scmp.ne.s32.totalorder %s359, %s373
    %p375 = scmp.eq.s32.totalorder %s33, 0
    %p376 = por %p374, %p375
    %s378 = sadd.s32 %s377, 1
    %p381 = scmp.eq.s32.totalorder %s27, 1
    %p382 = scmp.ne.s32.totalorder %s377, %s379
    %p383 = scmp.eq.s32.totalorder %s27, 0
    %p384 = por %p382, %p383
    %p385 = scmp.ne.s32.totalorder %s377, %s379
    %p386 = scmp.eq.s32.totalorder %s32, 1
    %p387 = por %p385, %p386
    %p388 = scmp.ne.s32.totalorder %s379, %s380
    %p389 = scmp.eq.s32.totalorder %s32, 0
    %p390 = por %p388, %p389
    %p391 = scmp.ne.s32.totalorder %s379, %s380
    %p392 = scmp.eq.s32.totalorder %s33, 1
    %p393 = por %p391, %p392
    %p395 = scmp.ne.s32.totalorder %s380, %s394
    %p396 = scmp.eq.s32.totalorder %s33, 0
    %p397 = por %p395, %p396
    %s399 = sadd.s32 %s398, 1
    %p402 = scmp.eq.s32.totalorder %s27, 1
    %p403 = scmp.ne.s32.totalorder %s398, %s400
    %p404 = scmp.eq.s32.totalorder %s27, 0
    %p405 = por %p403, %p404
    %p406 = scmp.ne.s32.totalorder %s398, %s400
    %p407 = scmp.eq.s32.totalorder %s32, 1
    %p408 = por %p406, %p407
    %p409 = scmp.ne.s32.totalorder %s400, %s401
    %p410 = scmp.eq.s32.totalorder %s32, 0
    %p411 = por %p409, %p410
    %p412 = scmp.ne.s32.totalorder %s400, %s401
    %p413 = scmp.eq.s32.totalorder %s33, 1
    %p414 = por %p412, %p413
    %p416 = scmp.ne.s32.totalorder %s401, %s415
    %p417 = scmp.eq.s32.totalorder %s33, 0
    %p418 = por %p416, %p417
    %s420 = sadd.s32 %s419, 1
    %p423 = scmp.eq.s32.totalorder %s27, 1
    %p424 = scmp.ne.s32.totalorder %s419, %s421
    %p425 = scmp.eq.s32.totalorder %s27, 0
    %p426 = por %p424, %p425
    %p427 = scmp.ne.s32.totalorder %s419, %s421
    %p428 = scmp.eq.s32.totalorder %s32, 1
    %p429 = por %p427, %p428
    %p430 = scmp.ne.s32.totalorder %s421, %s422
    %p431 = scmp.eq.s32.totalorder %s32, 0
    %p432 = por %p430, %p431
    %p433 = scmp.ne.s32.totalorder %s421, %s422
    %p434 = scmp.eq.s32.totalorder %s33, 1
    %p435 = por %p433, %p434
    %p437 = scmp.ne.s32.totalorder %s422, %s436
    %p438 = scmp.eq.s32.totalorder %s33, 0
    %p439 = por %p437, %p438
    %s441 = sadd.s32 %s440, 1
    %p444 = scmp.eq.s32.totalorder %s27, 1
    %p445 = scmp.ne.s32.totalorder %s440, %s442
    %p446 = scmp.eq.s32.totalorder %s27, 0
    %p447 = por %p445, %p446
    %p448 = scmp.ne.s32.totalorder %s440, %s442
    %p449 = scmp.eq.s32.totalorder %s32, 1
    %p450 = por %p448, %p449
    %p451 = scmp.ne.s32.totalorder %s442, %s443
    %p452 = scmp.eq.s32.totalorder %s32, 0
    %p453 = por %p451, %p452
    %p454 = scmp.ne.s32.totalorder %s442, %s443
    %p455 = scmp.eq.s32.totalorder %s33, 1
    %p456 = por %p454, %p455
    %p458 = scmp.ne.s32.totalorder %s443, %s457
    %p459 = scmp.eq.s32.totalorder %s33, 0
    %p460 = por %p458, %p459
    %s462 = sadd.s32 %s461, 1
    %p465 = scmp.eq.s32.totalorder %s27, 1
    %p466 = scmp.ne.s32.totalorder %s461, %s463
    %p467 = scmp.eq.s32.totalorder %s27, 0
    %p468 = por %p466, %p467
    %p469 = scmp.ne.s32.totalorder %s461, %s463
    %p470 = scmp.eq.s32.totalorder %s32, 1
    %p471 = por %p469, %p470
    %p472 = scmp.ne.s32.totalorder %s463, %s464
    %p473 = scmp.eq.s32.totalorder %s32, 0
    %p474 = por %p472, %p473
    %p475 = scmp.ne.s32.totalorder %s463, %s464
    %p476 = scmp.eq.s32.totalorder %s33, 1
    %p477 = por %p475, %p476
    %p479 = scmp.ne.s32.totalorder %s464, %s478
    %p480 = scmp.eq.s32.totalorder %s33, 0
    %p481 = por %p479, %p480
    %s483 = sadd.s32 %s482, 1
    %p486 = scmp.eq.s32.totalorder %s27, 1
    %p487 = scmp.ne.s32.totalorder %s482, %s484
    %p488 = scmp.eq.s32.totalorder %s27, 0
    %p489 = por %p487, %p488
    %p490 = scmp.ne.s32.totalorder %s482, %s484
    %p491 = scmp.eq.s32.totalorder %s32, 1
    %p492 = por %p490, %p491
    %p493 = scmp.ne.s32.totalorder %s484, %s485
    %p494 = scmp.eq.s32.totalorder %s32, 0
    %p495 = por %p493, %p494
    %p496 = scmp.ne.s32.totalorder %s484, %s485
    %p497 = scmp.eq.s32.totalorder %s33, 1
    %p498 = por %p496, %p497
    %p500 = scmp.ne.s32.totalorder %s485, %s499
    %p501 = scmp.eq.s32.totalorder %s33, 0
    %p502 = por %p500, %p501
    %s503 = ssub.s32 %s34, %s46
    %s504 = ssub.s32 %s35, %s42
    %s505 = sor.u32 %s503, %s504
    %p506 = scmp.eq.s32.totalorder %s505, 0
    %s508 = sadd.s32 %s507, 1
    %s509 = scalar_select %p506, %s507, %s508
    %p512 = pneg %p506
    %p513 = scmp.eq.s32.totalorder %s27, 1
    %p514 = por %p512, %p513
    %p515 = scmp.ne.s32.totalorder %s507, %s510
    %p516 = scmp.eq.s32.totalorder %s27, 0
    %p517 = por %p515, %p516
    %p518 = scmp.ne.s32.totalorder %s507, %s510
    %p519 = scmp.eq.s32.totalorder %s32, 1
    %p520 = por %p518, %p519
    %p521 = scmp.ne.s32.totalorder %s510, %s511
    %p522 = scmp.eq.s32.totalorder %s32, 0
    %p523 = por %p521, %p522
    %p524 = scmp.ne.s32.totalorder %s510, %s511
    %p525 = scmp.eq.s32.totalorder %s33, 1
    %p526 = por %p524, %p525
    %p528 = scmp.ne.s32.totalorder %s511, %s527
    %p529 = scmp.eq.s32.totalorder %s33, 0
    %p530 = por %p528, %p529
    %s531 = ssub.s32 %s34, %s46
    %s532 = ssub.s32 %s35, %s42
    %s533 = sor.u32 %s531, %s532
    %p534 = scmp.eq.s32.totalorder %s533, 0
    %s536 = sadd.s32 %s535, 1
    %s537 = scalar_select %p534, %s535, %s536
    %p540 = pneg %p534
    %p541 = scmp.eq.s32.totalorder %s27, 1
    %p542 = por %p540, %p541
    %p543 = scmp.ne.s32.totalorder %s535, %s538
    %p544 = scmp.eq.s32.totalorder %s27, 0
    %p545 = por %p543, %p544
    %p546 = scmp.ne.s32.totalorder %s535, %s538
    %p547 = scmp.eq.s32.totalorder %s32, 1
    %p548 = por %p546, %p547
    %p549 = scmp.ne.s32.totalorder %s538, %s539
    %p550 = scmp.eq.s32.totalorder %s32, 0
    %p551 = por %p549, %p550
    %p552 = scmp.ne.s32.totalorder %s538, %s539
    %p553 = scmp.eq.s32.totalorder %s33, 1
    %p554 = por %p552, %p553
    %p556 = scmp.ne.s32.totalorder %s539, %s555
    %p557 = scmp.eq.s32.totalorder %s33, 0
    %p558 = por %p556, %p557
    %p559 = scmp.le.s32.totalorder 1, %s27
    %p560 = scmp.lt.s32.totalorder %s27, 3
    %p561 = pnand %p559, %p560
    %p562 = pneg %p561
    // Predicated region
    $region9: #{pooling_3d_layer.2} parent=5 // pred_check
      _
    $region10: #{pooling_3d_layer.2} parent=5 // pred_check_branch
      %564 = sbr.rel (%p561) target = $region12
    $region11: #{pooling_3d_layer.2} parent=5 // pred_region
      %s565 = ssub.s32 %s27, 1
      // Predicated region
      $region13: #{pooling_3d_layer.2} parent=11 // pred_check
        %p566 = pneg %p306
      $region14: #{pooling_3d_layer.2} parent=11 // pred_check_branch
        %568 = sbr.rel (%p566) target = $region16
      $region15: #{pooling_3d_layer.2} parent=11 // pred_region
        _
      $region16: #{pooling_3d_layer.2} parent=11 // pred_fallthru
        _
      // Predicated region
      $region17: #{pooling_3d_layer.2} parent=11 // pred_check
        %p569 = pneg %p327
      $region18: #{pooling_3d_layer.2} parent=11 // pred_check_branch
        %571 = sbr.rel (%p569) target = $region20
      $region19: #{pooling_3d_layer.2} parent=11 // pred_region
        _
      $region20: #{pooling_3d_layer.2} parent=11 // pred_fallthru
        _
      // Predicated region
      $region21: #{pooling_3d_layer.2} parent=11 // pred_check
        %p572 = pneg %p348
      $region22: #{pooling_3d_layer.2} parent=11 // pred_check_branch
        %574 = sbr.rel (%p572) target = $region24
      $region23: #{pooling_3d_layer.2} parent=11 // pred_region
        _
      $region24: #{pooling_3d_layer.2} parent=11 // pred_fallthru
        _
      // Predicated region
      $region25: #{pooling_3d_layer.2} parent=11 // pred_check
        %p575 = pneg %p369
      $region26: #{pooling_3d_layer.2} parent=11 // pred_check_branch
        %577 = sbr.rel (%p575) target = $region28
      $region27: #{pooling_3d_layer.2} parent=11 // pred_region
        _
      $region28: #{pooling_3d_layer.2} parent=11 // pred_fallthru
        _
      // Predicated region
      $region29: #{pooling_3d_layer.2} parent=11 // pred_check
        %p578 = pneg %p390
      $region30: #{pooling_3d_layer.2} parent=11 // pred_check_branch
        %580 = sbr.rel (%p578) target = $region32
      $region31: #{pooling_3d_layer.2} parent=11 // pred_region
        _
      $region32: #{pooling_3d_layer.2} parent=11 // pred_fallthru
        _
      // Predicated region
      $region33: #{pooling_3d_layer.2} parent=11 // pred_check
        %p581 = pneg %p411
      $region34: #{pooling_3d_layer.2} parent=11 // pred_check_branch
        %583 = sbr.rel (%p581) target = $region36
      $region35: #{pooling_3d_layer.2} parent=11 // pred_region
        _
      $region36: #{pooling_3d_layer.2} parent=11 // pred_fallthru
        _
      // Predicated region
      $region37: #{pooling_3d_layer.2} parent=11 // pred_check
        %p584 = pneg %p432
      $region38: #{pooling_3d_layer.2} parent=11 // pred_check_branch
        %586 = sbr.rel (%p584) target = $region40
      $region39: #{pooling_3d_layer.2} parent=11 // pred_region
        _
      $region40: #{pooling_3d_layer.2} parent=11 // pred_fallthru
        _
      // Predicated region
      $region41: #{pooling_3d_layer.2} parent=11 // pred_check
        %p587 = pneg %p453
      $region42: #{pooling_3d_layer.2} parent=11 // pred_check_branch
        %589 = sbr.rel (%p587) target = $region44
      $region43: #{pooling_3d_layer.2} parent=11 // pred_region
        _
      $region44: #{pooling_3d_layer.2} parent=11 // pred_fallthru
        _
      // Predicated region
      $region45: #{pooling_3d_layer.2} parent=11 // pred_check
        %p590 = pneg %p474
      $region46: #{pooling_3d_layer.2} parent=11 // pred_check_branch
        %592 = sbr.rel (%p590) target = $region48
      $region47: #{pooling_3d_layer.2} parent=11 // pred_region
        _
      $region48: #{pooling_3d_layer.2} parent=11 // pred_fallthru
        _
      // Predicated region
      $region49: #{pooling_3d_layer.2} parent=11 // pred_check
        %p593 = pneg %p495
      $region50: #{pooling_3d_layer.2} parent=11 // pred_check_branch
        %595 = sbr.rel (%p593) target = $region52
      $region51: #{pooling_3d_layer.2} parent=11 // pred_region
        _
      $region52: #{pooling_3d_layer.2} parent=11 // pred_fallthru
        _
    $region12: #{pooling_3d_layer.2} parent=5 // pred_fallthru
      _
    %p596 = scmp.lt.s32.totalorder %s27, 2
    // Predicated region
    $region53: #{pooling_3d_layer.2} parent=5 // pred_check
      %p597 = pneg %p596
    $region54: #{pooling_3d_layer.2} parent=5 // pred_check_branch
      %599 = sbr.rel (%p597) target = $region56
    $region55: #{pooling_3d_layer.2} parent=5 // pred_region
      // Predicated region
      $region57: #{pooling_3d_layer.2} parent=55 // pred_check
        %p600 = pneg %p61
      $region58: #{pooling_3d_layer.2} parent=55 // pred_check_branch
        %602 = sbr.rel (%p600) target = $region60
      $region59: #{pooling_3d_layer.2} parent=55 // pred_region
        %p603 = scmp.lt.s32.totalorder %s34, 1
        %s604 = scalar_select %p603, %s34, 1
        %p605 = scmp.lt.s32.totalorder %s35, 0
        %s606 = scalar_select %p605, %s35, 0
        %s607 = sadd.s32 %s606, %s604
        %s608 = smul.addr %s607, 8
        %s609 = scalar_lea.vmem %s0, %s608
      $region60: #{pooling_3d_layer.2} parent=55 // pred_fallthru
        _
      // Predicated region
      $region61: #{pooling_3d_layer.2} parent=55 // pred_check
        %p610 = pneg %p87
      $region62: #{pooling_3d_layer.2} parent=55 // pred_check_branch
        %612 = sbr.rel (%p610) target = $region64
      $region63: #{pooling_3d_layer.2} parent=55 // pred_region
        %p613 = scmp.lt.s32.totalorder %s34, 1
        %s614 = scalar_select %p613, %s34, 1
        %s615 = smul.addr %s614, 2
        %s616 = smul.addr %s615, 8
        %s617 = scalar_lea.vmem %s1, %s616
      $region64: #{pooling_3d_layer.2} parent=55 // pred_fallthru
        _
      // Predicated region
      $region65: #{pooling_3d_layer.2} parent=55 // pred_check
        %p618 = pneg %p115
      $region66: #{pooling_3d_layer.2} parent=55 // pred_check_branch
        %620 = sbr.rel (%p618) target = $region68
      $region67: #{pooling_3d_layer.2} parent=55 // pred_region
        %p621 = scmp.lt.s32.totalorder %s34, 1
        %s622 = scalar_select %p621, %s34, 1
        %p623 = scmp.lt.s32.totalorder %s35, 0
        %s624 = scalar_select %p623, %s35, 0
        %s625 = sadd.s32 %s624, %s622
        %s626 = smul.addr %s625, 8
        %s627 = scalar_lea.vmem %s2, %s626
      $region68: #{pooling_3d_layer.2} parent=55 // pred_fallthru
        _
      // Predicated region
      $region69: #{pooling_3d_layer.2} parent=55 // pred_check
        %p628 = pneg %p141
      $region70: #{pooling_3d_layer.2} parent=55 // pred_check_branch
        %630 = sbr.rel (%p628) target = $region72
      $region71: #{pooling_3d_layer.2} parent=55 // pred_region
        %p631 = scmp.lt.s32.totalorder %s34, 1
        %s632 = scalar_select %p631, %s34, 1
        %s633 = smul.addr %s632, 4
        %s634 = scalar_lea.vmem %s3, %s633
      $region72: #{pooling_3d_layer.2} parent=55 // pred_fallthru
        _
      // Predicated region
      $region73: #{pooling_3d_layer.2} parent=55 // pred_check
        %p635 = pneg %p169
      $region74: #{pooling_3d_layer.2} parent=55 // pred_check_branch
        %637 = sbr.rel (%p635) target = $region76
      $region75: #{pooling_3d_layer.2} parent=55 // pred_region
        %p638 = scmp.lt.s32.totalorder %s34, 1
        %s639 = scalar_select %p638, %s34, 1
        %p640 = scmp.lt.s32.totalorder %s35, 0
        %s641 = scalar_select %p640, %s35, 0
        %s642 = sadd.s32 %s641, %s639
        %s643 = smul.addr %s642, 8
        %s644 = scalar_lea.vmem %s4, %s643
      $region76: #{pooling_3d_layer.2} parent=55 // pred_fallthru
        _
      // Predicated region
      $region77: #{pooling_3d_layer.2} parent=55 // pred_check
        %p645 = pneg %p195
      $region78: #{pooling_3d_layer.2} parent=55 // pred_check_branch
        %647 = sbr.rel (%p645) target = $region80
      $region79: #{pooling_3d_layer.2} parent=55 // pred_region
        %p648 = scmp.lt.s32.totalorder %s34, 1
        %s649 = scalar_select %p648, %s34, 1
        %s650 = smul.addr %s649, 2
        %s651 = smul.addr %s650, 8
        %s652 = scalar_lea.vmem %s5, %s651
      $region80: #{pooling_3d_layer.2} parent=55 // pred_fallthru
        _
      // Predicated region
      $region81: #{pooling_3d_layer.2} parent=55 // pred_check
        %p653 = pneg %p223
      $region82: #{pooling_3d_layer.2} parent=55 // pred_check_branch
        %655 = sbr.rel (%p653) target = $region84
      $region83: #{pooling_3d_layer.2} parent=55 // pred_region
        %p656 = scmp.lt.s32.totalorder %s34, 1
        %s657 = scalar_select %p656, %s34, 1
        %p658 = scmp.lt.s32.totalorder %s35, 0
        %s659 = scalar_select %p658, %s35, 0
        %s660 = smul.addr %s657, 4
        %s661 = sadd.s32 %s659, %s660
        %s662 = smul.addr %s661, 8
        %s663 = scalar_lea.vmem %s6, %s662
      $region84: #{pooling_3d_layer.2} parent=55 // pred_fallthru
        _
      // Predicated region
      $region85: #{pooling_3d_layer.2} parent=55 // pred_check
        %p664 = pneg %p251
      $region86: #{pooling_3d_layer.2} parent=55 // pred_check_branch
        %666 = sbr.rel (%p664) target = $region88
      $region87: #{pooling_3d_layer.2} parent=55 // pred_region
        %p667 = scmp.lt.s32.totalorder %s34, 1
        %s668 = scalar_select %p667, %s34, 1
        %p669 = scmp.lt.s32.totalorder %s35, 0
        %s670 = scalar_select %p669, %s35, 0
        %s671 = sadd.s32 %s670, %s668
        %s672 = smul.addr %s671, 8
        %s673 = scalar_lea.vmem %s7, %s672
      $region88: #{pooling_3d_layer.2} parent=55 // pred_fallthru
        _
      // Predicated region
      $region89: #{pooling_3d_layer.2} parent=55 // pred_check
        %p674 = pneg %p279
      $region90: #{pooling_3d_layer.2} parent=55 // pred_check_branch
        %676 = sbr.rel (%p674) target = $region92
      $region91: #{pooling_3d_layer.2} parent=55 // pred_region
        %p677 = scmp.lt.s32.totalorder %s34, 1
        %s678 = scalar_select %p677, %s34, 1
        %p679 = scmp.lt.s32.totalorder %s35, 0
        %s680 = scalar_select %p679, %s35, 0
        %s681 = sadd.s32 %s680, %s678
        %s682 = smul.addr %s681, 8
        %s683 = scalar_lea.vmem %s8, %s682
      $region92: #{pooling_3d_layer.2} parent=55 // pred_fallthru
        _
    $region56: #{pooling_3d_layer.2} parent=5 // pred_fallthru
      _
    %p684 = scmp.le.s32.totalorder 1, %s27
    %p685 = scmp.lt.s32.totalorder %s27, 3
    %p686 = pnand %p684, %p685
    %p687 = pneg %p686
    // Predicated region
    $region93: #{pooling_3d_layer.2} parent=5 // pred_check
      _
    $region94: #{pooling_3d_layer.2} parent=5 // pred_check_branch
      %689 = sbr.rel (%p686) target = $region96
    $region95: #{pooling_3d_layer.2} parent=5 // pred_region
      %s690 = ssub.s32 %s27, 1
      %p691 = scmp.lt.s32.totalorder %s36, 1
      %s692 = scalar_select %p691, %s36, 1
      %p693 = scmp.lt.s32.totalorder %s37, 0
      %s694 = scalar_select %p693, %s37, 0
      %s695 = sadd.s32 %s694, %s692
      %s696 = smul.addr %s695, 8
      %s697 = scalar_lea.vmem %s0, %s696
      %p698 = pneg %p67
      %p699 = pneg %p64
      %p700 = scmp.lt.s32.totalorder %s36, 1
      %s701 = scalar_select %p700, %s36, 1
      %s702 = smul.addr %s701, 2
      %s703 = smul.addr %s702, 8
      %s704 = scalar_lea.vmem %s1, %s703
      %p705 = pneg %p93
      %p706 = pneg %p90
      %p707 = scmp.lt.s32.totalorder %s36, 1
      %s708 = scalar_select %p707, %s36, 1
      %p709 = scmp.lt.s32.totalorder %s37, 0
      %s710 = scalar_select %p709, %s37, 0
      %s711 = sadd.s32 %s710, %s708
      %s712 = smul.addr %s711, 8
      %s713 = scalar_lea.vmem %s2, %s712
      %p714 = pneg %p121
      %p715 = pneg %p118
      %p716 = scmp.lt.s32.totalorder %s36, 1
      %s717 = scalar_select %p716, %s36, 1
      %s718 = smul.addr %s717, 4
      %s719 = scalar_lea.vmem %s3, %s718
      %p720 = pneg %p147
      %p721 = pneg %p144
      %p722 = scmp.lt.s32.totalorder %s36, 1
      %s723 = scalar_select %p722, %s36, 1
      %p724 = scmp.lt.s32.totalorder %s37, 0
      %s725 = scalar_select %p724, %s37, 0
      %s726 = sadd.s32 %s725, %s723
      %s727 = smul.addr %s726, 8
      %s728 = scalar_lea.vmem %s4, %s727
      %p729 = pneg %p175
      %p730 = pneg %p172
      %p731 = scmp.lt.s32.totalorder %s36, 1
      %s732 = scalar_select %p731, %s36, 1
      %s733 = smul.addr %s732, 2
      %s734 = smul.addr %s733, 8
      %s735 = scalar_lea.vmem %s5, %s734
      %p736 = pneg %p201
      %p737 = pneg %p198
      %p738 = scmp.lt.s32.totalorder %s36, 1
      %s739 = scalar_select %p738, %s36, 1
      %p740 = scmp.lt.s32.totalorder %s37, 0
      %s741 = scalar_select %p740, %s37, 0
      %s742 = smul.addr %s739, 4
      %s743 = sadd.s32 %s741, %s742
      %s744 = smul.addr %s743, 8
      %s745 = scalar_lea.vmem %s6, %s744
      %p746 = pneg %p229
      %p747 = pneg %p226
      %p748 = scmp.lt.s32.totalorder %s36, 1
      %s749 = scalar_select %p748, %s36, 1
      %p750 = scmp.lt.s32.totalorder %s37, 0
      %s751 = scalar_select %p750, %s37, 0
      %s752 = sadd.s32 %s751, %s749
      %s753 = smul.addr %s752, 8
      %s754 = scalar_lea.vmem %s7, %s753
      %p755 = pneg %p257
      %p756 = pneg %p254
      %p757 = scmp.lt.s32.totalorder %s36, 1
      %s758 = scalar_select %p757, %s36, 1
      %p759 = scmp.lt.s32.totalorder %s37, 0
      %s760 = scalar_select %p759, %s37, 0
      %s761 = sadd.s32 %s760, %s758
      %s762 = smul.addr %s761, 8
      %s763 = scalar_lea.vmem %s8, %s762
      %p764 = pneg %p285
      %p765 = pneg %p282
      %p766 = pneg %p306
      %p767 = pneg %p303
      %p768 = pneg %p327
      %p769 = pneg %p324
      %p770 = pneg %p348
      %p771 = pneg %p345
      %p772 = pneg %p369
      %p773 = pneg %p366
      %p774 = pneg %p390
      %p775 = pneg %p387
      %p776 = pneg %p411
      %p777 = pneg %p408
      %p778 = pneg %p432
      %p779 = pneg %p429
      %p780 = pneg %p453
      %p781 = pneg %p450
      %p782 = pneg %p474
      %p783 = pneg %p471
      %p784 = pneg %p495
      %p785 = pneg %p492
      %p786 = pneg %p523
      %p787 = pneg %p520
      %p788 = scmp.lt.s32.totalorder %s36, 1
      %s789 = scalar_select %p788, %s36, 1
      %p790 = scmp.lt.s32.totalorder %s37, 0
      %s791 = scalar_select %p790, %s37, 0
      %s792 = sadd.s32 %s791, %s789
      %s793 = smul.addr %s792, 8
      %s794 = scalar_lea.vmem %s19, %s793
      %p795 = pneg %p551
      %p796 = pneg %p548
      %p797 = scmp.lt.s32.totalorder %s36, 1
      %s798 = scalar_select %p797, %s36, 1
      %p799 = scmp.lt.s32.totalorder %s37, 0
      %s800 = scalar_select %p799, %s37, 0
      %s801 = sadd.s32 %s800, %s798
      %s802 = smul.addr %s801, 8
      %s803 = scalar_lea.vmem %s20, %s802
      %p804 = scmp.lt.s32.totalorder %s36, 1
      %s805 = scalar_select %p804, %s36, 1
      %p806 = scmp.lt.s32.totalorder %s37, 0
      %s807 = scalar_select %p806, %s37, 0
      %s808 = sadd.s32 %s807, %s805
      %s809 = smul.addr %s808, 8
      %s810 = scalar_lea.vmem %s0, %s809
      %p811 = scmp.lt.s32.totalorder %s36, 1
      %s812 = scalar_select %p811, %s36, 1
      %s813 = smul.addr %s812, 2
      %s814 = smul.addr %s813, 8
      %s815 = scalar_lea.vmem %s1, %s814
      %p816 = scmp.lt.s32.totalorder %s36, 1
      %s817 = scalar_select %p816, %s36, 1
      %p818 = scmp.lt.s32.totalorder %s37, 0
      %s819 = scalar_select %p818, %s37, 0
      %s820 = sadd.s32 %s819, %s817
      %s821 = smul.addr %s820, 8
      %s822 = scalar_lea.vmem %s2, %s821
      %p823 = scmp.lt.s32.totalorder %s36, 1
      %s824 = scalar_select %p823, %s36, 1
      %s825 = smul.addr %s824, 4
      %s826 = scalar_lea.vmem %s3, %s825
      %p827 = scmp.lt.s32.totalorder %s36, 1
      %s828 = scalar_select %p827, %s36, 1
      %p829 = scmp.lt.s32.totalorder %s37, 0
      %s830 = scalar_select %p829, %s37, 0
      %s831 = sadd.s32 %s830, %s828
      %s832 = smul.addr %s831, 8
      %s833 = scalar_lea.vmem %s4, %s832
      %p834 = scmp.lt.s32.totalorder %s36, 1
      %s835 = scalar_select %p834, %s36, 1
      %s836 = smul.addr %s835, 2
      %s837 = smul.addr %s836, 8
      %s838 = scalar_lea.vmem %s5, %s837
      %p839 = scmp.lt.s32.totalorder %s36, 1
      %s840 = scalar_select %p839, %s36, 1
      %p841 = scmp.lt.s32.totalorder %s37, 0
      %s842 = scalar_select %p841, %s37, 0
      %s843 = smul.addr %s840, 4
      %s844 = sadd.s32 %s842, %s843
      %s845 = smul.addr %s844, 8
      %s846 = scalar_lea.vmem %s6, %s845
      %p847 = scmp.lt.s32.totalorder %s36, 1
      %s848 = scalar_select %p847, %s36, 1
      %p849 = scmp.lt.s32.totalorder %s37, 0
      %s850 = scalar_select %p849, %s37, 0
      %s851 = sadd.s32 %s850, %s848
      %s852 = smul.addr %s851, 8
      %s853 = scalar_lea.vmem %s7, %s852
      %p854 = scmp.lt.s32.totalorder %s36, 1
      %s855 = scalar_select %p854, %s36, 1
      %p856 = scmp.lt.s32.totalorder %s37, 0
      %s857 = scalar_select %p856, %s37, 0
      %s858 = sadd.s32 %s857, %s855
      %s859 = smul.addr %s858, 8
      %s860 = scalar_lea.vmem %s8, %s859
      %p861 = scmp.lt.s32.totalorder %s36, 1
      %s862 = scalar_select %p861, %s36, 1
      %p863 = scmp.lt.s32.totalorder %s37, 0
      %s864 = scalar_select %p863, %s37, 0
      %s865 = sadd.s32 %s864, %s862
      %s866 = smul.addr %s865, 8
      %s867 = scalar_lea.vmem %s19, %s866
      %p868 = scmp.lt.s32.totalorder %s36, 1
      %s869 = scalar_select %p868, %s36, 1
      %p870 = scmp.lt.s32.totalorder %s37, 0
      %s871 = scalar_select %p870, %s37, 0
      %s872 = sadd.s32 %s871, %s869
      %s873 = smul.addr %s872, 8
      %s874 = scalar_lea.vmem %s20, %s873
      %v876 = vld [vmem:[%s810] sm:$0xff]
      %v877 = vld [vmem:[%s833] sm:$0xff]
      %v878 = vld [vmem:[%s826] sm:$0x7]
      %v879 = vld [vmem:[%s16] sm:$0xff]
      %v880 = vld [vmem:[%s16 + $0x8] sm:$0x7]
      %v881 = vld [vmem:[%s17] sm:$0xff]
      %v882 = vlaneseq
      %v883 = vshrl.u32 %v882, 7
      %v884 = vsub.s32 0, %v883
      %v885 = vrot.slane %v878, %v884
      %887 = vset.pattern.permute.xlu0 0
      %888 = vperm.xlu0 %887, %v877
      %v889 = vpop.permute.xlu0 %888
      %v891 = vsub.f32 %v885, %v889
      %v892 = vmul.f32 %v891, %v891
      %v893 = vadd.f32 %v892, 0.0
      %v894 = vlaneseq
      %v895 = vshrl.u32 %v894, 7
      %v896 = vsub.s32 1, %v895
      %v897 = vrot.slane %v878, %v896
      %898 = vset.pattern.permute.xlu0 1
      %899 = vperm.xlu0 %898, %v877
      %v900 = vpop.permute.xlu0 %899
      %v902 = vsub.f32 %v897, %v900
      %v903 = vmul.f32 %v902, %v902
      %v904 = vadd.f32 %v893, %v903
      %v905 = vlaneseq
      %v906 = vshrl.u32 %v905, 7
      %v907 = vsub.s32 2, %v906
      %v908 = vrot.slane %v878, %v907
      %909 = vset.pattern.permute.xlu0 2
      %910 = vperm.xlu0 %909, %v877
      %v911 = vpop.permute.xlu0 %910
      %v913 = vsub.f32 %v908, %v911
      %v914 = vmul.f32 %v913, %v913
      %v915 = vadd.f32 %v904, %v914
      %v916 = vld [vmem:[%s18] sm:$0x1]
      %v917 = vld [vmem:[%s18 + $0x1] sm:$0x1]
      %v918 = vld [vmem:[%s18 + $0x2] sm:$0x1]
      %v919 = vld [vmem:[%s18 + $0x3] sm:$0x1]
      %v920 = vld [vmem:[%s18 + $0x4] sm:$0x1]
      %v921 = vld [vmem:[%s18 + $0x5] sm:$0x1]
      %v922 = vld [vmem:[%s18 + $0x6] sm:$0x1]
      %v923 = vld [vmem:[%s18 + $0x7] sm:$0x1]
      %v924 = vld [vmem:[%s18 + $0x8] sm:$0x1]
      %v925 = vld [vmem:[%s18 + $0x9] sm:$0x1]
      %v926 = vld [vmem:[%s18 + $0xa] sm:$0x1]
      %v927 = vld [vmem:[%s18 + $0xb] sm:$0x1]
      %v928 = vld [vmem:[%s18 + $0xc] sm:$0x1]
      %v929 = vld [vmem:[%s18 + $0xd] sm:$0x1]
      %v930 = vld [vmem:[%s18 + $0xe] sm:$0x1]
      %v946 = vlaneseq
      %v947 = vshrl.u32 %v946, 7
      %v948 = vsub.s32 0, %v947
      %v949 = vrot.slane %v916, %v948
      %v950 = vlaneseq
      %v951 = vshrl.u32 %v950, 7
      %v952 = vsub.s32 0, %v951
      %v953 = vrot.slane %v917, %v952
      %v954 = vlaneseq
      %v955 = vshrl.u32 %v954, 7
      %v956 = vsub.s32 0, %v955
      %v957 = vrot.slane %v918, %v956
      %v958 = vlaneseq
      %v959 = vshrl.u32 %v958, 7
      %v960 = vsub.s32 0, %v959
      %v961 = vrot.slane %v919, %v960
      %v962 = vlaneseq
      %v963 = vshrl.u32 %v962, 7
      %v964 = vsub.s32 0, %v963
      %v965 = vrot.slane %v920, %v964
      %v966 = vlaneseq
      %v967 = vshrl.u32 %v966, 7
      %v968 = vsub.s32 0, %v967
      %v969 = vrot.slane %v921, %v968
      %v970 = vlaneseq
      %v971 = vshrl.u32 %v970, 7
      %v972 = vsub.s32 0, %v971
      %v973 = vrot.slane %v922, %v972
      %v974 = vlaneseq
      %v975 = vshrl.u32 %v974, 7
      %v976 = vsub.s32 0, %v975
      %v977 = vrot.slane %v923, %v976
      %v978 = vlaneseq
      %v979 = vshrl.u32 %v978, 7
      %v980 = vsub.s32 0, %v979
      %v981 = vrot.slane %v924, %v980
      %v982 = vlaneseq
      %v983 = vshrl.u32 %v982, 7
      %v984 = vsub.s32 0, %v983
      %v985 = vrot.slane %v925, %v984
      %v986 = vlaneseq
      %v987 = vshrl.u32 %v986, 7
      %v988 = vsub.s32 0, %v987
      %v989 = vrot.slane %v926, %v988
      %v990 = vlaneseq
      %v991 = vshrl.u32 %v990, 7
      %v992 = vsub.s32 0, %v991
      %v993 = vrot.slane %v927, %v992
      %v994 = vlaneseq
      %v995 = vshrl.u32 %v994, 7
      %v996 = vsub.s32 0, %v995
      %v997 = vrot.slane %v928, %v996
      %v998 = vlaneseq
      %v999 = vshrl.u32 %v998, 7
      %v1000 = vsub.s32 0, %v999
      %v1001 = vrot.slane %v929, %v1000
      %v1002 = vlaneseq
      %v1003 = vshrl.u32 %v1002, 7
      %v1004 = vsub.s32 0, %v1003
      %v1005 = vrot.slane %v930, %v1004
      %1006 = vset.pattern.permute.xlu0 0
      %1007 = vperm.xlu0 %1006, %v949
      %v1008 = vpop.permute.xlu0 %1007
      %1010 = vset.pattern.permute.xlu0 0
      %1011 = vperm.xlu0 %1010, %v953
      %v1012 = vpop.permute.xlu0 %1011
      %1014 = vset.pattern.permute.xlu0 0
      %1015 = vperm.xlu0 %1014, %v957
      %v1016 = vpop.permute.xlu0 %1015
      %1018 = vset.pattern.permute.xlu0 0
      %1019 = vperm.xlu0 %1018, %v961
      %v1020 = vpop.permute.xlu0 %1019
      %1022 = vset.pattern.permute.xlu0 0
      %1023 = vperm.xlu0 %1022, %v965
      %v1024 = vpop.permute.xlu0 %1023
      %1026 = vset.pattern.permute.xlu0 0
      %1027 = vperm.xlu0 %1026, %v969
      %v1028 = vpop.permute.xlu0 %1027
      %1030 = vset.pattern.permute.xlu0 0
      %1031 = vperm.xlu0 %1030, %v973
      %v1032 = vpop.permute.xlu0 %1031
      %1034 = vset.pattern.permute.xlu0 0
      %1035 = vperm.xlu0 %1034, %v977
      %v1036 = vpop.permute.xlu0 %1035
      %1038 = vset.pattern.permute.xlu0 0
      %1039 = vperm.xlu0 %1038, %v981
      %v1040 = vpop.permute.xlu0 %1039
      %1042 = vset.pattern.permute.xlu0 0
      %1043 = vperm.xlu0 %1042, %v985
      %v1044 = vpop.permute.xlu0 %1043
      %1046 = vset.pattern.permute.xlu0 0
      %1047 = vperm.xlu0 %1046, %v989
      %v1048 = vpop.permute.xlu0 %1047
      %1050 = vset.pattern.permute.xlu0 0
      %1051 = vperm.xlu0 %1050, %v993
      %v1052 = vpop.permute.xlu0 %1051
      %1054 = vset.pattern.permute.xlu0 0
      %1055 = vperm.xlu0 %1054, %v997
      %v1056 = vpop.permute.xlu0 %1055
      %1058 = vset.pattern.permute.xlu0 0
      %1059 = vperm.xlu0 %1058, %v1001
      %v1060 = vpop.permute.xlu0 %1059
      %1062 = vset.pattern.permute.xlu0 0
      %1063 = vperm.xlu0 %1062, %v1005
      %v1064 = vpop.permute.xlu0 %1063
      %v1066 = vmul.f32 %v1008, %v915
      %v1067 = vmul.f32 %v1012, %v915
      %v1068 = vmul.f32 %v1016, %v915
      %v1069 = vmul.f32 %v1020, %v915
      %v1070 = vmul.f32 %v1024, %v915
      %v1071 = vmul.f32 %v1028, %v915
      %v1072 = vmul.f32 %v1032, %v915
      %v1073 = vmul.f32 %v1036, %v915
      %v1074 = vmul.f32 %v1040, %v915
      %v1075 = vmul.f32 %v1044, %v915
      %v1076 = vmul.f32 %v1048, %v915
      %v1077 = vmul.f32 %v1052, %v915
      %v1078 = vmul.f32 %v1056, %v915
      %v1079 = vmul.f32 %v1060, %v915
      %v1080 = vmul.f32 %v1064, %v915
      %v1081 = vsub.f32 0.0, %v1066
      %v1082 = vsub.f32 0.0, %v1067
      %v1083 = vsub.f32 0.0, %v1068
      %v1084 = vsub.f32 0.0, %v1069
      %v1085 = vsub.f32 0.0, %v1070
      %v1086 = vsub.f32 0.0, %v1071
      %v1087 = vsub.f32 0.0, %v1072
      %v1088 = vsub.f32 0.0, %v1073
      %v1089 = vsub.f32 0.0, %v1074
      %v1090 = vsub.f32 0.0, %v1075
      %v1091 = vsub.f32 0.0, %v1076
      %v1092 = vsub.f32 0.0, %v1077
      %v1093 = vsub.f32 0.0, %v1078
      %v1094 = vsub.f32 0.0, %v1079
      %v1095 = vsub.f32 0.0, %v1080
      %v1096 = vmul.f32 %v1081, 1.442695
      %v1097 = vpow.pop %v1096
      %v1098 = vmul.f32 %v1082, 1.442695
      %v1099 = vpow.pop %v1098
      %v1100 = vmul.f32 %v1083, 1.442695
      %v1101 = vpow.pop %v1100
      %v1102 = vmul.f32 %v1084, 1.442695
      %v1103 = vpow.pop %v1102
      %v1104 = vmul.f32 %v1085, 1.442695
      %v1105 = vpow.pop %v1104
      %v1106 = vmul.f32 %v1086, 1.442695
      %v1107 = vpow.pop %v1106
      %v1108 = vmul.f32 %v1087, 1.442695
      %v1109 = vpow.pop %v1108
      %v1110 = vmul.f32 %v1088, 1.442695
      %v1111 = vpow.pop %v1110
      %v1112 = vmul.f32 %v1089, 1.442695
      %v1113 = vpow.pop %v1112
      %v1114 = vmul.f32 %v1090, 1.442695
      %v1115 = vpow.pop %v1114
      %v1116 = vmul.f32 %v1091, 1.442695
      %v1117 = vpow.pop %v1116
      %v1118 = vmul.f32 %v1092, 1.442695
      %v1119 = vpow.pop %v1118
      %v1120 = vmul.f32 %v1093, 1.442695
      %v1121 = vpow.pop %v1120
      %v1122 = vmul.f32 %v1094, 1.442695
      %v1123 = vpow.pop %v1122
      %v1124 = vmul.f32 %v1095, 1.442695
      %v1125 = vpow.pop %v1124
      %v1126 = vld [vmem:[%s846] sm:$0xff]
      %v1127 = vld [vmem:[%s846 + $0x8] sm:$0xff]
      %v1128 = vld [vmem:[%s846 + $0x10] sm:$0xff]
      %v1129 = vld [vmem:[%s846 + $0x18] sm:$0xff]
      %v1130 = vmul.f32 %v1126, %v876
      %v1131 = vmul.f32 %v1127, %v876
      %v1132 = vmul.f32 %v1128, %v876
      %v1133 = vmul.f32 %v1129, %v876
      %v1134 = vpack.c.bf16 %v1130, %v1130
      %v1135 = vpack.c.bf16 %v1131, %v1131
      %v1136 = vpack.c.bf16 %v1132, %v1132
      %v1137 = vpack.c.bf16 %v1133, %v1133
      %v1138 = vpack.c.bf16 %v1097, %v1097
      %v1139 = vpack.c.bf16 %v1099, %v1099
      %v1140 = vpack.c.bf16 %v1101, %v1101
      %v1141 = vpack.c.bf16 %v1103, %v1103
      %v1142 = vpack.c.bf16 %v1105, %v1105
      %v1143 = vpack.c.bf16 %v1107, %v1107
      %v1144 = vpack.c.bf16 %v1109, %v1109
      %v1145 = vpack.c.bf16 %v1111, %v1111
      %v1146 = vpack.c.bf16 %v1113, %v1113
      %v1147 = vpack.c.bf16 %v1115, %v1115
      %v1148 = vpack.c.bf16 %v1117, %v1117
      %v1149 = vpack.c.bf16 %v1119, %v1119
      %v1150 = vcombine.low %v1134, %v1138
      %v1152 = vunpack.c.l.s4 1983009808
      %v1153 = vunpack.c.0.s8 %v1152
      %v1154 = vlaneseq
      %v1155 = vshrl.u32 %v1154, 7
      %v1156 = vsub.s32 %v1153, %v1155
      %v1157 = vrot.slane %v1150, %v1156
      %v1158 = vcombine.low %v1136, %v1140
      %v1160 = vunpack.c.l.s4 1983009808
      %v1161 = vunpack.c.0.s8 %v1160
      %v1162 = vlaneseq
      %v1163 = vshrl.u32 %v1162, 7
      %v1164 = vsub.s32 %v1161, %v1163
      %v1165 = vrot.slane %v1158, %v1164
      %v1166 = vcombine.low %v1142, %v1146
      %v1168 = vunpack.c.l.s4 1983009808
      %v1169 = vunpack.c.0.s8 %v1168
      %v1170 = vlaneseq
      %v1171 = vshrl.u32 %v1170, 7
      %v1172 = vsub.s32 %v1169, %v1171
      %v1173 = vrot.slane %v1166, %v1172
      %v1174 = vcombine.low %v1144, %v1148
      %v1176 = vunpack.c.l.s4 1983009808
      %v1177 = vunpack.c.0.s8 %v1176
      %v1178 = vlaneseq
      %v1179 = vshrl.u32 %v1178, 7
      %v1180 = vsub.s32 %v1177, %v1179
      %v1181 = vrot.slane %v1174, %v1180
      %v1182 = vcombine.low %v1157, %v1165
      %v1183 = vcombine.high %v1157, %v1165
      %v1185 = vunpack.c.l.s4 1934713408
      %v1186 = vunpack.c.0.s8 %v1185
      %v1187 = vlaneseq
      %v1188 = vshrl.u32 %v1187, 7
      %v1189 = vsub.s32 %v1186, %v1188
      %v1190 = vrot.slane %v1182, %v1189
      %v1192 = vunpack.c.l.s4 1934713408
      %v1193 = vunpack.c.0.s8 %v1192
      %v1194 = vlaneseq
      %v1195 = vshrl.u32 %v1194, 7
      %v1196 = vsub.s32 %v1193, %v1195
      %v1197 = vrot.slane %v1183, %v1196
      %v1198 = vcombine.low %v1173, %v1181
      %v1199 = vcombine.high %v1173, %v1181
      %v1201 = vunpack.c.l.s4 1934713408
      %v1202 = vunpack.c.0.s8 %v1201
      %v1203 = vlaneseq
      %v1204 = vshrl.u32 %v1203, 7
      %v1205 = vsub.s32 %v1202, %v1204
      %v1206 = vrot.slane %v1198, %v1205
      %v1208 = vunpack.c.l.s4 1934713408
      %v1209 = vunpack.c.0.s8 %v1208
      %v1210 = vlaneseq
      %v1211 = vshrl.u32 %v1210, 7
      %v1212 = vsub.s32 %v1209, %v1211
      %v1213 = vrot.slane %v1199, %v1212
      %v1214 = vcombine.low %v1190, %v1206
      %v1215 = vcombine.high %v1190, %v1206
      %v1216 = vcombine.low %v1197, %v1213
      %v1217 = vcombine.high %v1197, %v1213
      %v1218 = vcombine.low %v1135, %v1139
      %v1220 = vunpack.c.l.s4 1983009808
      %v1221 = vunpack.c.0.s8 %v1220
      %v1222 = vlaneseq
      %v1223 = vshrl.u32 %v1222, 7
      %v1224 = vsub.s32 %v1221, %v1223
      %v1225 = vrot.slane %v1218, %v1224
      %v1226 = vcombine.low %v1137, %v1141
      %v1228 = vunpack.c.l.s4 1983009808
      %v1229 = vunpack.c.0.s8 %v1228
      %v1230 = vlaneseq
      %v1231 = vshrl.u32 %v1230, 7
      %v1232 = vsub.s32 %v1229, %v1231
      %v1233 = vrot.slane %v1226, %v1232
      %v1234 = vcombine.low %v1143, %v1147
      %v1236 = vunpack.c.l.s4 1983009808
      %v1237 = vunpack.c.0.s8 %v1236
      %v1238 = vlaneseq
      %v1239 = vshrl.u32 %v1238, 7
      %v1240 = vsub.s32 %v1237, %v1239
      %v1241 = vrot.slane %v1234, %v1240
      %v1242 = vcombine.low %v1145, %v1149
      %v1244 = vunpack.c.l.s4 1983009808
      %v1245 = vunpack.c.0.s8 %v1244
      %v1246 = vlaneseq
      %v1247 = vshrl.u32 %v1246, 7
      %v1248 = vsub.s32 %v1245, %v1247
      %v1249 = vrot.slane %v1242, %v1248
      %v1250 = vcombine.low %v1225, %v1233
      %v1251 = vcombine.high %v1225, %v1233
      %v1253 = vunpack.c.l.s4 1934713408
      %v1254 = vunpack.c.0.s8 %v1253
      %v1255 = vlaneseq
      %v1256 = vshrl.u32 %v1255, 7
      %v1257 = vsub.s32 %v1254, %v1256
      %v1258 = vrot.slane %v1250, %v1257
      %v1260 = vunpack.c.l.s4 1934713408
      %v1261 = vunpack.c.0.s8 %v1260
      %v1262 = vlaneseq
      %v1263 = vshrl.u32 %v1262, 7
      %v1264 = vsub.s32 %v1261, %v1263
      %v1265 = vrot.slane %v1251, %v1264
      %v1266 = vcombine.low %v1241, %v1249
      %v1267 = vcombine.high %v1241, %v1249
      %v1269 = vunpack.c.l.s4 1934713408
      %v1270 = vunpack.c.0.s8 %v1269
      %v1271 = vlaneseq
      %v1272 = vshrl.u32 %v1271, 7
      %v1273 = vsub.s32 %v1270, %v1272
      %v1274 = vrot.slane %v1266, %v1273
      %v1276 = vunpack.c.l.s4 1934713408
      %v1277 = vunpack.c.0.s8 %v1276
      %v1278 = vlaneseq
      %v1279 = vshrl.u32 %v1278, 7
      %v1280 = vsub.s32 %v1277, %v1279
      %v1281 = vrot.slane %v1267, %v1280
      %v1282 = vcombine.low %v1258, %v1274
      %v1283 = vcombine.high %v1258, %v1274
      %v1284 = vcombine.low %v1265, %v1281
      %v1285 = vcombine.high %v1265, %v1281
      %v1286 = vpack.c.bf16 %v1121, %v1121
      %v1288 = vunpack.c.l.s4 1983009808
      %v1289 = vunpack.c.0.s8 %v1288
      %v1290 = vlaneseq
      %v1291 = vshrl.u32 %v1290, 7
      %v1292 = vsub.s32 %v1289, %v1291
      %v1293 = vrot.slane %v1286, %v1292
      %v1294 = vpack.c.bf16 %v1125, %v1125
      %v1296 = vunpack.c.l.s4 1983009808
      %v1297 = vunpack.c.0.s8 %v1296
      %v1298 = vlaneseq
      %v1299 = vshrl.u32 %v1298, 7
      %v1300 = vsub.s32 %v1297, %v1299
      %v1301 = vrot.slane %v1294, %v1300
      %v1302 = vcombine.low %v1293, %v1301
      %v1303 = vcombine.high %v1293, %v1301
      %v1305 = vunpack.c.l.s4 1934713408
      %v1306 = vunpack.c.0.s8 %v1305
      %v1307 = vlaneseq
      %v1308 = vshrl.u32 %v1307, 7
      %v1309 = vsub.s32 %v1306, %v1308
      %v1310 = vrot.slane %v1302, %v1309
      %v1312 = vunpack.c.l.s4 1934713408
      %v1313 = vunpack.c.0.s8 %v1312
      %v1314 = vlaneseq
      %v1315 = vshrl.u32 %v1314, 7
      %v1316 = vsub.s32 %v1313, %v1315
      %v1317 = vrot.slane %v1303, %v1316
      %v1318 = vcombine.high %v1310, 0
      %v1319 = vcombine.high %v1317, 0
      %v1320 = vpack.c.bf16 %v1123, %v1123
      %v1322 = vunpack.c.l.s4 1983009808
      %v1323 = vunpack.c.0.s8 %v1322
      %v1324 = vlaneseq
      %v1325 = vshrl.u32 %v1324, 7
      %v1326 = vsub.s32 %v1323, %v1325
      %v1327 = vrot.slane %v1320, %v1326
      %v1328 = vcombine.high %v1327, 0
      %v1330 = vunpack.c.l.s4 1934713408
      %v1331 = vunpack.c.0.s8 %v1330
      %v1332 = vlaneseq
      %v1333 = vshrl.u32 %v1332, 7
      %v1334 = vsub.s32 %v1331, %v1333
      %v1335 = vrot.slane %v1327, %v1334
      %v1337 = vunpack.c.l.s4 1934713408
      %v1338 = vunpack.c.0.s8 %v1337
      %v1339 = vlaneseq
      %v1340 = vshrl.u32 %v1339, 7
      %v1341 = vsub.s32 %v1338, %v1340
      %v1342 = vrot.slane %v1328, %v1341
      %v1343 = vcombine.high %v1335, 0
      %v1344 = vcombine.high %v1342, 0
      %v1347 = vpack.i.b16 %v1282, %v1214
      %v1348 = vshrl.u32 %v1214, 16
      %v1349 = vshrl.u32 %v1282, 16
      %v1350 = vpack.i.b16 %v1349, %v1348
      %v1353 = vpack.i.b16 %v1283, %v1215
      %v1354 = vshrl.u32 %v1215, 16
      %v1355 = vshrl.u32 %v1283, 16
      %v1356 = vpack.i.b16 %v1355, %v1354
      %v1359 = vpack.i.b16 %v1284, %v1216
      %v1360 = vshrl.u32 %v1216, 16
      %v1361 = vshrl.u32 %v1284, 16
      %v1362 = vpack.i.b16 %v1361, %v1360
      %v1365 = vpack.i.b16 %v1285, %v1217
      %v1366 = vshrl.u32 %v1217, 16
      %v1367 = vshrl.u32 %v1285, 16
      %v1368 = vpack.i.b16 %v1367, %v1366
      %v1371 = vpack.i.b16 %v1335, %v1310
      %v1372 = vshrl.u32 %v1310, 16
      %v1373 = vshrl.u32 %v1335, 16
      %v1374 = vpack.i.b16 %v1373, %v1372
      %v1377 = vpack.i.b16 %v1343, %v1318
      %v1378 = vshrl.u32 %v1318, 16
      %v1379 = vshrl.u32 %v1343, 16
      %v1380 = vpack.i.b16 %v1379, %v1378
      %v1383 = vpack.i.b16 %v1342, %v1317
      %v1384 = vshrl.u32 %v1317, 16
      %v1385 = vshrl.u32 %v1342, 16
      %v1386 = vpack.i.b16 %v1385, %v1384
      %v1389 = vpack.i.b16 %v1344, %v1319
      %v1390 = vshrl.u32 %v1319, 16
      %v1391 = vshrl.u32 %v1344, 16
      %v1392 = vpack.i.b16 %v1391, %v1390
      %1393 = vrot.lane.b32.xlu0 %v1350, 16
      %v1394 = vpop.permute.xlu0 %1393
      %1395 = vrot.lane.b32.xlu0 %v1374, 16
      %v1396 = vpop.permute.xlu0 %1395
      %1397 = vrot.lane.b32.xlu0 %v1353, 32
      %v1398 = vpop.permute.xlu0 %1397
      %1399 = vrot.lane.b32.xlu0 %v1377, 32
      %v1400 = vpop.permute.xlu0 %1399
      %1401 = vrot.lane.b32.xlu0 %v1356, 48
      %v1402 = vpop.permute.xlu0 %1401
      %1403 = vrot.lane.b32.xlu0 %v1380, 48
      %v1404 = vpop.permute.xlu0 %1403
      %1405 = vrot.lane.b32.xlu0 %v1359, 64
      %v1406 = vpop.permute.xlu0 %1405
      %1407 = vrot.lane.b32.xlu0 %v1383, 64
      %v1408 = vpop.permute.xlu0 %1407
      %1409 = vrot.lane.b32.xlu0 %v1362, 80
      %v1410 = vpop.permute.xlu0 %1409
      %1411 = vrot.lane.b32.xlu0 %v1386, 80
      %v1412 = vpop.permute.xlu0 %1411
      %1413 = vrot.lane.b32.xlu0 %v1365, 96
      %v1414 = vpop.permute.xlu0 %1413
      %1415 = vrot.lane.b32.xlu0 %v1389, 96
      %v1416 = vpop.permute.xlu0 %1415
      %1417 = vrot.lane.b32.xlu0 %v1368, 112
      %v1418 = vpop.permute.xlu0 %1417
      %1419 = vrot.lane.b32.xlu0 %v1392, 112
      %v1420 = vpop.permute.xlu0 %1419
      %vm1421 = vcmask 130048
      %v1424 = vsel %vm1421, %v1347, %v1394
      %v1427 = vsel %vm1421, %v1371, %v1396
      %vm1428 = vcmask 261120
      %v1430 = vsel %vm1428, %v1424, %v1398
      %v1432 = vsel %vm1428, %v1427, %v1400
      %vm1433 = vcmask 392192
      %v1435 = vsel %vm1433, %v1430, %v1402
      %v1437 = vsel %vm1433, %v1432, %v1404
      %vm1438 = vcmask 523264
      %v1440 = vsel %vm1438, %v1435, %v1406
      %v1442 = vsel %vm1438, %v1437, %v1408
      %vm1443 = vcmask 654336
      %v1445 = vsel %vm1443, %v1440, %v1410
      %v1447 = vsel %vm1443, %v1442, %v1412
      %vm1448 = vcmask 785408
      %v1450 = vsel %vm1448, %v1445, %v1414
      %v1452 = vsel %vm1448, %v1447, %v1416
      %vm1453 = vcmask 916480
      %v1455 = vsel %vm1453, %v1450, %v1418
      %v1458 = vsel %vm1453, %v1452, %v1420
      %v1460 = vld [vmem:[%s10] sm:$0xf]
      %v1461 = vld [vmem:[%s10 + $0x4] sm:$0xf]
      %v1462 = vld [vmem:[%s10 + $0x8] sm:$0x3]
      %1463 = vxpose.xlu0.c.b16.start [1/8] %v1455, 128
      %1464 = vxpose.xlu0.c.b16.cont [2/8] %v1458, 128
      %1465 = vxpose.xlu0.c.b16.cont [3/8] 0, 128
      %1466 = vxpose.xlu0.c.b16.cont [4/8] 0, 128
      %1467 = vxpose.xlu0.c.b16.cont [5/8] 0, 128
      %1468 = vxpose.xlu0.c.b16.cont [6/8] 0, 128
      %1469 = vxpose.xlu0.c.b16.cont [7/8] 0, 128
      %1470 = vxpose.xlu0.c.b16.end [8/8] 0, 128
      %v1471 = vpop.trf.xlu0
      %v1472 = vpop.trf.xlu0
      %v1473 = vpop.trf.xlu0
      %v1474 = vpop.trf.xlu0
      %v1475 = vpop.trf.xlu0
      %v1476 = vpop.trf.xlu0
      %v1477 = vpop.trf.xlu0
      %v1478 = vpop.trf.xlu0
      %v1482 = vunpack.c.l.b16 %v1460
      %v1483 = vunpack.c.l.b16 %v1461
      %v1484 = vunpack.c.l.b16 %v1462
      %v1485 = vpack.c.b16 %v1483, %v1482
      %v1486 = vpack.c.b16 %v1484, %v1484
      %vm1488 = vcmask 154624
      %v1490 = vsel %vm1488, %v1471, 0
      %v1493 = vsel %vm1488, %v1472, 0
      %v1496 = vsel %vm1488, %v1473, 0
      %v1499 = vsel %vm1488, %v1474, 0
      %v1502 = vsel %vm1488, %v1475, 0
      %v1505 = vsel %vm1488, %v1476, 0
      %v1508 = vsel %vm1488, %v1477, 0
      %v1511 = vsel %vm1488, %v1478, 0
      %vm1513 = vcmask 1040384
      %vm1514 = vcmask 1041408
      %v1515 = vsel %vm1513, 4294967295, 65535
      %v1516 = vsel %vm1514, %v1515, 0
      %v1518 = vand.u32 %v1486, %v1516
      %1520 = vmatprep.subr.bf16.mxu0 0
      %1521 = vmatpush1.bf16.msra.mxu0 %v1485
      %1522 = vmatprep.subr.bf16.mxu0 0
      %1523 = vmatpush1.bf16.msra.mxu0 %v1518
      %1524 = vmatprep.subr.bf16.mxu0 0
      %1525 = vmatpush1.bf16.msra.mxu0 0
      %1526 = vmatprep.subr.bf16.mxu0 0
      %1527 = vmatpush1.bf16.msra.mxu0 0
      %1528 = vmatprep.subr.bf16.mxu0 0
      %1529 = vmatpush1.bf16.msra.mxu0 0
      %1530 = vmatprep.subr.bf16.mxu0 0
      %1531 = vmatpush1.bf16.msra.mxu0 0
      %1532 = vmatprep.subr.bf16.mxu0 0
      %1533 = vmatpush1.bf16.msra.mxu0 0
      %1534 = vmatprep.subr.bf16.mxu0 0
      %1535 = vmatpush1.bf16.msra.mxu0 0
      %1536 = vmatprep.subr.bf16.mxu0 0
      %1537 = vmatpush1.bf16.msra.mxu0 0
      %1538 = vmatprep.subr.bf16.mxu0 0
      %1539 = vmatpush1.bf16.msra.mxu0 0
      %1540 = vmatprep.subr.bf16.mxu0 0
      %1541 = vmatpush1.bf16.msra.mxu0 0
      %1542 = vmatprep.subr.bf16.mxu0 0
      %1543 = vmatpush1.bf16.msra.mxu0 0
      %1544 = vmatprep.subr.bf16.mxu0 0
      %1545 = vmatpush1.bf16.msra.mxu0 0
      %1546 = vmatprep.subr.bf16.mxu0 0
      %1547 = vmatpush1.bf16.msra.mxu0 0
      %1548 = vmatprep.subr.bf16.mxu0 0
      %1549 = vmatpush1.bf16.msra.mxu0 0
      %1550 = vmatprep.subr.bf16.mxu0 0
      %1551 = vmatpush1.bf16.msra.mxu0 0
      %1552 = vmatprep.mubr.bf16.mxu0 0
      %1553 = vmatmul.mubr.bf16.gmra.mrb[0].mxu0 %v1490
      %v1554 = vpop.f32.mrb[0].mxu0
      %v1555 = vadd.f32 0.0, %v1554
      %v1556 = vpop.f32.mrb[0].mxu0
      %v1557 = vpop.f32.mrb[0].mxu0
      %v1558 = vadd.f32 0.0, %v1557
      %v1559 = vpop.f32.mrb[0].mxu0
      %1560 = vmatprep.mubr.bf16.mxu0 0
      %1561 = vmatmul.mubr.bf16.gmra.mrb[0].mxu0 %v1493
      %v1562 = vpop.f32.mrb[0].mxu0
      %v1563 = vadd.f32 0.0, %v1562
      %v1564 = vpop.f32.mrb[0].mxu0
      %v1565 = vpop.f32.mrb[0].mxu0
      %v1566 = vadd.f32 0.0, %v1565
      %v1567 = vpop.f32.mrb[0].mxu0
      %1568 = vmatprep.mubr.bf16.mxu0 0
      %1569 = vmatmul.mubr.bf16.gmra.mrb[0].mxu0 %v1496
      %v1570 = vpop.f32.mrb[0].mxu0
      %v1571 = vadd.f32 0.0, %v1570
      %v1572 = vpop.f32.mrb[0].mxu0
      %v1573 = vpop.f32.mrb[0].mxu0
      %v1574 = vadd.f32 0.0, %v1573
      %v1575 = vpop.f32.mrb[0].mxu0
      %1576 = vmatprep.mubr.bf16.mxu0 0
      %1577 = vmatmul.mubr.bf16.gmra.mrb[0].mxu0 %v1499
      %v1578 = vpop.f32.mrb[0].mxu0
      %v1579 = vadd.f32 0.0, %v1578
      %v1580 = vpop.f32.mrb[0].mxu0
      %v1581 = vpop.f32.mrb[0].mxu0
      %v1582 = vadd.f32 0.0, %v1581
      %v1583 = vpop.f32.mrb[0].mxu0
      %1584 = vmatprep.mubr.bf16.mxu0 0
      %1585 = vmatmul.mubr.bf16.gmra.mrb[0].mxu0 %v1502
      %v1586 = vpop.f32.mrb[0].mxu0
      %v1587 = vadd.f32 0.0, %v1586
      %v1588 = vpop.f32.mrb[0].mxu0
      %v1589 = vpop.f32.mrb[0].mxu0
      %v1590 = vadd.f32 0.0, %v1589
      %v1591 = vpop.f32.mrb[0].mxu0
      %1592 = vmatprep.mubr.bf16.mxu0 0
      %1593 = vmatmul.mubr.bf16.gmra.mrb[0].mxu0 %v1505
      %v1594 = vpop.f32.mrb[0].mxu0
      %v1595 = vadd.f32 0.0, %v1594
      %v1596 = vpop.f32.mrb[0].mxu0
      %v1597 = vpop.f32.mrb[0].mxu0
      %v1598 = vadd.f32 0.0, %v1597
      %v1599 = vpop.f32.mrb[0].mxu0
      %1600 = vmatprep.mubr.bf16.mxu0 0
      %1601 = vmatmul.mubr.bf16.gmra.mrb[0].mxu0 %v1508
      %v1602 = vpop.f32.mrb[0].mxu0
      %v1603 = vadd.f32 0.0, %v1602
      %v1604 = vpop.f32.mrb[0].mxu0
      %v1605 = vpop.f32.mrb[0].mxu0
      %v1606 = vadd.f32 0.0, %v1605
      %v1607 = vpop.f32.mrb[0].mxu0
      %1608 = vmatprep.mubr.bf16.mxu0 0
      %1609 = vmatmul.mubr.bf16.gmra.mrb[0].mxu0 %v1511
      %v1610 = vpop.f32.mrb[0].mxu0
      %v1611 = vadd.f32 0.0, %v1610
      %v1612 = vpop.f32.mrb[0].mxu0
      %v1613 = vpop.f32.mrb[0].mxu0
      %v1614 = vadd.f32 0.0, %v1613
      %v1615 = vpop.f32.mrb[0].mxu0
      %1616 = vdwg.mxu0
      %v1617 = vld [vmem:[%s822] sm:$0xff]
      %v1618 = vpack.c.bf16 %v1617, %v1617
      %v1619 = vld [vmem:[%s9] sm:$0xf]
      %v1620 = vld [vmem:[%s9 + $0x4] sm:$0xf]
      %v1621 = vld [vmem:[%s9 + $0x8] sm:$0xf]
      %v1622 = vld [vmem:[%s9 + $0xc] sm:$0xf]
      %v1623 = vlaneseq
      %v1624 = vshrl.u32 %v1623, 7
      %v1625 = vsub.s32 0, %v1624
      %v1626 = vrot.slane %v879, %v1625
      %v1631 = vunpack.c.l.b16 %v1619
      %v1632 = vunpack.c.l.b16 %v1620
      %v1633 = vunpack.c.l.b16 %v1621
      %v1634 = vunpack.c.l.b16 %v1622
      %v1635 = vpack.c.b16 %v1632, %v1631
      %v1636 = vpack.c.b16 %v1634, %v1633
      %v1640 = vsel %vm1428, %v1618, 0
      %1642 = vmatprep.subr.bf16.mxu0 0
      %1643 = vmatpush1.bf16.msra.mxu0 %v1635
      %1644 = vmatprep.subr.bf16.mxu0 0
      %1645 = vmatpush1.bf16.msra.mxu0 %v1636
      %1646 = vmatprep.subr.bf16.mxu0 0
      %1647 = vmatpush1.bf16.msra.mxu0 0
      %1648 = vmatprep.subr.bf16.mxu0 0
      %1649 = vmatpush1.bf16.msra.mxu0 0
      %1650 = vmatprep.subr.bf16.mxu0 0
      %1651 = vmatpush1.bf16.msra.mxu0 0
      %1652 = vmatprep.subr.bf16.mxu0 0
      %1653 = vmatpush1.bf16.msra.mxu0 0
      %1654 = vmatprep.subr.bf16.mxu0 0
      %1655 = vmatpush1.bf16.msra.mxu0 0
      %1656 = vmatprep.subr.bf16.mxu0 0
      %1657 = vmatpush1.bf16.msra.mxu0 0
      %1658 = vmatprep.subr.bf16.mxu0 0
      %1659 = vmatpush1.bf16.msra.mxu0 0
      %1660 = vmatprep.subr.bf16.mxu0 0
      %1661 = vmatpush1.bf16.msra.mxu0 0
      %1662 = vmatprep.subr.bf16.mxu0 0
      %1663 = vmatpush1.bf16.msra.mxu0 0
      %1664 = vmatprep.subr.bf16.mxu0 0
      %1665 = vmatpush1.bf16.msra.mxu0 0
      %1666 = vmatprep.subr.bf16.mxu0 0
      %1667 = vmatpush1.bf16.msra.mxu0 0
      %1668 = vmatprep.subr.bf16.mxu0 0
      %1669 = vmatpush1.bf16.msra.mxu0 0
      %1670 = vmatprep.subr.bf16.mxu0 0
      %1671 = vmatpush1.bf16.msra.mxu0 0
      %1672 = vmatprep.subr.bf16.mxu0 0
      %1673 = vmatpush1.bf16.msra.mxu0 0
      %1674 = vmatprep.mubr.bf16.mxu0 0
      %1675 = vmatmul.mubr.bf16.gmra.mrb[0].mxu0 %v1640
      %v1676 = vpop.f32.mrb[0].mxu0
      %v1677 = vadd.f32 %v1626, %v1676
      %v1678 = vpop.f32.mrb[0].mxu0
      %v1679 = vpop.f32.mrb[0].mxu0
      %v1680 = vpop.f32.mrb[0].mxu0
      %1681 = vdwg.mxu0
      %v1682 = vld [vmem:[%s815] sm:$0xff]
      %v1683 = vld [vmem:[%s815 + $0x8] sm:$0xff]
      %v1684 = vadd.f32 %v1555, %v1682
      %v1685 = vadd.f32 %v1558, %v1683
      %v1686 = vadd.f32 %v1563, %v1682
      %v1687 = vadd.f32 %v1566, %v1683
      %v1688 = vadd.f32 %v1571, %v1682
      %v1689 = vadd.f32 %v1574, %v1683
      %v1690 = vadd.f32 %v1579, %v1682
      %v1691 = vadd.f32 %v1582, %v1683
      %v1692 = vadd.f32 %v1587, %v1682
      %v1693 = vadd.f32 %v1590, %v1683
      %v1694 = vadd.f32 %v1595, %v1682
      %v1695 = vadd.f32 %v1598, %v1683
      %v1696 = vadd.f32 %v1603, %v1682
      %v1697 = vadd.f32 %v1606, %v1683
      %v1698 = vadd.f32 %v1611, %v1682
      %v1699 = vadd.f32 %v1614, %v1683
      %v1701 = vcombine.high %v1677, %v1677
      %v1703 = vunpack.c.l.s4 1966171168
      %v1704 = vunpack.c.0.s8 %v1703
      %v1705 = vlaneseq
      %v1706 = vshrl.u32 %v1705, 7
      %v1707 = vsub.s32 %v1704, %v1706
      %v1708 = vrot.slane %v1677, %v1707
      %v1710 = vunpack.c.l.s4 1966171168
      %v1711 = vunpack.c.0.s8 %v1710
      %v1712 = vlaneseq
      %v1713 = vshrl.u32 %v1712, 7
      %v1714 = vsub.s32 %v1711, %v1713
      %v1715 = vrot.slane %v1701, %v1714
      %v1716 = vcombine.high %v1708, %v1708
      %v1717 = vcombine.high %v1715, %v1715
      %v1719 = vunpack.c.l.s4 1966171168
      %v1720 = vunpack.c.0.s8 %v1719
      %v1721 = vlaneseq
      %v1722 = vshrl.u32 %v1721, 7
      %v1723 = vsub.s32 %v1720, %v1722
      %v1724 = vrot.slane %v1708, %v1723
      %v1726 = vunpack.c.l.s4 1966171168
      %v1727 = vunpack.c.0.s8 %v1726
      %v1728 = vlaneseq
      %v1729 = vshrl.u32 %v1728, 7
      %v1730 = vsub.s32 %v1727, %v1729
      %v1731 = vrot.slane %v1715, %v1730
      %v1733 = vunpack.c.l.s4 1966171168
      %v1734 = vunpack.c.0.s8 %v1733
      %v1735 = vlaneseq
      %v1736 = vshrl.u32 %v1735, 7
      %v1737 = vsub.s32 %v1734, %v1736
      %v1738 = vrot.slane %v1716, %v1737
      %v1740 = vunpack.c.l.s4 1966171168
      %v1741 = vunpack.c.0.s8 %v1740
      %v1742 = vlaneseq
      %v1743 = vshrl.u32 %v1742, 7
      %v1744 = vsub.s32 %v1741, %v1743
      %v1745 = vrot.slane %v1717, %v1744
      %v1746 = vcombine.high %v1724, %v1724
      %v1747 = vcombine.high %v1731, %v1731
      %v1748 = vcombine.high %v1738, %v1738
      %v1749 = vcombine.high %v1745, %v1745
      %v1750 = vlaneseq
      %v1751 = vshrl.u32 %v1750, 7
      %v1752 = vsub.s32 0, %v1751
      %v1753 = vrot.slane %v1724, %v1752
      %v1754 = vlaneseq
      %v1755 = vshrl.u32 %v1754, 7
      %v1756 = vsub.s32 0, %v1755
      %v1757 = vrot.slane %v1738, %v1756
      %v1758 = vlaneseq
      %v1759 = vshrl.u32 %v1758, 7
      %v1760 = vsub.s32 0, %v1759
      %v1761 = vrot.slane %v1746, %v1760
      %v1762 = vlaneseq
      %v1763 = vshrl.u32 %v1762, 7
      %v1764 = vsub.s32 0, %v1763
      %v1765 = vrot.slane %v1748, %v1764
      %v1766 = vlaneseq
      %v1767 = vshrl.u32 %v1766, 7
      %v1768 = vsub.s32 0, %v1767
      %v1769 = vrot.slane %v1731, %v1768
      %v1770 = vlaneseq
      %v1771 = vshrl.u32 %v1770, 7
      %v1772 = vsub.s32 0, %v1771
      %v1773 = vrot.slane %v1745, %v1772
      %v1774 = vlaneseq
      %v1775 = vshrl.u32 %v1774, 7
      %v1776 = vsub.s32 0, %v1775
      %v1777 = vrot.slane %v1747, %v1776
      %v1778 = vlaneseq
      %v1779 = vshrl.u32 %v1778, 7
      %v1780 = vsub.s32 0, %v1779
      %v1781 = vrot.slane %v1749, %v1780
      %v1790 = vadd.f32 %v1684, %v1753
      %v1791 = vadd.f32 %v1685, %v1753
      %v1792 = vadd.f32 %v1686, %v1757
      %v1793 = vadd.f32 %v1687, %v1757
      %v1794 = vadd.f32 %v1688, %v1761
      %v1795 = vadd.f32 %v1689, %v1761
      %v1796 = vadd.f32 %v1690, %v1765
      %v1797 = vadd.f32 %v1691, %v1765
      %v1798 = vadd.f32 %v1692, %v1769
      %v1799 = vadd.f32 %v1693, %v1769
      %v1800 = vadd.f32 %v1694, %v1773
      %v1801 = vadd.f32 %v1695, %v1773
      %v1802 = vadd.f32 %v1696, %v1777
      %v1803 = vadd.f32 %v1697, %v1777
      %v1804 = vadd.f32 %v1698, %v1781
      %v1805 = vadd.f32 %v1699, %v1781
      %v1806 = vsel %vm1428, %v1790, 0.0
      %1807 = vadd.xlane.f32.xlu0 %v1806
      %v1808 = vpop.xlane.xlu0 %1807
      %v1809 = vsel %vm1428, %v1791, 0.0
      %1810 = vadd.xlane.f32.xlu0 %v1809
      %v1811 = vpop.xlane.xlu0 %1810
      %v1812 = vsel %vm1428, %v1792, 0.0
      %1813 = vadd.xlane.f32.xlu0 %v1812
      %v1814 = vpop.xlane.xlu0 %1813
      %v1815 = vsel %vm1428, %v1793, 0.0
      %1816 = vadd.xlane.f32.xlu0 %v1815
      %v1817 = vpop.xlane.xlu0 %1816
      %v1818 = vsel %vm1428, %v1794, 0.0
      %1819 = vadd.xlane.f32.xlu0 %v1818
      %v1820 = vpop.xlane.xlu0 %1819
      %v1821 = vsel %vm1428, %v1795, 0.0
      %1822 = vadd.xlane.f32.xlu0 %v1821
      %v1823 = vpop.xlane.xlu0 %1822
      %v1824 = vsel %vm1428, %v1796, 0.0
      %1825 = vadd.xlane.f32.xlu0 %v1824
      %v1826 = vpop.xlane.xlu0 %1825
      %v1827 = vsel %vm1428, %v1797, 0.0
      %1828 = vadd.xlane.f32.xlu0 %v1827
      %v1829 = vpop.xlane.xlu0 %1828
      %v1830 = vsel %vm1428, %v1798, 0.0
      %1831 = vadd.xlane.f32.xlu0 %v1830
      %v1832 = vpop.xlane.xlu0 %1831
      %v1833 = vsel %vm1428, %v1799, 0.0
      %1834 = vadd.xlane.f32.xlu0 %v1833
      %v1835 = vpop.xlane.xlu0 %1834
      %v1836 = vsel %vm1428, %v1800, 0.0
      %1837 = vadd.xlane.f32.xlu0 %v1836
      %v1838 = vpop.xlane.xlu0 %1837
      %v1839 = vsel %vm1428, %v1801, 0.0
      %1840 = vadd.xlane.f32.xlu0 %v1839
      %v1841 = vpop.xlane.xlu0 %1840
      %v1842 = vsel %vm1428, %v1802, 0.0
      %1843 = vadd.xlane.f32.xlu0 %v1842
      %v1844 = vpop.xlane.xlu0 %1843
      %v1845 = vsel %vm1428, %v1803, 0.0
      %1846 = vadd.xlane.f32.xlu0 %v1845
      %v1847 = vpop.xlane.xlu0 %1846
      %v1848 = vsel %vm1428, %v1804, 0.0
      %1849 = vadd.xlane.f32.xlu0 %v1848
      %v1850 = vpop.xlane.xlu0 %1849
      %v1851 = vsel %vm1428, %v1805, 0.0
      %1852 = vadd.xlane.f32.xlu0 %v1851
      %v1853 = vpop.xlane.xlu0 %1852
      %v1854 = vrcp.pop 32.0
      %v1855 = vmul.f32 %v1808, %v1854
      %v1856 = vmul.f32 %v1811, %v1854
      %v1857 = vmul.f32 %v1814, %v1854
      %v1858 = vmul.f32 %v1817, %v1854
      %v1859 = vmul.f32 %v1820, %v1854
      %v1860 = vmul.f32 %v1823, %v1854
      %v1861 = vmul.f32 %v1826, %v1854
      %v1862 = vmul.f32 %v1829, %v1854
      %v1863 = vmul.f32 %v1832, %v1854
      %v1864 = vmul.f32 %v1835, %v1854
      %v1865 = vmul.f32 %v1838, %v1854
      %v1866 = vmul.f32 %v1841, %v1854
      %v1867 = vmul.f32 %v1844, %v1854
      %v1868 = vmul.f32 %v1847, %v1854
      %v1869 = vmul.f32 %v1850, %v1854
      %v1870 = vmul.f32 %v1853, %v1854
      %v1871 = vsub.f32 %v1790, %v1855
      %v1872 = vsub.f32 %v1791, %v1856
      %v1873 = vsub.f32 %v1792, %v1857
      %v1874 = vsub.f32 %v1793, %v1858
      %v1875 = vsub.f32 %v1794, %v1859
      %v1876 = vsub.f32 %v1795, %v1860
      %v1877 = vsub.f32 %v1796, %v1861
      %v1878 = vsub.f32 %v1797, %v1862
      %v1879 = vsub.f32 %v1798, %v1863
      %v1880 = vsub.f32 %v1799, %v1864
      %v1881 = vsub.f32 %v1800, %v1865
      %v1882 = vsub.f32 %v1801, %v1866
      %v1883 = vsub.f32 %v1802, %v1867
      %v1884 = vsub.f32 %v1803, %v1868
      %v1885 = vsub.f32 %v1804, %v1869
      %v1886 = vsub.f32 %v1805, %v1870
      %v1887 = vmul.f32 %v1871, %v1871
      %v1888 = vmul.f32 %v1872, %v1872
      %v1889 = vmul.f32 %v1873, %v1873
      %v1890 = vmul.f32 %v1874, %v1874
      %v1891 = vmul.f32 %v1875, %v1875
      %v1892 = vmul.f32 %v1876, %v1876
      %v1893 = vmul.f32 %v1877, %v1877
      %v1894 = vmul.f32 %v1878, %v1878
      %v1895 = vmul.f32 %v1879, %v1879
      %v1896 = vmul.f32 %v1880, %v1880
      %v1897 = vmul.f32 %v1881, %v1881
      %v1898 = vmul.f32 %v1882, %v1882
      %v1899 = vmul.f32 %v1883, %v1883
      %v1900 = vmul.f32 %v1884, %v1884
      %v1901 = vmul.f32 %v1885, %v1885
      %v1902 = vmul.f32 %v1886, %v1886
      %v1903 = vsel %vm1428, %v1887, 0.0
      %1904 = vadd.xlane.f32.xlu0 %v1903
      %v1905 = vpop.xlane.xlu0 %1904
      %v1906 = vsel %vm1428, %v1888, 0.0
      %1907 = vadd.xlane.f32.xlu0 %v1906
      %v1908 = vpop.xlane.xlu0 %1907
      %v1909 = vsel %vm1428, %v1889, 0.0
      %1910 = vadd.xlane.f32.xlu0 %v1909
      %v1911 = vpop.xlane.xlu0 %1910
      %v1912 = vsel %vm1428, %v1890, 0.0
      %1913 = vadd.xlane.f32.xlu0 %v1912
      %v1914 = vpop.xlane.xlu0 %1913
      %v1915 = vsel %vm1428, %v1891, 0.0
      %1916 = vadd.xlane.f32.xlu0 %v1915
      %v1917 = vpop.xlane.xlu0 %1916
      %v1918 = vsel %vm1428, %v1892, 0.0
      %1919 = vadd.xlane.f32.xlu0 %v1918
      %v1920 = vpop.xlane.xlu0 %1919
      %v1921 = vsel %vm1428, %v1893, 0.0
      %1922 = vadd.xlane.f32.xlu0 %v1921
      %v1923 = vpop.xlane.xlu0 %1922
      %v1924 = vsel %vm1428, %v1894, 0.0
      %1925 = vadd.xlane.f32.xlu0 %v1924
      %v1926 = vpop.xlane.xlu0 %1925
      %v1927 = vsel %vm1428, %v1895, 0.0
      %1928 = vadd.xlane.f32.xlu0 %v1927
      %v1929 = vpop.xlane.xlu0 %1928
      %v1930 = vsel %vm1428, %v1896, 0.0
      %1931 = vadd.xlane.f32.xlu0 %v1930
      %v1932 = vpop.xlane.xlu0 %1931
      %v1933 = vsel %vm1428, %v1897, 0.0
      %1934 = vadd.xlane.f32.xlu0 %v1933
      %v1935 = vpop.xlane.xlu0 %1934
      %v1936 = vsel %vm1428, %v1898, 0.0
      %1937 = vadd.xlane.f32.xlu0 %v1936
      %v1938 = vpop.xlane.xlu0 %1937
      %v1939 = vsel %vm1428, %v1899, 0.0
      %1940 = vadd.xlane.f32.xlu0 %v1939
      %v1941 = vpop.xlane.xlu0 %1940
      %v1942 = vsel %vm1428, %v1900, 0.0
      %1943 = vadd.xlane.f32.xlu0 %v1942
      %v1944 = vpop.xlane.xlu0 %1943
      %v1945 = vsel %vm1428, %v1901, 0.0
      %1946 = vadd.xlane.f32.xlu0 %v1945
      %v1947 = vpop.xlane.xlu0 %1946
      %v1948 = vsel %vm1428, %v1902, 0.0
      %1949 = vadd.xlane.f32.xlu0 %v1948
      %v1950 = vpop.xlane.xlu0 %1949
      %v1951 = vmul.f32 %v1905, %v1854
      %v1952 = vmul.f32 %v1908, %v1854
      %v1953 = vmul.f32 %v1911, %v1854
      %v1954 = vmul.f32 %v1914, %v1854
      %v1955 = vmul.f32 %v1917, %v1854
      %v1956 = vmul.f32 %v1920, %v1854
      %v1957 = vmul.f32 %v1923, %v1854
      %v1958 = vmul.f32 %v1926, %v1854
      %v1959 = vmul.f32 %v1929, %v1854
      %v1960 = vmul.f32 %v1932, %v1854
      %v1961 = vmul.f32 %v1935, %v1854
      %v1962 = vmul.f32 %v1938, %v1854
      %v1963 = vmul.f32 %v1941, %v1854
      %v1964 = vmul.f32 %v1944, %v1854
      %v1965 = vmul.f32 %v1947, %v1854
      %v1966 = vmul.f32 %v1950, %v1854
      %v1967 = vadd.f32 %v1951, 1e-05
      %v1968 = vadd.f32 %v1952, 1e-05
      %v1969 = vadd.f32 %v1953, 1e-05
      %v1970 = vadd.f32 %v1954, 1e-05
      %v1971 = vadd.f32 %v1955, 1e-05
      %v1972 = vadd.f32 %v1956, 1e-05
      %v1973 = vadd.f32 %v1957, 1e-05
      %v1974 = vadd.f32 %v1958, 1e-05
      %v1975 = vadd.f32 %v1959, 1e-05
      %v1976 = vadd.f32 %v1960, 1e-05
      %v1977 = vadd.f32 %v1961, 1e-05
      %v1978 = vadd.f32 %v1962, 1e-05
      %v1979 = vadd.f32 %v1963, 1e-05
      %v1980 = vadd.f32 %v1964, 1e-05
      %v1981 = vadd.f32 %v1965, 1e-05
      %v1982 = vadd.f32 %v1966, 1e-05
      %v1983 = vrsqrt.pop %v1967
      %v1984 = vrsqrt.pop %v1968
      %v1985 = vrsqrt.pop %v1969
      %v1986 = vrsqrt.pop %v1970
      %v1987 = vrsqrt.pop %v1971
      %v1988 = vrsqrt.pop %v1972
      %v1989 = vrsqrt.pop %v1973
      %v1990 = vrsqrt.pop %v1974
      %v1991 = vrsqrt.pop %v1975
      %v1992 = vrsqrt.pop %v1976
      %v1993 = vrsqrt.pop %v1977
      %v1994 = vrsqrt.pop %v1978
      %v1995 = vrsqrt.pop %v1979
      %v1996 = vrsqrt.pop %v1980
      %v1997 = vrsqrt.pop %v1981
      %v1998 = vrsqrt.pop %v1982
      %v1999 = vmul.f32 %v1871, %v1983
      %v2000 = vmul.f32 %v1872, %v1984
      %v2001 = vmul.f32 %v1873, %v1985
      %v2002 = vmul.f32 %v1874, %v1986
      %v2003 = vmul.f32 %v1875, %v1987
      %v2004 = vmul.f32 %v1876, %v1988
      %v2005 = vmul.f32 %v1877, %v1989
      %v2006 = vmul.f32 %v1878, %v1990
      %v2007 = vmul.f32 %v1879, %v1991
      %v2008 = vmul.f32 %v1880, %v1992
      %v2009 = vmul.f32 %v1881, %v1993
      %v2010 = vmul.f32 %v1882, %v1994
      %v2011 = vmul.f32 %v1883, %v1995
      %v2012 = vmul.f32 %v1884, %v1996
      %v2013 = vmul.f32 %v1885, %v1997
      %v2014 = vmul.f32 %v1886, %v1998
      %v2015 = vlaneseq
      %v2016 = vshrl.u32 %v2015, 7
      %v2017 = vsub.s32 1, %v2016
      %v2018 = vrot.slane %v879, %v2017
      %v2019 = vmul.f32 %v1999, %v2018
      %v2020 = vmul.f32 %v2000, %v2018
      %v2021 = vmul.f32 %v2001, %v2018
      %v2022 = vmul.f32 %v2002, %v2018
      %v2023 = vmul.f32 %v2003, %v2018
      %v2024 = vmul.f32 %v2004, %v2018
      %v2025 = vmul.f32 %v2005, %v2018
      %v2026 = vmul.f32 %v2006, %v2018
      %v2027 = vmul.f32 %v2007, %v2018
      %v2028 = vmul.f32 %v2008, %v2018
      %v2029 = vmul.f32 %v2009, %v2018
      %v2030 = vmul.f32 %v2010, %v2018
      %v2031 = vmul.f32 %v2011, %v2018
      %v2032 = vmul.f32 %v2012, %v2018
      %v2033 = vmul.f32 %v2013, %v2018
      %v2034 = vmul.f32 %v2014, %v2018
      %v2035 = vlaneseq
      %v2036 = vshrl.u32 %v2035, 7
      %v2037 = vsub.s32 2, %v2036
      %v2038 = vrot.slane %v879, %v2037
      %v2039 = vadd.f32 %v2019, %v2038
      %v2040 = vadd.f32 %v2020, %v2038
      %v2041 = vadd.f32 %v2021, %v2038
      %v2042 = vadd.f32 %v2022, %v2038
      %v2043 = vadd.f32 %v2023, %v2038
      %v2044 = vadd.f32 %v2024, %v2038
      %v2045 = vadd.f32 %v2025, %v2038
      %v2046 = vadd.f32 %v2026, %v2038
      %v2047 = vadd.f32 %v2027, %v2038
      %v2048 = vadd.f32 %v2028, %v2038
      %v2049 = vadd.f32 %v2029, %v2038
      %v2050 = vadd.f32 %v2030, %v2038
      %v2051 = vadd.f32 %v2031, %v2038
      %v2052 = vadd.f32 %v2032, %v2038
      %v2053 = vadd.f32 %v2033, %v2038
      %v2054 = vadd.f32 %v2034, %v2038
      %vm2055 = vcmp.gt.f32.partialorder %v2039, 0.0
      %vm2056 = vcmp.gt.f32.partialorder %v2040, 0.0
      %vm2057 = vcmp.gt.f32.partialorder %v2041, 0.0
      %vm2058 = vcmp.gt.f32.partialorder %v2042, 0.0
      %vm2059 = vcmp.gt.f32.partialorder %v2043, 0.0
      %vm2060 = vcmp.gt.f32.partialorder %v2044, 0.0
      %vm2061 = vcmp.gt.f32.partialorder %v2045, 0.0
      %vm2062 = vcmp.gt.f32.partialorder %v2046, 0.0
      %vm2063 = vcmp.gt.f32.partialorder %v2047, 0.0
      %vm2064 = vcmp.gt.f32.partialorder %v2048, 0.0
      %vm2065 = vcmp.gt.f32.partialorder %v2049, 0.0
      %vm2066 = vcmp.gt.f32.partialorder %v2050, 0.0
      %vm2067 = vcmp.gt.f32.partialorder %v2051, 0.0
      %vm2068 = vcmp.gt.f32.partialorder %v2052, 0.0
      %vm2069 = vcmp.gt.f32.partialorder %v2053, 0.0
      %vm2070 = vcmp.gt.f32.partialorder %v2054, 0.0
      %v2071 = vmul.f32 %v2039, 0.01
      %v2072 = vmul.f32 %v2040, 0.01
      %v2073 = vmul.f32 %v2041, 0.01
      %v2074 = vmul.f32 %v2042, 0.01
      %v2075 = vmul.f32 %v2043, 0.01
      %v2076 = vmul.f32 %v2044, 0.01
      %v2077 = vmul.f32 %v2045, 0.01
      %v2078 = vmul.f32 %v2046, 0.01
      %v2079 = vmul.f32 %v2047, 0.01
      %v2080 = vmul.f32 %v2048, 0.01
      %v2081 = vmul.f32 %v2049, 0.01
      %v2082 = vmul.f32 %v2050, 0.01
      %v2083 = vmul.f32 %v2051, 0.01
      %v2084 = vmul.f32 %v2052, 0.01
      %v2085 = vmul.f32 %v2053, 0.01
      %v2086 = vmul.f32 %v2054, 0.01
      %v2087 = vsel %vm2055, %v2039, %v2071
      %v2088 = vsel %vm2056, %v2040, %v2072
      %v2089 = vsel %vm2057, %v2041, %v2073
      %v2090 = vsel %vm2058, %v2042, %v2074
      %v2091 = vsel %vm2059, %v2043, %v2075
      %v2092 = vsel %vm2060, %v2044, %v2076
      %v2093 = vsel %vm2061, %v2045, %v2077
      %v2094 = vsel %vm2062, %v2046, %v2078
      %v2095 = vsel %vm2063, %v2047, %v2079
      %v2096 = vsel %vm2064, %v2048, %v2080
      %v2097 = vsel %vm2065, %v2049, %v2081
      %v2098 = vsel %vm2066, %v2050, %v2082
      %v2099 = vsel %vm2067, %v2051, %v2083
      %v2100 = vsel %vm2068, %v2052, %v2084
      %v2101 = vsel %vm2069, %v2053, %v2085
      %v2102 = vsel %vm2070, %v2054, %v2086
      %v2103 = vpack.c.bf16 %v2088, %v2087
      %v2104 = vpack.c.bf16 %v2090, %v2089
      %v2105 = vpack.c.bf16 %v2092, %v2091
      %v2106 = vpack.c.bf16 %v2094, %v2093
      %v2107 = vpack.c.bf16 %v2096, %v2095
      %v2108 = vpack.c.bf16 %v2098, %v2097
      %v2109 = vpack.c.bf16 %v2100, %v2099
      %v2110 = vpack.c.bf16 %v2102, %v2101
      %v2111 = vld [vmem:[%s11] sm:$0xf]
      %v2112 = vld [vmem:[%s11 + $0x4] sm:$0xf]
      %v2113 = vld [vmem:[%s11 + $0x8] sm:$0xf]
      %v2114 = vld [vmem:[%s11 + $0xc] sm:$0xf]
      %v2115 = vlaneseq
      %v2116 = vshrl.u32 %v2115, 7
      %v2117 = vsub.s32 3, %v2116
      %v2118 = vrot.slane %v879, %v2117
      %v2123 = vunpack.c.l.b16 %v2111
      %v2124 = vunpack.c.l.b16 %v2112
      %v2125 = vunpack.c.l.b16 %v2113
      %v2126 = vunpack.c.l.b16 %v2114
      %v2127 = vpack.c.b16 %v2124, %v2123
      %v2128 = vpack.c.b16 %v2126, %v2125
      %v2132 = vsel %vm1428, %v2103, 0
      %v2135 = vsel %vm1428, %v2104, 0
      %v2138 = vsel %vm1428, %v2105, 0
      %v2141 = vsel %vm1428, %v2106, 0
      %v2144 = vsel %vm1428, %v2107, 0
      %v2147 = vsel %vm1428, %v2108, 0
      %v2150 = vsel %vm1428, %v2109, 0
      %v2153 = vsel %vm1428, %v2110, 0
      %2155 = vmatprep.subr.bf16.mxu0 0
      %2156 = vmatpush1.bf16.msra.mxu0 %v2127
      %2157 = vmatprep.subr.bf16.mxu0 0
      %2158 = vmatpush1.bf16.msra.mxu0 %v2128
      %2159 = vmatprep.subr.bf16.mxu0 0
      %2160 = vmatpush1.bf16.msra.mxu0 0
      %2161 = vmatprep.subr.bf16.mxu0 0
      %2162 = vmatpush1.bf16.msra.mxu0 0
      %2163 = vmatprep.subr.bf16.mxu0 0
      %2164 = vmatpush1.bf16.msra.mxu0 0
      %2165 = vmatprep.subr.bf16.mxu0 0
      %2166 = vmatpush1.bf16.msra.mxu0 0
      %2167 = vmatprep.subr.bf16.mxu0 0
      %2168 = vmatpush1.bf16.msra.mxu0 0
      %2169 = vmatprep.subr.bf16.mxu0 0
      %2170 = vmatpush1.bf16.msra.mxu0 0
      %2171 = vmatprep.subr.bf16.mxu0 0
      %2172 = vmatpush1.bf16.msra.mxu0 0
      %2173 = vmatprep.subr.bf16.mxu0 0
      %2174 = vmatpush1.bf16.msra.mxu0 0
      %2175 = vmatprep.subr.bf16.mxu0 0
      %2176 = vmatpush1.bf16.msra.mxu0 0
      %2177 = vmatprep.subr.bf16.mxu0 0
      %2178 = vmatpush1.bf16.msra.mxu0 0
      %2179 = vmatprep.subr.bf16.mxu0 0
      %2180 = vmatpush1.bf16.msra.mxu0 0
      %2181 = vmatprep.subr.bf16.mxu0 0
      %2182 = vmatpush1.bf16.msra.mxu0 0
      %2183 = vmatprep.subr.bf16.mxu0 0
      %2184 = vmatpush1.bf16.msra.mxu0 0
      %2185 = vmatprep.subr.bf16.mxu0 0
      %2186 = vmatpush1.bf16.msra.mxu0 0
      %2187 = vmatprep.mubr.bf16.mxu0 0
      %2188 = vmatmul.mubr.bf16.gmra.mrb[0].mxu0 %v2132
      %v2189 = vpop.f32.mrb[0].mxu0
      %v2190 = vadd.f32 %v2118, %v2189
      %v2191 = vpop.f32.mrb[0].mxu0
      %v2192 = vpop.f32.mrb[0].mxu0
      %v2193 = vadd.f32 %v2118, %v2192
      %v2194 = vpop.f32.mrb[0].mxu0
      %2195 = vmatprep.mubr.bf16.mxu0 0
      %2196 = vmatmul.mubr.bf16.gmra.mrb[0].mxu0 %v2135
      %v2197 = vpop.f32.mrb[0].mxu0
      %v2198 = vadd.f32 %v2118, %v2197
      %v2199 = vpop.f32.mrb[0].mxu0
      %v2200 = vpop.f32.mrb[0].mxu0
      %v2201 = vadd.f32 %v2118, %v2200
      %v2202 = vpop.f32.mrb[0].mxu0
      %2203 = vmatprep.mubr.bf16.mxu0 0
      %2204 = vmatmul.mubr.bf16.gmra.mrb[0].mxu0 %v2138
      %v2205 = vpop.f32.mrb[0].mxu0
      %v2206 = vadd.f32 %v2118, %v2205
      %v2207 = vpop.f32.mrb[0].mxu0
      %v2208 = vpop.f32.mrb[0].mxu0
      %v2209 = vadd.f32 %v2118, %v2208
      %v2210 = vpop.f32.mrb[0].mxu0
      %2211 = vmatprep.mubr.bf16.mxu0 0
      %2212 = vmatmul.mubr.bf16.gmra.mrb[0].mxu0 %v2141
      %v2213 = vpop.f32.mrb[0].mxu0
      %v2214 = vadd.f32 %v2118, %v2213
      %v2215 = vpop.f32.mrb[0].mxu0
      %v2216 = vpop.f32.mrb[0].mxu0
      %v2217 = vadd.f32 %v2118, %v2216
      %v2218 = vpop.f32.mrb[0].mxu0
      %2219 = vmatprep.mubr.bf16.mxu0 0
      %2220 = vmatmul.mubr.bf16.gmra.mrb[0].mxu0 %v2144
      %v2221 = vpop.f32.mrb[0].mxu0
      %v2222 = vadd.f32 %v2118, %v2221
      %v2223 = vpop.f32.mrb[0].mxu0
      %v2224 = vpop.f32.mrb[0].mxu0
      %v2225 = vadd.f32 %v2118, %v2224
      %v2226 = vpop.f32.mrb[0].mxu0
      %2227 = vmatprep.mubr.bf16.mxu0 0
      %2228 = vmatmul.mubr.bf16.gmra.mrb[0].mxu0 %v2147
      %v2229 = vpop.f32.mrb[0].mxu0
      %v2230 = vadd.f32 %v2118, %v2229
      %v2231 = vpop.f32.mrb[0].mxu0
      %v2232 = vpop.f32.mrb[0].mxu0
      %v2233 = vadd.f32 %v2118, %v2232
      %v2234 = vpop.f32.mrb[0].mxu0
      %2235 = vmatprep.mubr.bf16.mxu0 0
      %2236 = vmatmul.mubr.bf16.gmra.mrb[0].mxu0 %v2150
      %v2237 = vpop.f32.mrb[0].mxu0
      %v2238 = vadd.f32 %v2118, %v2237
      %v2239 = vpop.f32.mrb[0].mxu0
      %v2240 = vpop.f32.mrb[0].mxu0
      %v2241 = vadd.f32 %v2118, %v2240
      %v2242 = vpop.f32.mrb[0].mxu0
      %2243 = vmatprep.mubr.bf16.mxu0 0
      %2244 = vmatmul.mubr.bf16.gmra.mrb[0].mxu0 %v2153
      %v2245 = vpop.f32.mrb[0].mxu0
      %v2246 = vadd.f32 %v2118, %v2245
      %v2247 = vpop.f32.mrb[0].mxu0
      %v2248 = vpop.f32.mrb[0].mxu0
      %v2249 = vadd.f32 %v2118, %v2248
      %v2250 = vpop.f32.mrb[0].mxu0
      %2251 = vdwg.mxu0
      %v2252 = vsel %vm1428, %v2190, 0.0
      %2253 = vadd.xlane.f32.xlu0 %v2252
      %v2254 = vpop.xlane.xlu0 %2253
      %v2255 = vsel %vm1428, %v2193, 0.0
      %2256 = vadd.xlane.f32.xlu0 %v2255
      %v2257 = vpop.xlane.xlu0 %2256
      %v2258 = vsel %vm1428, %v2198, 0.0
      %2259 = vadd.xlane.f32.xlu0 %v2258
      %v2260 = vpop.xlane.xlu0 %2259
      %v2261 = vsel %vm1428, %v2201, 0.0
      %2262 = vadd.xlane.f32.xlu0 %v2261
      %v2263 = vpop.xlane.xlu0 %2262
      %v2264 = vsel %vm1428, %v2206, 0.0
      %2265 = vadd.xlane.f32.xlu0 %v2264
      %v2266 = vpop.xlane.xlu0 %2265
      %v2267 = vsel %vm1428, %v2209, 0.0
      %2268 = vadd.xlane.f32.xlu0 %v2267
      %v2269 = vpop.xlane.xlu0 %2268
      %v2270 = vsel %vm1428, %v2214, 0.0
      %2271 = vadd.xlane.f32.xlu0 %v2270
      %v2272 = vpop.xlane.xlu0 %2271
      %v2273 = vsel %vm1428, %v2217, 0.0
      %2274 = vadd.xlane.f32.xlu0 %v2273
      %v2275 = vpop.xlane.xlu0 %2274
      %v2276 = vsel %vm1428, %v2222, 0.0
      %2277 = vadd.xlane.f32.xlu0 %v2276
      %v2278 = vpop.xlane.xlu0 %2277
      %v2279 = vsel %vm1428, %v2225, 0.0
      %2280 = vadd.xlane.f32.xlu0 %v2279
      %v2281 = vpop.xlane.xlu0 %2280
      %v2282 = vsel %vm1428, %v2230, 0.0
      %2283 = vadd.xlane.f32.xlu0 %v2282
      %v2284 = vpop.xlane.xlu0 %2283
      %v2285 = vsel %vm1428, %v2233, 0.0
      %2286 = vadd.xlane.f32.xlu0 %v2285
      %v2287 = vpop.xlane.xlu0 %2286
      %v2288 = vsel %vm1428, %v2238, 0.0
      %2289 = vadd.xlane.f32.xlu0 %v2288
      %v2290 = vpop.xlane.xlu0 %2289
      %v2291 = vsel %vm1428, %v2241, 0.0
      %2292 = vadd.xlane.f32.xlu0 %v2291
      %v2293 = vpop.xlane.xlu0 %2292
      %v2294 = vsel %vm1428, %v2246, 0.0
      %2295 = vadd.xlane.f32.xlu0 %v2294
      %v2296 = vpop.xlane.xlu0 %2295
      %v2297 = vsel %vm1428, %v2249, 0.0
      %2298 = vadd.xlane.f32.xlu0 %v2297
      %v2299 = vpop.xlane.xlu0 %2298
      %v2300 = vmul.f32 %v2254, %v1854
      %v2301 = vmul.f32 %v2257, %v1854
      %v2302 = vmul.f32 %v2260, %v1854
      %v2303 = vmul.f32 %v2263, %v1854
      %v2304 = vmul.f32 %v2266, %v1854
      %v2305 = vmul.f32 %v2269, %v1854
      %v2306 = vmul.f32 %v2272, %v1854
      %v2307 = vmul.f32 %v2275, %v1854
      %v2308 = vmul.f32 %v2278, %v1854
      %v2309 = vmul.f32 %v2281, %v1854
      %v2310 = vmul.f32 %v2284, %v1854
      %v2311 = vmul.f32 %v2287, %v1854
      %v2312 = vmul.f32 %v2290, %v1854
      %v2313 = vmul.f32 %v2293, %v1854
      %v2314 = vmul.f32 %v2296, %v1854
      %v2315 = vmul.f32 %v2299, %v1854
      %v2316 = vsub.f32 %v2190, %v2300
      %v2317 = vsub.f32 %v2193, %v2301
      %v2318 = vsub.f32 %v2198, %v2302
      %v2319 = vsub.f32 %v2201, %v2303
      %v2320 = vsub.f32 %v2206, %v2304
      %v2321 = vsub.f32 %v2209, %v2305
      %v2322 = vsub.f32 %v2214, %v2306
      %v2323 = vsub.f32 %v2217, %v2307
      %v2324 = vsub.f32 %v2222, %v2308
      %v2325 = vsub.f32 %v2225, %v2309
      %v2326 = vsub.f32 %v2230, %v2310
      %v2327 = vsub.f32 %v2233, %v2311
      %v2328 = vsub.f32 %v2238, %v2312
      %v2329 = vsub.f32 %v2241, %v2313
      %v2330 = vsub.f32 %v2246, %v2314
      %v2331 = vsub.f32 %v2249, %v2315
      %v2332 = vmul.f32 %v2316, %v2316
      %v2333 = vmul.f32 %v2317, %v2317
      %v2334 = vmul.f32 %v2318, %v2318
      %v2335 = vmul.f32 %v2319, %v2319
      %v2336 = vmul.f32 %v2320, %v2320
      %v2337 = vmul.f32 %v2321, %v2321
      %v2338 = vmul.f32 %v2322, %v2322
      %v2339 = vmul.f32 %v2323, %v2323
      %v2340 = vmul.f32 %v2324, %v2324
      %v2341 = vmul.f32 %v2325, %v2325
      %v2342 = vmul.f32 %v2326, %v2326
      %v2343 = vmul.f32 %v2327, %v2327
      %v2344 = vmul.f32 %v2328, %v2328
      %v2345 = vmul.f32 %v2329, %v2329
      %v2346 = vmul.f32 %v2330, %v2330
      %v2347 = vmul.f32 %v2331, %v2331
      %v2348 = vsel %vm1428, %v2332, 0.0
      %2349 = vadd.xlane.f32.xlu0 %v2348
      %v2350 = vpop.xlane.xlu0 %2349
      %v2351 = vsel %vm1428, %v2333, 0.0
      %2352 = vadd.xlane.f32.xlu0 %v2351
      %v2353 = vpop.xlane.xlu0 %2352
      %v2354 = vsel %vm1428, %v2334, 0.0
      %2355 = vadd.xlane.f32.xlu0 %v2354
      %v2356 = vpop.xlane.xlu0 %2355
      %v2357 = vsel %vm1428, %v2335, 0.0
      %2358 = vadd.xlane.f32.xlu0 %v2357
      %v2359 = vpop.xlane.xlu0 %2358
      %v2360 = vsel %vm1428, %v2336, 0.0
      %2361 = vadd.xlane.f32.xlu0 %v2360
      %v2362 = vpop.xlane.xlu0 %2361
      %v2363 = vsel %vm1428, %v2337, 0.0
      %2364 = vadd.xlane.f32.xlu0 %v2363
      %v2365 = vpop.xlane.xlu0 %2364
      %v2366 = vsel %vm1428, %v2338, 0.0
      %2367 = vadd.xlane.f32.xlu0 %v2366
      %v2368 = vpop.xlane.xlu0 %2367
      %v2369 = vsel %vm1428, %v2339, 0.0
      %2370 = vadd.xlane.f32.xlu0 %v2369
      %v2371 = vpop.xlane.xlu0 %2370
      %v2372 = vsel %vm1428, %v2340, 0.0
      %2373 = vadd.xlane.f32.xlu0 %v2372
      %v2374 = vpop.xlane.xlu0 %2373
      %v2375 = vsel %vm1428, %v2341, 0.0
      %2376 = vadd.xlane.f32.xlu0 %v2375
      %v2377 = vpop.xlane.xlu0 %2376
      %v2378 = vsel %vm1428, %v2342, 0.0
      %2379 = vadd.xlane.f32.xlu0 %v2378
      %v2380 = vpop.xlane.xlu0 %2379
      %v2381 = vsel %vm1428, %v2343, 0.0
      %2382 = vadd.xlane.f32.xlu0 %v2381
      %v2383 = vpop.xlane.xlu0 %2382
      %v2384 = vsel %vm1428, %v2344, 0.0
      %2385 = vadd.xlane.f32.xlu0 %v2384
      %v2386 = vpop.xlane.xlu0 %2385
      %v2387 = vsel %vm1428, %v2345, 0.0
      %2388 = vadd.xlane.f32.xlu0 %v2387
      %v2389 = vpop.xlane.xlu0 %2388
      %v2390 = vsel %vm1428, %v2346, 0.0
      %2391 = vadd.xlane.f32.xlu0 %v2390
      %v2392 = vpop.xlane.xlu0 %2391
      %v2393 = vsel %vm1428, %v2347, 0.0
      %2394 = vadd.xlane.f32.xlu0 %v2393
      %v2395 = vpop.xlane.xlu0 %2394
      %v2396 = vmul.f32 %v2350, %v1854
      %v2397 = vmul.f32 %v2353, %v1854
      %v2398 = vmul.f32 %v2356, %v1854
      %v2399 = vmul.f32 %v2359, %v1854
      %v2400 = vmul.f32 %v2362, %v1854
      %v2401 = vmul.f32 %v2365, %v1854
      %v2402 = vmul.f32 %v2368, %v1854
      %v2403 = vmul.f32 %v2371, %v1854
      %v2404 = vmul.f32 %v2374, %v1854
      %v2405 = vmul.f32 %v2377, %v1854
      %v2406 = vmul.f32 %v2380, %v1854
      %v2407 = vmul.f32 %v2383, %v1854
      %v2408 = vmul.f32 %v2386, %v1854
      %v2409 = vmul.f32 %v2389, %v1854
      %v2410 = vmul.f32 %v2392, %v1854
      %v2411 = vmul.f32 %v2395, %v1854
      %v2412 = vadd.f32 %v2396, 1e-05
      %v2413 = vadd.f32 %v2397, 1e-05
      %v2414 = vadd.f32 %v2398, 1e-05
      %v2415 = vadd.f32 %v2399, 1e-05
      %v2416 = vadd.f32 %v2400, 1e-05
      %v2417 = vadd.f32 %v2401, 1e-05
      %v2418 = vadd.f32 %v2402, 1e-05
      %v2419 = vadd.f32 %v2403, 1e-05
      %v2420 = vadd.f32 %v2404, 1e-05
      %v2421 = vadd.f32 %v2405, 1e-05
      %v2422 = vadd.f32 %v2406, 1e-05
      %v2423 = vadd.f32 %v2407, 1e-05
      %v2424 = vadd.f32 %v2408, 1e-05
      %v2425 = vadd.f32 %v2409, 1e-05
      %v2426 = vadd.f32 %v2410, 1e-05
      %v2427 = vadd.f32 %v2411, 1e-05
      %v2428 = vrsqrt.pop %v2412
      %v2429 = vrsqrt.pop %v2413
      %v2430 = vrsqrt.pop %v2414
      %v2431 = vrsqrt.pop %v2415
      %v2432 = vrsqrt.pop %v2416
      %v2433 = vrsqrt.pop %v2417
      %v2434 = vrsqrt.pop %v2418
      %v2435 = vrsqrt.pop %v2419
      %v2436 = vrsqrt.pop %v2420
      %v2437 = vrsqrt.pop %v2421
      %v2438 = vrsqrt.pop %v2422
      %v2439 = vrsqrt.pop %v2423
      %v2440 = vrsqrt.pop %v2424
      %v2441 = vrsqrt.pop %v2425
      %v2442 = vrsqrt.pop %v2426
      %v2443 = vrsqrt.pop %v2427
      %v2444 = vmul.f32 %v2316, %v2428
      %v2445 = vmul.f32 %v2317, %v2429
      %v2446 = vmul.f32 %v2318, %v2430
      %v2447 = vmul.f32 %v2319, %v2431
      %v2448 = vmul.f32 %v2320, %v2432
      %v2449 = vmul.f32 %v2321, %v2433
      %v2450 = vmul.f32 %v2322, %v2434
      %v2451 = vmul.f32 %v2323, %v2435
      %v2452 = vmul.f32 %v2324, %v2436
      %v2453 = vmul.f32 %v2325, %v2437
      %v2454 = vmul.f32 %v2326, %v2438
      %v2455 = vmul.f32 %v2327, %v2439
      %v2456 = vmul.f32 %v2328, %v2440
      %v2457 = vmul.f32 %v2329, %v2441
      %v2458 = vmul.f32 %v2330, %v2442
      %v2459 = vmul.f32 %v2331, %v2443
      %v2460 = vlaneseq
      %v2461 = vshrl.u32 %v2460, 7
      %v2462 = vsub.s32 4, %v2461
      %v2463 = vrot.slane %v879, %v2462
      %v2464 = vmul.f32 %v2444, %v2463
      %v2465 = vmul.f32 %v2445, %v2463
      %v2466 = vmul.f32 %v2446, %v2463
      %v2467 = vmul.f32 %v2447, %v2463
      %v2468 = vmul.f32 %v2448, %v2463
      %v2469 = vmul.f32 %v2449, %v2463
      %v2470 = vmul.f32 %v2450, %v2463
      %v2471 = vmul.f32 %v2451, %v2463
      %v2472 = vmul.f32 %v2452, %v2463
      %v2473 = vmul.f32 %v2453, %v2463
      %v2474 = vmul.f32 %v2454, %v2463
      %v2475 = vmul.f32 %v2455, %v2463
      %v2476 = vmul.f32 %v2456, %v2463
      %v2477 = vmul.f32 %v2457, %v2463
      %v2478 = vmul.f32 %v2458, %v2463
      %v2479 = vmul.f32 %v2459, %v2463
      %v2480 = vlaneseq
      %v2481 = vshrl.u32 %v2480, 7
      %v2482 = vsub.s32 5, %v2481
      %v2483 = vrot.slane %v879, %v2482
      %v2484 = vadd.f32 %v2464, %v2483
      %v2485 = vadd.f32 %v2465, %v2483
      %v2486 = vadd.f32 %v2466, %v2483
      %v2487 = vadd.f32 %v2467, %v2483
      %v2488 = vadd.f32 %v2468, %v2483
      %v2489 = vadd.f32 %v2469, %v2483
      %v2490 = vadd.f32 %v2470, %v2483
      %v2491 = vadd.f32 %v2471, %v2483
      %v2492 = vadd.f32 %v2472, %v2483
      %v2493 = vadd.f32 %v2473, %v2483
      %v2494 = vadd.f32 %v2474, %v2483
      %v2495 = vadd.f32 %v2475, %v2483
      %v2496 = vadd.f32 %v2476, %v2483
      %v2497 = vadd.f32 %v2477, %v2483
      %v2498 = vadd.f32 %v2478, %v2483
      %v2499 = vadd.f32 %v2479, %v2483
      %v2500 = vpack.c.bf16 %v2485, %v2484
      %v2501 = vpack.c.bf16 %v2487, %v2486
      %v2502 = vpack.c.bf16 %v2489, %v2488
      %v2503 = vpack.c.bf16 %v2491, %v2490
      %v2504 = vpack.c.bf16 %v2493, %v2492
      %v2505 = vpack.c.bf16 %v2495, %v2494
      %v2506 = vpack.c.bf16 %v2497, %v2496
      %v2507 = vpack.c.bf16 %v2499, %v2498
      %v2508 = vld [vmem:[%s12] sm:$0xf]
      %v2509 = vld [vmem:[%s12 + $0x4] sm:$0xf]
      %v2510 = vld [vmem:[%s12 + $0x8] sm:$0xf]
      %v2511 = vld [vmem:[%s12 + $0xc] sm:$0xf]
      %v2512 = vlaneseq
      %v2513 = vshrl.u32 %v2512, 7
      %v2514 = vsub.s32 6, %v2513
      %v2515 = vrot.slane %v879, %v2514
      %v2520 = vunpack.c.l.b16 %v2508
      %v2521 = vunpack.c.l.b16 %v2509
      %v2522 = vunpack.c.l.b16 %v2510
      %v2523 = vunpack.c.l.b16 %v2511
      %v2524 = vpack.c.b16 %v2521, %v2520
      %v2525 = vpack.c.b16 %v2523, %v2522
      %v2529 = vsel %vm1428, %v2500, 0
      %v2532 = vsel %vm1428, %v2501, 0
      %v2535 = vsel %vm1428, %v2502, 0
      %v2538 = vsel %vm1428, %v2503, 0
      %v2541 = vsel %vm1428, %v2504, 0
      %v2544 = vsel %vm1428, %v2505, 0
      %v2547 = vsel %vm1428, %v2506, 0
      %v2550 = vsel %vm1428, %v2507, 0
      %2552 = vmatprep.subr.bf16.mxu0 0
      %2553 = vmatpush1.bf16.msra.mxu0 %v2524
      %2554 = vmatprep.subr.bf16.mxu0 0
      %2555 = vmatpush1.bf16.msra.mxu0 %v2525
      %2556 = vmatprep.subr.bf16.mxu0 0
      %2557 = vmatpush1.bf16.msra.mxu0 0
      %2558 = vmatprep.subr.bf16.mxu0 0
      %2559 = vmatpush1.bf16.msra.mxu0 0
      %2560 = vmatprep.subr.bf16.mxu0 0
      %2561 = vmatpush1.bf16.msra.mxu0 0
      %2562 = vmatprep.subr.bf16.mxu0 0
      %2563 = vmatpush1.bf16.msra.mxu0 0
      %2564 = vmatprep.subr.bf16.mxu0 0
      %2565 = vmatpush1.bf16.msra.mxu0 0
      %2566 = vmatprep.subr.bf16.mxu0 0
      %2567 = vmatpush1.bf16.msra.mxu0 0
      %2568 = vmatprep.subr.bf16.mxu0 0
      %2569 = vmatpush1.bf16.msra.mxu0 0
      %2570 = vmatprep.subr.bf16.mxu0 0
      %2571 = vmatpush1.bf16.msra.mxu0 0
      %2572 = vmatprep.subr.bf16.mxu0 0
      %2573 = vmatpush1.bf16.msra.mxu0 0
      %2574 = vmatprep.subr.bf16.mxu0 0
      %2575 = vmatpush1.bf16.msra.mxu0 0
      %2576 = vmatprep.subr.bf16.mxu0 0
      %2577 = vmatpush1.bf16.msra.mxu0 0
      %2578 = vmatprep.subr.bf16.mxu0 0
      %2579 = vmatpush1.bf16.msra.mxu0 0
      %2580 = vmatprep.subr.bf16.mxu0 0
      %2581 = vmatpush1.bf16.msra.mxu0 0
      %2582 = vmatprep.subr.bf16.mxu0 0
      %2583 = vmatpush1.bf16.msra.mxu0 0
      %2584 = vmatprep.mubr.bf16.mxu0 0
      %2585 = vmatmul.mubr.bf16.gmra.mrb[0].mxu0 %v2529
      %v2586 = vpop.f32.mrb[0].mxu0
      %v2587 = vadd.f32 %v2515, %v2586
      %v2588 = vpop.f32.mrb[0].mxu0
      %v2589 = vpop.f32.mrb[0].mxu0
      %v2590 = vadd.f32 %v2515, %v2589
      %v2591 = vpop.f32.mrb[0].mxu0
      %2592 = vmatprep.mubr.bf16.mxu0 0
      %2593 = vmatmul.mubr.bf16.gmra.mrb[0].mxu0 %v2532
      %v2594 = vpop.f32.mrb[0].mxu0
      %v2595 = vadd.f32 %v2515, %v2594
      %v2596 = vpop.f32.mrb[0].mxu0
      %v2597 = vpop.f32.mrb[0].mxu0
      %v2598 = vadd.f32 %v2515, %v2597
      %v2599 = vpop.f32.mrb[0].mxu0
      %2600 = vmatprep.mubr.bf16.mxu0 0
      %2601 = vmatmul.mubr.bf16.gmra.mrb[0].mxu0 %v2535
      %v2602 = vpop.f32.mrb[0].mxu0
      %v2603 = vadd.f32 %v2515, %v2602
      %v2604 = vpop.f32.mrb[0].mxu0
      %v2605 = vpop.f32.mrb[0].mxu0
      %v2606 = vadd.f32 %v2515, %v2605
      %v2607 = vpop.f32.mrb[0].mxu0
      %2608 = vmatprep.mubr.bf16.mxu0 0
      %2609 = vmatmul.mubr.bf16.gmra.mrb[0].mxu0 %v2538
      %v2610 = vpop.f32.mrb[0].mxu0
      %v2611 = vadd.f32 %v2515, %v2610
      %v2612 = vpop.f32.mrb[0].mxu0
      %v2613 = vpop.f32.mrb[0].mxu0
      %v2614 = vadd.f32 %v2515, %v2613
      %v2615 = vpop.f32.mrb[0].mxu0
      %2616 = vmatprep.mubr.bf16.mxu0 0
      %2617 = vmatmul.mubr.bf16.gmra.mrb[0].mxu0 %v2541
      %v2618 = vpop.f32.mrb[0].mxu0
      %v2619 = vadd.f32 %v2515, %v2618
      %v2620 = vpop.f32.mrb[0].mxu0
      %v2621 = vpop.f32.mrb[0].mxu0
      %v2622 = vadd.f32 %v2515, %v2621
      %v2623 = vpop.f32.mrb[0].mxu0
      %2624 = vmatprep.mubr.bf16.mxu0 0
      %2625 = vmatmul.mubr.bf16.gmra.mrb[0].mxu0 %v2544
      %v2626 = vpop.f32.mrb[0].mxu0
      %v2627 = vadd.f32 %v2515, %v2626
      %v2628 = vpop.f32.mrb[0].mxu0
      %v2629 = vpop.f32.mrb[0].mxu0
      %v2630 = vadd.f32 %v2515, %v2629
      %v2631 = vpop.f32.mrb[0].mxu0
      %2632 = vmatprep.mubr.bf16.mxu0 0
      %2633 = vmatmul.mubr.bf16.gmra.mrb[0].mxu0 %v2547
      %v2634 = vpop.f32.mrb[0].mxu0
      %v2635 = vadd.f32 %v2515, %v2634
      %v2636 = vpop.f32.mrb[0].mxu0
      %v2637 = vpop.f32.mrb[0].mxu0
      %v2638 = vadd.f32 %v2515, %v2637
      %v2639 = vpop.f32.mrb[0].mxu0
      %2640 = vmatprep.mubr.bf16.mxu0 0
      %2641 = vmatmul.mubr.bf16.gmra.mrb[0].mxu0 %v2550
      %v2642 = vpop.f32.mrb[0].mxu0
      %v2643 = vadd.f32 %v2515, %v2642
      %v2644 = vpop.f32.mrb[0].mxu0
      %v2645 = vpop.f32.mrb[0].mxu0
      %v2646 = vadd.f32 %v2515, %v2645
      %v2647 = vpop.f32.mrb[0].mxu0
      %2648 = vdwg.mxu0
      %v2649 = vsel %vm1428, %v2587, 0.0
      %2650 = vadd.xlane.f32.xlu0 %v2649
      %v2651 = vpop.xlane.xlu0 %2650
      %v2652 = vsel %vm1428, %v2590, 0.0
      %2653 = vadd.xlane.f32.xlu0 %v2652
      %v2654 = vpop.xlane.xlu0 %2653
      %v2655 = vsel %vm1428, %v2595, 0.0
      %2656 = vadd.xlane.f32.xlu0 %v2655
      %v2657 = vpop.xlane.xlu0 %2656
      %v2658 = vsel %vm1428, %v2598, 0.0
      %2659 = vadd.xlane.f32.xlu0 %v2658
      %v2660 = vpop.xlane.xlu0 %2659
      %v2661 = vsel %vm1428, %v2603, 0.0
      %2662 = vadd.xlane.f32.xlu0 %v2661
      %v2663 = vpop.xlane.xlu0 %2662
      %v2664 = vsel %vm1428, %v2606, 0.0
      %2665 = vadd.xlane.f32.xlu0 %v2664
      %v2666 = vpop.xlane.xlu0 %2665
      %v2667 = vsel %vm1428, %v2611, 0.0
      %2668 = vadd.xlane.f32.xlu0 %v2667
      %v2669 = vpop.xlane.xlu0 %2668
      %v2670 = vsel %vm1428, %v2614, 0.0
      %2671 = vadd.xlane.f32.xlu0 %v2670
      %v2672 = vpop.xlane.xlu0 %2671
      %v2673 = vsel %vm1428, %v2619, 0.0
      %2674 = vadd.xlane.f32.xlu0 %v2673
      %v2675 = vpop.xlane.xlu0 %2674
      %v2676 = vsel %vm1428, %v2622, 0.0
      %2677 = vadd.xlane.f32.xlu0 %v2676
      %v2678 = vpop.xlane.xlu0 %2677
      %v2679 = vsel %vm1428, %v2627, 0.0
      %2680 = vadd.xlane.f32.xlu0 %v2679
      %v2681 = vpop.xlane.xlu0 %2680
      %v2682 = vsel %vm1428, %v2630, 0.0
      %2683 = vadd.xlane.f32.xlu0 %v2682
      %v2684 = vpop.xlane.xlu0 %2683
      %v2685 = vsel %vm1428, %v2635, 0.0
      %2686 = vadd.xlane.f32.xlu0 %v2685
      %v2687 = vpop.xlane.xlu0 %2686
      %v2688 = vsel %vm1428, %v2638, 0.0
      %2689 = vadd.xlane.f32.xlu0 %v2688
      %v2690 = vpop.xlane.xlu0 %2689
      %v2691 = vsel %vm1428, %v2643, 0.0
      %2692 = vadd.xlane.f32.xlu0 %v2691
      %v2693 = vpop.xlane.xlu0 %2692
      %v2694 = vsel %vm1428, %v2646, 0.0
      %2695 = vadd.xlane.f32.xlu0 %v2694
      %v2696 = vpop.xlane.xlu0 %2695
      %v2697 = vmul.f32 %v2651, %v1854
      %v2698 = vmul.f32 %v2654, %v1854
      %v2699 = vmul.f32 %v2657, %v1854
      %v2700 = vmul.f32 %v2660, %v1854
      %v2701 = vmul.f32 %v2663, %v1854
      %v2702 = vmul.f32 %v2666, %v1854
      %v2703 = vmul.f32 %v2669, %v1854
      %v2704 = vmul.f32 %v2672, %v1854
      %v2705 = vmul.f32 %v2675, %v1854
      %v2706 = vmul.f32 %v2678, %v1854
      %v2707 = vmul.f32 %v2681, %v1854
      %v2708 = vmul.f32 %v2684, %v1854
      %v2709 = vmul.f32 %v2687, %v1854
      %v2710 = vmul.f32 %v2690, %v1854
      %v2711 = vmul.f32 %v2693, %v1854
      %v2712 = vmul.f32 %v2696, %v1854
      %v2713 = vsub.f32 %v2587, %v2697
      %v2714 = vsub.f32 %v2590, %v2698
      %v2715 = vsub.f32 %v2595, %v2699
      %v2716 = vsub.f32 %v2598, %v2700
      %v2717 = vsub.f32 %v2603, %v2701
      %v2718 = vsub.f32 %v2606, %v2702
      %v2719 = vsub.f32 %v2611, %v2703
      %v2720 = vsub.f32 %v2614, %v2704
      %v2721 = vsub.f32 %v2619, %v2705
      %v2722 = vsub.f32 %v2622, %v2706
      %v2723 = vsub.f32 %v2627, %v2707
      %v2724 = vsub.f32 %v2630, %v2708
      %v2725 = vsub.f32 %v2635, %v2709
      %v2726 = vsub.f32 %v2638, %v2710
      %v2727 = vsub.f32 %v2643, %v2711
      %v2728 = vsub.f32 %v2646, %v2712
      %v2729 = vmul.f32 %v2713, %v2713
      %v2730 = vmul.f32 %v2714, %v2714
      %v2731 = vmul.f32 %v2715, %v2715
      %v2732 = vmul.f32 %v2716, %v2716
      %v2733 = vmul.f32 %v2717, %v2717
      %v2734 = vmul.f32 %v2718, %v2718
      %v2735 = vmul.f32 %v2719, %v2719
      %v2736 = vmul.f32 %v2720, %v2720
      %v2737 = vmul.f32 %v2721, %v2721
      %v2738 = vmul.f32 %v2722, %v2722
      %v2739 = vmul.f32 %v2723, %v2723
      %v2740 = vmul.f32 %v2724, %v2724
      %v2741 = vmul.f32 %v2725, %v2725
      %v2742 = vmul.f32 %v2726, %v2726
      %v2743 = vmul.f32 %v2727, %v2727
      %v2744 = vmul.f32 %v2728, %v2728
      %v2745 = vsel %vm1428, %v2729, 0.0
      %2746 = vadd.xlane.f32.xlu0 %v2745
      %v2747 = vpop.xlane.xlu0 %2746
      %v2748 = vsel %vm1428, %v2730, 0.0
      %2749 = vadd.xlane.f32.xlu0 %v2748
      %v2750 = vpop.xlane.xlu0 %2749
      %v2751 = vsel %vm1428, %v2731, 0.0
      %2752 = vadd.xlane.f32.xlu0 %v2751
      %v2753 = vpop.xlane.xlu0 %2752
      %v2754 = vsel %vm1428, %v2732, 0.0
      %2755 = vadd.xlane.f32.xlu0 %v2754
      %v2756 = vpop.xlane.xlu0 %2755
      %v2757 = vsel %vm1428, %v2733, 0.0
      %2758 = vadd.xlane.f32.xlu0 %v2757
      %v2759 = vpop.xlane.xlu0 %2758
      %v2760 = vsel %vm1428, %v2734, 0.0
      %2761 = vadd.xlane.f32.xlu0 %v2760
      %v2762 = vpop.xlane.xlu0 %2761
      %v2763 = vsel %vm1428, %v2735, 0.0
      %2764 = vadd.xlane.f32.xlu0 %v2763
      %v2765 = vpop.xlane.xlu0 %2764
      %v2766 = vsel %vm1428, %v2736, 0.0
      %2767 = vadd.xlane.f32.xlu0 %v2766
      %v2768 = vpop.xlane.xlu0 %2767
      %v2769 = vsel %vm1428, %v2737, 0.0
      %2770 = vadd.xlane.f32.xlu0 %v2769
      %v2771 = vpop.xlane.xlu0 %2770
      %v2772 = vsel %vm1428, %v2738, 0.0
      %2773 = vadd.xlane.f32.xlu0 %v2772
      %v2774 = vpop.xlane.xlu0 %2773
      %v2775 = vsel %vm1428, %v2739, 0.0
      %2776 = vadd.xlane.f32.xlu0 %v2775
      %v2777 = vpop.xlane.xlu0 %2776
      %v2778 = vsel %vm1428, %v2740, 0.0
      %2779 = vadd.xlane.f32.xlu0 %v2778
      %v2780 = vpop.xlane.xlu0 %2779
      %v2781 = vsel %vm1428, %v2741, 0.0
      %2782 = vadd.xlane.f32.xlu0 %v2781
      %v2783 = vpop.xlane.xlu0 %2782
      %v2784 = vsel %vm1428, %v2742, 0.0
      %2785 = vadd.xlane.f32.xlu0 %v2784
      %v2786 = vpop.xlane.xlu0 %2785
      %v2787 = vsel %vm1428, %v2743, 0.0
      %2788 = vadd.xlane.f32.xlu0 %v2787
      %v2789 = vpop.xlane.xlu0 %2788
      %v2790 = vsel %vm1428, %v2744, 0.0
      %2791 = vadd.xlane.f32.xlu0 %v2790
      %v2792 = vpop.xlane.xlu0 %2791
      %v2793 = vmul.f32 %v2747, %v1854
      %v2794 = vmul.f32 %v2750, %v1854
      %v2795 = vmul.f32 %v2753, %v1854
      %v2796 = vmul.f32 %v2756, %v1854
      %v2797 = vmul.f32 %v2759, %v1854
      %v2798 = vmul.f32 %v2762, %v1854
      %v2799 = vmul.f32 %v2765, %v1854
      %v2800 = vmul.f32 %v2768, %v1854
      %v2801 = vmul.f32 %v2771, %v1854
      %v2802 = vmul.f32 %v2774, %v1854
      %v2803 = vmul.f32 %v2777, %v1854
      %v2804 = vmul.f32 %v2780, %v1854
      %v2805 = vmul.f32 %v2783, %v1854
      %v2806 = vmul.f32 %v2786, %v1854
      %v2807 = vmul.f32 %v2789, %v1854
      %v2808 = vmul.f32 %v2792, %v1854
      %v2809 = vadd.f32 %v2793, 1e-05
      %v2810 = vadd.f32 %v2794, 1e-05
      %v2811 = vadd.f32 %v2795, 1e-05
      %v2812 = vadd.f32 %v2796, 1e-05
      %v2813 = vadd.f32 %v2797, 1e-05
      %v2814 = vadd.f32 %v2798, 1e-05
      %v2815 = vadd.f32 %v2799, 1e-05
      %v2816 = vadd.f32 %v2800, 1e-05
      %v2817 = vadd.f32 %v2801, 1e-05
      %v2818 = vadd.f32 %v2802, 1e-05
      %v2819 = vadd.f32 %v2803, 1e-05
      %v2820 = vadd.f32 %v2804, 1e-05
      %v2821 = vadd.f32 %v2805, 1e-05
      %v2822 = vadd.f32 %v2806, 1e-05
      %v2823 = vadd.f32 %v2807, 1e-05
      %v2824 = vadd.f32 %v2808, 1e-05
      %v2825 = vrsqrt.pop %v2809
      %v2826 = vrsqrt.pop %v2810
      %v2827 = vrsqrt.pop %v2811
      %v2828 = vrsqrt.pop %v2812
      %v2829 = vrsqrt.pop %v2813
      %v2830 = vrsqrt.pop %v2814
      %v2831 = vrsqrt.pop %v2815
      %v2832 = vrsqrt.pop %v2816
      %v2833 = vrsqrt.pop %v2817
      %v2834 = vrsqrt.pop %v2818
      %v2835 = vrsqrt.pop %v2819
      %v2836 = vrsqrt.pop %v2820
      %v2837 = vrsqrt.pop %v2821
      %v2838 = vrsqrt.pop %v2822
      %v2839 = vrsqrt.pop %v2823
      %v2840 = vrsqrt.pop %v2824
      %v2841 = vmul.f32 %v2713, %v2825
      %v2842 = vmul.f32 %v2714, %v2826
      %v2843 = vmul.f32 %v2715, %v2827
      %v2844 = vmul.f32 %v2716, %v2828
      %v2845 = vmul.f32 %v2717, %v2829
      %v2846 = vmul.f32 %v2718, %v2830
      %v2847 = vmul.f32 %v2719, %v2831
      %v2848 = vmul.f32 %v2720, %v2832
      %v2849 = vmul.f32 %v2721, %v2833
      %v2850 = vmul.f32 %v2722, %v2834
      %v2851 = vmul.f32 %v2723, %v2835
      %v2852 = vmul.f32 %v2724, %v2836
      %v2853 = vmul.f32 %v2725, %v2837
      %v2854 = vmul.f32 %v2726, %v2838
      %v2855 = vmul.f32 %v2727, %v2839
      %v2856 = vmul.f32 %v2728, %v2840
      %v2857 = vlaneseq
      %v2858 = vshrl.u32 %v2857, 7
      %v2859 = vsub.s32 7, %v2858
      %v2860 = vrot.slane %v879, %v2859
      %v2861 = vmul.f32 %v2841, %v2860
      %v2862 = vmul.f32 %v2842, %v2860
      %v2863 = vmul.f32 %v2843, %v2860
      %v2864 = vmul.f32 %v2844, %v2860
      %v2865 = vmul.f32 %v2845, %v2860
      %v2866 = vmul.f32 %v2846, %v2860
      %v2867 = vmul.f32 %v2847, %v2860
      %v2868 = vmul.f32 %v2848, %v2860
      %v2869 = vmul.f32 %v2849, %v2860
      %v2870 = vmul.f32 %v2850, %v2860
      %v2871 = vmul.f32 %v2851, %v2860
      %v2872 = vmul.f32 %v2852, %v2860
      %v2873 = vmul.f32 %v2853, %v2860
      %v2874 = vmul.f32 %v2854, %v2860
      %v2875 = vmul.f32 %v2855, %v2860
      %v2876 = vmul.f32 %v2856, %v2860
      %v2877 = vlaneseq
      %v2878 = vshrl.u32 %v2877, 7
      %v2879 = vsub.s32 0, %v2878
      %v2880 = vrot.slane %v880, %v2879
      %v2881 = vadd.f32 %v2861, %v2880
      %v2882 = vadd.f32 %v2862, %v2880
      %v2883 = vadd.f32 %v2863, %v2880
      %v2884 = vadd.f32 %v2864, %v2880
      %v2885 = vadd.f32 %v2865, %v2880
      %v2886 = vadd.f32 %v2866, %v2880
      %v2887 = vadd.f32 %v2867, %v2880
      %v2888 = vadd.f32 %v2868, %v2880
      %v2889 = vadd.f32 %v2869, %v2880
      %v2890 = vadd.f32 %v2870, %v2880
      %v2891 = vadd.f32 %v2871, %v2880
      %v2892 = vadd.f32 %v2872, %v2880
      %v2893 = vadd.f32 %v2873, %v2880
      %v2894 = vadd.f32 %v2874, %v2880
      %v2895 = vadd.f32 %v2875, %v2880
      %v2896 = vadd.f32 %v2876, %v2880
      %vm2897 = vcmp.gt.f32.partialorder %v2881, 0.0
      %vm2898 = vcmp.gt.f32.partialorder %v2882, 0.0
      %vm2899 = vcmp.gt.f32.partialorder %v2883, 0.0
      %vm2900 = vcmp.gt.f32.partialorder %v2884, 0.0
      %vm2901 = vcmp.gt.f32.partialorder %v2885, 0.0
      %vm2902 = vcmp.gt.f32.partialorder %v2886, 0.0
      %vm2903 = vcmp.gt.f32.partialorder %v2887, 0.0
      %vm2904 = vcmp.gt.f32.partialorder %v2888, 0.0
      %vm2905 = vcmp.gt.f32.partialorder %v2889, 0.0
      %vm2906 = vcmp.gt.f32.partialorder %v2890, 0.0
      %vm2907 = vcmp.gt.f32.partialorder %v2891, 0.0
      %vm2908 = vcmp.gt.f32.partialorder %v2892, 0.0
      %vm2909 = vcmp.gt.f32.partialorder %v2893, 0.0
      %vm2910 = vcmp.gt.f32.partialorder %v2894, 0.0
      %vm2911 = vcmp.gt.f32.partialorder %v2895, 0.0
      %vm2912 = vcmp.gt.f32.partialorder %v2896, 0.0
      %v2913 = vmul.f32 %v2881, 0.01
      %v2914 = vmul.f32 %v2882, 0.01
      %v2915 = vmul.f32 %v2883, 0.01
      %v2916 = vmul.f32 %v2884, 0.01
      %v2917 = vmul.f32 %v2885, 0.01
      %v2918 = vmul.f32 %v2886, 0.01
      %v2919 = vmul.f32 %v2887, 0.01
      %v2920 = vmul.f32 %v2888, 0.01
      %v2921 = vmul.f32 %v2889, 0.01
      %v2922 = vmul.f32 %v2890, 0.01
      %v2923 = vmul.f32 %v2891, 0.01
      %v2924 = vmul.f32 %v2892, 0.01
      %v2925 = vmul.f32 %v2893, 0.01
      %v2926 = vmul.f32 %v2894, 0.01
      %v2927 = vmul.f32 %v2895, 0.01
      %v2928 = vmul.f32 %v2896, 0.01
      %v2929 = vsel %vm2897, %v2881, %v2913
      %v2930 = vsel %vm2898, %v2882, %v2914
      %v2931 = vsel %vm2899, %v2883, %v2915
      %v2932 = vsel %vm2900, %v2884, %v2916
      %v2933 = vsel %vm2901, %v2885, %v2917
      %v2934 = vsel %vm2902, %v2886, %v2918
      %v2935 = vsel %vm2903, %v2887, %v2919
      %v2936 = vsel %vm2904, %v2888, %v2920
      %v2937 = vsel %vm2905, %v2889, %v2921
      %v2938 = vsel %vm2906, %v2890, %v2922
      %v2939 = vsel %vm2907, %v2891, %v2923
      %v2940 = vsel %vm2908, %v2892, %v2924
      %v2941 = vsel %vm2909, %v2893, %v2925
      %v2942 = vsel %vm2910, %v2894, %v2926
      %v2943 = vsel %vm2911, %v2895, %v2927
      %v2944 = vsel %vm2912, %v2896, %v2928
      %v2945 = vlaneseq
      %v2946 = vshrl.u32 %v2945, 7
      %v2947 = vsub.s32 1, %v2946
      %v2948 = vrot.slane %v880, %v2947
      %v2949 = vmul.f32 %v2929, %v2948
      %v2950 = vmul.f32 %v2930, %v2948
      %v2951 = vmul.f32 %v2931, %v2948
      %v2952 = vmul.f32 %v2932, %v2948
      %v2953 = vmul.f32 %v2933, %v2948
      %v2954 = vmul.f32 %v2934, %v2948
      %v2955 = vmul.f32 %v2935, %v2948
      %v2956 = vmul.f32 %v2936, %v2948
      %v2957 = vmul.f32 %v2937, %v2948
      %v2958 = vmul.f32 %v2938, %v2948
      %v2959 = vmul.f32 %v2939, %v2948
      %v2960 = vmul.f32 %v2940, %v2948
      %v2961 = vmul.f32 %v2941, %v2948
      %v2962 = vmul.f32 %v2942, %v2948
      %v2963 = vmul.f32 %v2943, %v2948
      %v2964 = vmul.f32 %v2944, %v2948
      %v2965 = vsel %vm1428, %v2949, 0.0
      %2966 = vadd.xlane.f32.xlu0 %v2965
      %v2967 = vpop.xlane.xlu0 %2966
      %v2968 = vsel %vm1428, %v2950, 0.0
      %2969 = vadd.xlane.f32.xlu0 %v2968
      %v2970 = vpop.xlane.xlu0 %2969
      %v2971 = vsel %vm1428, %v2951, 0.0
      %2972 = vadd.xlane.f32.xlu0 %v2971
      %v2973 = vpop.xlane.xlu0 %2972
      %v2974 = vsel %vm1428, %v2952, 0.0
      %2975 = vadd.xlane.f32.xlu0 %v2974
      %v2976 = vpop.xlane.xlu0 %2975
      %v2977 = vsel %vm1428, %v2953, 0.0
      %2978 = vadd.xlane.f32.xlu0 %v2977
      %v2979 = vpop.xlane.xlu0 %2978
      %v2980 = vsel %vm1428, %v2954, 0.0
      %2981 = vadd.xlane.f32.xlu0 %v2980
      %v2982 = vpop.xlane.xlu0 %2981
      %v2983 = vsel %vm1428, %v2955, 0.0
      %2984 = vadd.xlane.f32.xlu0 %v2983
      %v2985 = vpop.xlane.xlu0 %2984
      %v2986 = vsel %vm1428, %v2956, 0.0
      %2987 = vadd.xlane.f32.xlu0 %v2986
      %v2988 = vpop.xlane.xlu0 %2987
      %v2989 = vsel %vm1428, %v2957, 0.0
      %2990 = vadd.xlane.f32.xlu0 %v2989
      %v2991 = vpop.xlane.xlu0 %2990
      %v2992 = vsel %vm1428, %v2958, 0.0
      %2993 = vadd.xlane.f32.xlu0 %v2992
      %v2994 = vpop.xlane.xlu0 %2993
      %v2995 = vsel %vm1428, %v2959, 0.0
      %2996 = vadd.xlane.f32.xlu0 %v2995
      %v2997 = vpop.xlane.xlu0 %2996
      %v2998 = vsel %vm1428, %v2960, 0.0
      %2999 = vadd.xlane.f32.xlu0 %v2998
      %v3000 = vpop.xlane.xlu0 %2999
      %v3001 = vsel %vm1428, %v2961, 0.0
      %3002 = vadd.xlane.f32.xlu0 %v3001
      %v3003 = vpop.xlane.xlu0 %3002
      %v3004 = vsel %vm1428, %v2962, 0.0
      %3005 = vadd.xlane.f32.xlu0 %v3004
      %v3006 = vpop.xlane.xlu0 %3005
      %v3007 = vsel %vm1428, %v2963, 0.0
      %3008 = vadd.xlane.f32.xlu0 %v3007
      %v3009 = vpop.xlane.xlu0 %3008
      %v3010 = vsel %vm1428, %v2964, 0.0
      %3011 = vadd.xlane.f32.xlu0 %v3010
      %v3012 = vpop.xlane.xlu0 %3011
      %v3014 = vrot.slane %v880, 2
      %s3015 = vtos %v3014
      %v3016 = vstv %s3015
      %v3018 = vadd.f32 %v2967, %v3016
      %v3019 = vadd.f32 %v2970, %v3016
      %v3020 = vadd.f32 %v2973, %v3016
      %v3021 = vadd.f32 %v2976, %v3016
      %v3022 = vadd.f32 %v2979, %v3016
      %v3023 = vadd.f32 %v2982, %v3016
      %v3024 = vadd.f32 %v2985, %v3016
      %v3025 = vadd.f32 %v2988, %v3016
      %v3026 = vadd.f32 %v2991, %v3016
      %v3027 = vadd.f32 %v2994, %v3016
      %v3028 = vadd.f32 %v2997, %v3016
      %v3029 = vadd.f32 %v3000, %v3016
      %v3030 = vadd.f32 %v3003, %v3016
      %v3031 = vadd.f32 %v3006, %v3016
      %v3032 = vadd.f32 %v3009, %v3016
      %v3033 = vadd.f32 %v3012, %v3016
      %v3034 = vsel %vm1421, %v876, 0.0
      %3035 = vadd.xlane.f32.xlu0 %v3034
      %v3036 = vpop.xlane.xlu0 %3035
      %vm3037 = vcmp.gt.f32.partialorder %v3036, 0.0
      %v3038 = vmax.f32 %v3036, 1.0
      %v3039 = vrcp.pop %v3038
      %v3040 = vmul.f32 1.0, %v3039
      %v3041 = vsel %vm3037, %v3040, 0.0
      %v3042 = vlaneseq
      %v3043 = vshrl.u32 %v3042, 7
      %v3044 = vsub.s32 0, %v3043
      %v3045 = vrot.slane %v876, %v3044
      %3047 = vbcast.lane.b32.xlu0 %v3045, 256
      %v3048 = vpop.permute.xlu0 %3047
      %s3050 = sor.u32 256, 8
      %3051 = vbcast.lane.b32.xlu0 %v3045, %s3050
      %v3052 = vpop.permute.xlu0 %3051
      %v3053 = vlaneseq
      %v3054 = vshrl.u32 %v3053, 7
      %v3055 = vsub.s32 1, %v3054
      %v3056 = vrot.slane %v876, %v3055
      %3058 = vbcast.lane.b32.xlu0 %v3056, 256
      %v3059 = vpop.permute.xlu0 %3058
      %s3061 = sor.u32 256, 8
      %3062 = vbcast.lane.b32.xlu0 %v3056, %s3061
      %v3063 = vpop.permute.xlu0 %3062
      %v3064 = vlaneseq
      %v3065 = vshrl.u32 %v3064, 7
      %v3066 = vsub.s32 2, %v3065
      %v3067 = vrot.slane %v876, %v3066
      %3069 = vbcast.lane.b32.xlu0 %v3067, 256
      %v3070 = vpop.permute.xlu0 %3069
      %s3072 = sor.u32 256, 8
      %3073 = vbcast.lane.b32.xlu0 %v3067, %s3072
      %v3074 = vpop.permute.xlu0 %3073
      %v3075 = vlaneseq
      %v3076 = vshrl.u32 %v3075, 7
      %v3077 = vsub.s32 3, %v3076
      %v3078 = vrot.slane %v876, %v3077
      %3080 = vbcast.lane.b32.xlu0 %v3078, 256
      %v3081 = vpop.permute.xlu0 %3080
      %s3083 = sor.u32 256, 8
      %3084 = vbcast.lane.b32.xlu0 %v3078, %s3083
      %v3085 = vpop.permute.xlu0 %3084
      %v3086 = vlaneseq
      %v3087 = vshrl.u32 %v3086, 7
      %v3088 = vsub.s32 4, %v3087
      %v3089 = vrot.slane %v876, %v3088
      %3091 = vbcast.lane.b32.xlu0 %v3089, 256
      %v3092 = vpop.permute.xlu0 %3091
      %s3094 = sor.u32 256, 8
      %3095 = vbcast.lane.b32.xlu0 %v3089, %s3094
      %v3096 = vpop.permute.xlu0 %3095
      %v3097 = vlaneseq
      %v3098 = vshrl.u32 %v3097, 7
      %v3099 = vsub.s32 5, %v3098
      %v3100 = vrot.slane %v876, %v3099
      %3102 = vbcast.lane.b32.xlu0 %v3100, 256
      %v3103 = vpop.permute.xlu0 %3102
      %s3105 = sor.u32 256, 8
      %3106 = vbcast.lane.b32.xlu0 %v3100, %s3105
      %v3107 = vpop.permute.xlu0 %3106
      %v3108 = vlaneseq
      %v3109 = vshrl.u32 %v3108, 7
      %v3110 = vsub.s32 6, %v3109
      %v3111 = vrot.slane %v876, %v3110
      %3113 = vbcast.lane.b32.xlu0 %v3111, 256
      %v3114 = vpop.permute.xlu0 %3113
      %s3116 = sor.u32 256, 8
      %3117 = vbcast.lane.b32.xlu0 %v3111, %s3116
      %v3118 = vpop.permute.xlu0 %3117
      %v3119 = vlaneseq
      %v3120 = vshrl.u32 %v3119, 7
      %v3121 = vsub.s32 7, %v3120
      %v3122 = vrot.slane %v876, %v3121
      %3124 = vbcast.lane.b32.xlu0 %v3122, 256
      %v3125 = vpop.permute.xlu0 %3124
      %s3127 = sor.u32 256, 8
      %3128 = vbcast.lane.b32.xlu0 %v3122, %s3127
      %v3129 = vpop.permute.xlu0 %3128
      %v3130 = vmul.f32 %v3048, %v2484
      %v3131 = vmul.f32 %v3052, %v2485
      %v3132 = vmul.f32 %v3059, %v2486
      %v3133 = vmul.f32 %v3063, %v2487
      %v3134 = vmul.f32 %v3070, %v2488
      %v3135 = vmul.f32 %v3074, %v2489
      %v3136 = vmul.f32 %v3081, %v2490
      %v3137 = vmul.f32 %v3085, %v2491
      %v3138 = vmul.f32 %v3092, %v2492
      %v3139 = vmul.f32 %v3096, %v2493
      %v3140 = vmul.f32 %v3103, %v2494
      %v3141 = vmul.f32 %v3107, %v2495
      %v3142 = vmul.f32 %v3114, %v2496
      %v3143 = vmul.f32 %v3118, %v2497
      %v3144 = vmul.f32 %v3125, %v2498
      %v3145 = vmul.f32 %v3129, %v2499
      %v3146 = vsel %vm1428, %v3130, 0.0
      %v3147 = vsel %vm1428, %v3131, 0.0
      %v3148 = vadd.f32 %v3146, %v3147
      %v3149 = vrot.slane %v3148, 4
      %v3150 = vadd.f32 %v3148, %v3149
      %v3151 = vrot.slane %v3150, 2
      %v3152 = vadd.f32 %v3150, %v3151
      %v3153 = vrot.slane %v3152, 1
      %v3154 = vadd.f32 %v3152, %v3153
      %v3155 = vsel %vm1428, %v3132, 0.0
      %v3156 = vsel %vm1428, %v3133, 0.0
      %v3157 = vadd.f32 %v3155, %v3156
      %v3158 = vrot.slane %v3157, 4
      %v3159 = vadd.f32 %v3157, %v3158
      %v3160 = vrot.slane %v3159, 2
      %v3161 = vadd.f32 %v3159, %v3160
      %v3162 = vrot.slane %v3161, 1
      %v3163 = vadd.f32 %v3161, %v3162
      %v3164 = vsel %vm1428, %v3134, 0.0
      %v3165 = vsel %vm1428, %v3135, 0.0
      %v3166 = vadd.f32 %v3164, %v3165
      %v3167 = vrot.slane %v3166, 4
      %v3168 = vadd.f32 %v3166, %v3167
      %v3169 = vrot.slane %v3168, 2
      %v3170 = vadd.f32 %v3168, %v3169
      %v3171 = vrot.slane %v3170, 1
      %v3172 = vadd.f32 %v3170, %v3171
      %v3173 = vsel %vm1428, %v3136, 0.0
      %v3174 = vsel %vm1428, %v3137, 0.0
      %v3175 = vadd.f32 %v3173, %v3174
      %v3176 = vrot.slane %v3175, 4
      %v3177 = vadd.f32 %v3175, %v3176
      %v3178 = vrot.slane %v3177, 2
      %v3179 = vadd.f32 %v3177, %v3178
      %v3180 = vrot.slane %v3179, 1
      %v3181 = vadd.f32 %v3179, %v3180
      %v3182 = vsel %vm1428, %v3138, 0.0
      %v3183 = vsel %vm1428, %v3139, 0.0
      %v3184 = vadd.f32 %v3182, %v3183
      %v3185 = vrot.slane %v3184, 4
      %v3186 = vadd.f32 %v3184, %v3185
      %v3187 = vrot.slane %v3186, 2
      %v3188 = vadd.f32 %v3186, %v3187
      %v3189 = vrot.slane %v3188, 1
      %v3190 = vadd.f32 %v3188, %v3189
      %v3191 = vsel %vm1428, %v3140, 0.0
      %v3192 = vsel %vm1428, %v3141, 0.0
      %v3193 = vadd.f32 %v3191, %v3192
      %v3194 = vrot.slane %v3193, 4
      %v3195 = vadd.f32 %v3193, %v3194
      %v3196 = vrot.slane %v3195, 2
      %v3197 = vadd.f32 %v3195, %v3196
      %v3198 = vrot.slane %v3197, 1
      %v3199 = vadd.f32 %v3197, %v3198
      %v3200 = vsel %vm1428, %v3142, 0.0
      %v3201 = vsel %vm1428, %v3143, 0.0
      %v3202 = vadd.f32 %v3200, %v3201
      %v3203 = vrot.slane %v3202, 4
      %v3204 = vadd.f32 %v3202, %v3203
      %v3205 = vrot.slane %v3204, 2
      %v3206 = vadd.f32 %v3204, %v3205
      %v3207 = vrot.slane %v3206, 1
      %v3208 = vadd.f32 %v3206, %v3207
      %v3209 = vsel %vm1428, %v3144, 0.0
      %v3210 = vsel %vm1428, %v3145, 0.0
      %v3211 = vadd.f32 %v3209, %v3210
      %v3212 = vrot.slane %v3211, 4
      %v3213 = vadd.f32 %v3211, %v3212
      %v3214 = vrot.slane %v3213, 2
      %v3215 = vadd.f32 %v3213, %v3214
      %v3216 = vrot.slane %v3215, 1
      %v3217 = vadd.f32 %v3215, %v3216
      %v3219 = vrot.slane %v3041, 1
      %v3220 = vrot.slane %v3041, 2
      %v3221 = vrot.slane %v3041, 3
      %v3222 = vrot.slane %v3041, 4
      %v3223 = vrot.slane %v3041, 5
      %v3224 = vrot.slane %v3041, 6
      %v3225 = vrot.slane %v3041, 7
      %v3234 = vmul.f32 %v3154, %v3041
      %v3235 = vmul.f32 %v3163, %v3219
      %v3236 = vmul.f32 %v3172, %v3220
      %v3237 = vmul.f32 %v3181, %v3221
      %v3238 = vmul.f32 %v3190, %v3222
      %v3239 = vmul.f32 %v3199, %v3223
      %v3240 = vmul.f32 %v3208, %v3224
      %v3241 = vmul.f32 %v3217, %v3225
      %v3258 = vlaneseq
      %v3259 = vand.u32 %v3258, 127
      %v3260 = vlaneseq
      %v3261 = vshrl.u32 %v3260, 7
      %v3262 = vsub.s32 %v3259, %v3261
      %v3263 = vrot.slane %v3018, %v3262
      %v3264 = vadd.s32 %v3259, 4294967288
      %v3265 = vlaneseq
      %v3266 = vshrl.u32 %v3265, 7
      %v3267 = vsub.s32 %v3264, %v3266
      %v3268 = vrot.slane %v3019, %v3267
      %vm3269 = vcmask 130112
      %v3270 = vsel %vm3269, %v3268, %v3263
      %v3271 = vlaneseq
      %v3272 = vshrl.u32 %v3271, 7
      %v3273 = vsub.s32 %v3259, %v3272
      %v3274 = vrot.slane %v3020, %v3273
      %v3275 = vlaneseq
      %v3276 = vshrl.u32 %v3275, 7
      %v3277 = vsub.s32 %v3264, %v3276
      %v3278 = vrot.slane %v3021, %v3277
      %v3279 = vsel %vm3269, %v3278, %v3274
      %v3280 = vlaneseq
      %v3281 = vshrl.u32 %v3280, 7
      %v3282 = vsub.s32 %v3259, %v3281
      %v3283 = vrot.slane %v3022, %v3282
      %v3284 = vlaneseq
      %v3285 = vshrl.u32 %v3284, 7
      %v3286 = vsub.s32 %v3264, %v3285
      %v3287 = vrot.slane %v3023, %v3286
      %v3288 = vsel %vm3269, %v3287, %v3283
      %v3289 = vlaneseq
      %v3290 = vshrl.u32 %v3289, 7
      %v3291 = vsub.s32 %v3259, %v3290
      %v3292 = vrot.slane %v3024, %v3291
      %v3293 = vlaneseq
      %v3294 = vshrl.u32 %v3293, 7
      %v3295 = vsub.s32 %v3264, %v3294
      %v3296 = vrot.slane %v3025, %v3295
      %v3297 = vsel %vm3269, %v3296, %v3292
      %v3298 = vlaneseq
      %v3299 = vshrl.u32 %v3298, 7
      %v3300 = vsub.s32 %v3259, %v3299
      %v3301 = vrot.slane %v3026, %v3300
      %v3302 = vlaneseq
      %v3303 = vshrl.u32 %v3302, 7
      %v3304 = vsub.s32 %v3264, %v3303
      %v3305 = vrot.slane %v3027, %v3304
      %v3306 = vsel %vm3269, %v3305, %v3301
      %v3307 = vlaneseq
      %v3308 = vshrl.u32 %v3307, 7
      %v3309 = vsub.s32 %v3259, %v3308
      %v3310 = vrot.slane %v3028, %v3309
      %v3311 = vlaneseq
      %v3312 = vshrl.u32 %v3311, 7
      %v3313 = vsub.s32 %v3264, %v3312
      %v3314 = vrot.slane %v3029, %v3313
      %v3315 = vsel %vm3269, %v3314, %v3310
      %v3316 = vlaneseq
      %v3317 = vshrl.u32 %v3316, 7
      %v3318 = vsub.s32 %v3259, %v3317
      %v3319 = vrot.slane %v3030, %v3318
      %v3320 = vlaneseq
      %v3321 = vshrl.u32 %v3320, 7
      %v3322 = vsub.s32 %v3264, %v3321
      %v3323 = vrot.slane %v3031, %v3322
      %v3324 = vsel %vm3269, %v3323, %v3319
      %v3325 = vlaneseq
      %v3326 = vshrl.u32 %v3325, 7
      %v3327 = vsub.s32 %v3259, %v3326
      %v3328 = vrot.slane %v3032, %v3327
      %v3329 = vlaneseq
      %v3330 = vshrl.u32 %v3329, 7
      %v3331 = vsub.s32 %v3264, %v3330
      %v3332 = vrot.slane %v3033, %v3331
      %v3333 = vsel %vm3269, %v3332, %v3328
      %vm3334 = vcmask 1041409
      %v3335 = vsel %vm3334, %v3279, %v3270
      %vm3336 = vcmask 1042434
      %v3337 = vsel %vm3336, %v3288, %v3335
      %vm3338 = vcmask 1043459
      %v3339 = vsel %vm3338, %v3297, %v3337
      %vm3340 = vcmask 1044484
      %v3341 = vsel %vm3340, %v3306, %v3339
      %vm3342 = vcmask 1045509
      %v3343 = vsel %vm3342, %v3315, %v3341
      %vm3344 = vcmask 1046534
      %v3345 = vsel %vm3344, %v3324, %v3343
      %vm3346 = vcmask 1047559
      %v3347 = vsel %vm3346, %v3333, %v3345
      %v3349 = vmul.f32 %v876, %v3347
      %v3350 = vsel %vm1421, %v3349, 0.0
      %3351 = vadd.xlane.f32.xlu0 %v3350
      %v3352 = vpop.xlane.xlu0 %3351
      %v3353 = vld [vmem:[%s838] sm:$0xff]
      %v3354 = vld [vmem:[%s838 + $0x8] sm:$0xff]
      %v3356 = vsel %vm1421, %v3349, 0
      %3358 = vmatprep.subr.mxu0 0.0
      %3359 = vmatpush1.msra.mxu0 %v3353
      %3360 = vmatprep.subr.mxu0 0.0
      %3361 = vmatpush1.msra.mxu0 %v3354
      %3362 = vmatprep.subr.mxu0 0.0
      %3363 = vmatpush1.msra.mxu0 0.0
      %3364 = vmatprep.subr.mxu0 0.0
      %3365 = vmatpush1.msra.mxu0 0.0
      %3366 = vmatprep.subr.mxu0 0.0
      %3367 = vmatpush1.msra.mxu0 0.0
      %3368 = vmatprep.subr.mxu0 0.0
      %3369 = vmatpush1.msra.mxu0 0.0
      %3370 = vmatprep.subr.mxu0 0.0
      %3371 = vmatpush1.msra.mxu0 0.0
      %3372 = vmatprep.subr.mxu0 0.0
      %3373 = vmatpush1.msra.mxu0 0.0
      %3374 = vmatprep.subr.mxu0 0.0
      %3375 = vmatpush1.msra.mxu0 0.0
      %3376 = vmatprep.subr.mxu0 0.0
      %3377 = vmatpush1.msra.mxu0 0.0
      %3378 = vmatprep.subr.mxu0 0.0
      %3379 = vmatpush1.msra.mxu0 0.0
      %3380 = vmatprep.subr.mxu0 0.0
      %3381 = vmatpush1.msra.mxu0 0.0
      %3382 = vmatprep.subr.mxu0 0.0
      %3383 = vmatpush1.msra.mxu0 0.0
      %3384 = vmatprep.subr.mxu0 0.0
      %3385 = vmatpush1.msra.mxu0 0.0
      %3386 = vmatprep.subr.mxu0 0.0
      %3387 = vmatpush1.msra.mxu0 0.0
      %3388 = vmatprep.subr.mxu0 0.0
      %3389 = vmatpush1.msra.mxu0 0.0
      %3390 = vmatprep.subr.mxu0 0.0
      %3391 = vmatpush1.msra.mxu0 0.0
      %3392 = vmatprep.subr.mxu0 0.0
      %3393 = vmatpush1.msra.mxu0 0.0
      %3394 = vmatprep.subr.mxu0 0.0
      %3395 = vmatpush1.msra.mxu0 0.0
      %3396 = vmatprep.subr.mxu0 0.0
      %3397 = vmatpush1.msra.mxu0 0.0
      %3398 = vmatprep.subr.mxu0 0.0
      %3399 = vmatpush1.msra.mxu0 0.0
      %3400 = vmatprep.subr.mxu0 0.0
      %3401 = vmatpush1.msra.mxu0 0.0
      %3402 = vmatprep.subr.mxu0 0.0
      %3403 = vmatpush1.msra.mxu0 0.0
      %3404 = vmatprep.subr.mxu0 0.0
      %3405 = vmatpush1.msra.mxu0 0.0
      %3406 = vmatprep.subr.mxu0 0.0
      %3407 = vmatpush1.msra.mxu0 0.0
      %3408 = vmatprep.subr.mxu0 0.0
      %3409 = vmatpush1.msra.mxu0 0.0
      %3410 = vmatprep.subr.mxu0 0.0
      %3411 = vmatpush1.msra.mxu0 0.0
      %3412 = vmatprep.subr.mxu0 0.0
      %3413 = vmatpush1.msra.mxu0 0.0
      %3414 = vmatprep.subr.mxu0 0.0
      %3415 = vmatpush1.msra.mxu0 0.0
      %3416 = vmatprep.subr.mxu0 0.0
      %3417 = vmatpush1.msra.mxu0 0.0
      %3418 = vmatprep.subr.mxu0 0.0
      %3419 = vmatpush1.msra.mxu0 0.0
      %3420 = vmatprep.subr.mxu0 0.0
      %3421 = vmatpush1.msra.mxu0 0.0
      %3422 = vmatprep.mubr.f32.mxu0 0.0
      %3423 = vmatmul.mubr.f32.gmra.mrb[0].mxu0 %v3356
      %v3424 = vpop.f32.mrb[0].mxu0
      %v3425 = vadd.f32 0.0, %v3424
      %v3426 = vpop.f32.mrb[0].mxu0
      %3427 = vdwg.mxu0
      %v3428 = vmul.f32 %v877, %v3352
      %v3429 = vsub.f32 %v3425, %v3428
      %v3430 = vmul.f32 %v3429, %v3041
      %v3431 = vld [vmem:[%s853] sm:$0xff]
      %v3432 = vpack.c.bf16 %v3431, %v3431
      %v3433 = vld [vmem:[%s13] sm:$0xf]
      %v3434 = vld [vmem:[%s13 + $0x4] sm:$0xf]
      %v3435 = vld [vmem:[%s13 + $0x8] sm:$0xf]
      %v3436 = vld [vmem:[%s13 + $0xc] sm:$0xf]
      %v3437 = vpack.c.bf16 %v3234, %v3234
      %v3438 = vpack.c.bf16 %v3235, %v3235
      %v3439 = vpack.c.bf16 %v3236, %v3236
      %v3440 = vpack.c.bf16 %v3237, %v3237
      %v3441 = vpack.c.bf16 %v3238, %v3238
      %v3442 = vpack.c.bf16 %v3239, %v3239
      %v3443 = vpack.c.bf16 %v3240, %v3240
      %v3444 = vpack.c.bf16 %v3241, %v3241
      %v3445 = vld [vmem:[%s14] sm:$0xf]
      %v3446 = vld [vmem:[%s14 + $0x4] sm:$0xf]
      %v3447 = vld [vmem:[%s14 + $0x8] sm:$0xf]
      %v3448 = vld [vmem:[%s14 + $0xc] sm:$0xf]
      %v3457 = vunpack.c.l.b16 %v3437
      %v3458 = vunpack.c.l.b16 %v3438
      %v3459 = vunpack.c.l.b16 %v3439
      %v3460 = vunpack.c.l.b16 %v3440
      %v3461 = vunpack.c.l.b16 %v3441
      %v3462 = vunpack.c.l.b16 %v3442
      %v3463 = vunpack.c.l.b16 %v3443
      %v3464 = vunpack.c.l.b16 %v3444
      %v3465 = vrot.slane %v3458, 7
      %v3466 = vsel %vm3334, %v3465, %v3457
      %v3467 = vrot.slane %v3459, 6
      %v3468 = vsel %vm3336, %v3467, %v3466
      %v3469 = vrot.slane %v3460, 5
      %v3470 = vsel %vm3338, %v3469, %v3468
      %v3471 = vrot.slane %v3461, 4
      %v3472 = vsel %vm3340, %v3471, %v3470
      %v3473 = vrot.slane %v3462, 3
      %v3474 = vsel %vm3342, %v3473, %v3472
      %v3475 = vrot.slane %v3463, 2
      %v3476 = vsel %vm3344, %v3475, %v3474
      %v3477 = vrot.slane %v3464, 1
      %v3478 = vsel %vm3346, %v3477, %v3476
      %v3479 = vpack.c.b16 %v3478, %v3478
      %v3484 = vunpack.c.l.b16 %v3445
      %v3485 = vunpack.c.l.b16 %v3446
      %v3486 = vunpack.c.l.b16 %v3447
      %v3487 = vunpack.c.l.b16 %v3448
      %v3488 = vpack.c.b16 %v3485, %v3484
      %v3489 = vpack.c.b16 %v3487, %v3486
      %v3493 = vsel %vm1428, %v3479, 0
      %3495 = vmatprep.subr.bf16.mxu0 0
      %3496 = vmatpush1.bf16.msra.mxu0 %v3488
      %3497 = vmatprep.subr.bf16.mxu0 0
      %3498 = vmatpush1.bf16.msra.mxu0 %v3489
      %3499 = vmatprep.subr.bf16.mxu0 0
      %3500 = vmatpush1.bf16.msra.mxu0 0
      %3501 = vmatprep.subr.bf16.mxu0 0
      %3502 = vmatpush1.bf16.msra.mxu0 0
      %3503 = vmatprep.subr.bf16.mxu0 0
      %3504 = vmatpush1.bf16.msra.mxu0 0
      %3505 = vmatprep.subr.bf16.mxu0 0
      %3506 = vmatpush1.bf16.msra.mxu0 0
      %3507 = vmatprep.subr.bf16.mxu0 0
      %3508 = vmatpush1.bf16.msra.mxu0 0
      %3509 = vmatprep.subr.bf16.mxu0 0
      %3510 = vmatpush1.bf16.msra.mxu0 0
      %3511 = vmatprep.subr.bf16.mxu0 0
      %3512 = vmatpush1.bf16.msra.mxu0 0
      %3513 = vmatprep.subr.bf16.mxu0 0
      %3514 = vmatpush1.bf16.msra.mxu0 0
      %3515 = vmatprep.subr.bf16.mxu0 0
      %3516 = vmatpush1.bf16.msra.mxu0 0
      %3517 = vmatprep.subr.bf16.mxu0 0
      %3518 = vmatpush1.bf16.msra.mxu0 0
      %3519 = vmatprep.subr.bf16.mxu0 0
      %3520 = vmatpush1.bf16.msra.mxu0 0
      %3521 = vmatprep.subr.bf16.mxu0 0
      %3522 = vmatpush1.bf16.msra.mxu0 0
      %3523 = vmatprep.subr.bf16.mxu0 0
      %3524 = vmatpush1.bf16.msra.mxu0 0
      %3525 = vmatprep.subr.bf16.mxu0 0
      %3526 = vmatpush1.bf16.msra.mxu0 0
      %3527 = vmatprep.mubr.bf16.mxu0 0
      %3528 = vmatmul.mubr.bf16.gmra.mrb[0].mxu0 %v3493
      %v3529 = vpop.f32.mrb[0].mxu0
      %v3530 = vadd.f32 0.0, %v3529
      %v3531 = vpop.f32.mrb[0].mxu0
      %v3532 = vpop.f32.mrb[0].mxu0
      %v3533 = vpop.f32.mrb[0].mxu0
      %3534 = vdwg.mxu0
      %v3539 = vunpack.c.l.b16 %v3433
      %v3540 = vunpack.c.l.b16 %v3434
      %v3541 = vunpack.c.l.b16 %v3435
      %v3542 = vunpack.c.l.b16 %v3436
      %v3543 = vpack.c.b16 %v3540, %v3539
      %v3544 = vpack.c.b16 %v3542, %v3541
      %v3548 = vsel %vm1428, %v3432, 0
      %3550 = vmatprep.subr.bf16.mxu0 0
      %3551 = vmatpush1.bf16.msra.mxu0 %v3543
      %3552 = vmatprep.subr.bf16.mxu0 0
      %3553 = vmatpush1.bf16.msra.mxu0 %v3544
      %3554 = vmatprep.subr.bf16.mxu0 0
      %3555 = vmatpush1.bf16.msra.mxu0 0
      %3556 = vmatprep.subr.bf16.mxu0 0
      %3557 = vmatpush1.bf16.msra.mxu0 0
      %3558 = vmatprep.subr.bf16.mxu0 0
      %3559 = vmatpush1.bf16.msra.mxu0 0
      %3560 = vmatprep.subr.bf16.mxu0 0
      %3561 = vmatpush1.bf16.msra.mxu0 0
      %3562 = vmatprep.subr.bf16.mxu0 0
      %3563 = vmatpush1.bf16.msra.mxu0 0
      %3564 = vmatprep.subr.bf16.mxu0 0
      %3565 = vmatpush1.bf16.msra.mxu0 0
      %3566 = vmatprep.subr.bf16.mxu0 0
      %3567 = vmatpush1.bf16.msra.mxu0 0
      %3568 = vmatprep.subr.bf16.mxu0 0
      %3569 = vmatpush1.bf16.msra.mxu0 0
      %3570 = vmatprep.subr.bf16.mxu0 0
      %3571 = vmatpush1.bf16.msra.mxu0 0
      %3572 = vmatprep.subr.bf16.mxu0 0
      %3573 = vmatpush1.bf16.msra.mxu0 0
      %3574 = vmatprep.subr.bf16.mxu0 0
      %3575 = vmatpush1.bf16.msra.mxu0 0
      %3576 = vmatprep.subr.bf16.mxu0 0
      %3577 = vmatpush1.bf16.msra.mxu0 0
      %3578 = vmatprep.subr.bf16.mxu0 0
      %3579 = vmatpush1.bf16.msra.mxu0 0
      %3580 = vmatprep.subr.bf16.mxu0 0
      %3581 = vmatpush1.bf16.msra.mxu0 0
      %3582 = vmatprep.mubr.bf16.mxu0 0
      %3583 = vmatmul.mubr.bf16.gmra.mrb[0].mxu0 %v3548
      %v3584 = vpop.f32.mrb[0].mxu0
      %v3585 = vadd.f32 %v3530, %v3584
      %v3586 = vpop.f32.mrb[0].mxu0
      %v3587 = vpop.f32.mrb[0].mxu0
      %v3588 = vpop.f32.mrb[0].mxu0
      %3589 = vdwg.mxu0
      %v3590 = vlaneseq
      %v3591 = vshrl.u32 %v3590, 7
      %v3592 = vsub.s32 0, %v3591
      %v3593 = vrot.slane %v881, %v3592
      %v3594 = vadd.f32 %v3585, %v3593
      %v3595 = vsel %vm1428, %v3594, 0.0
      %3596 = vadd.xlane.f32.xlu0 %v3595
      %v3597 = vpop.xlane.xlu0 %3596
      %v3598 = vmul.f32 %v3597, %v1854
      %v3599 = vsub.f32 %v3594, %v3598
      %v3600 = vmul.f32 %v3599, %v3599
      %v3601 = vsel %vm1428, %v3600, 0.0
      %3602 = vadd.xlane.f32.xlu0 %v3601
      %v3603 = vpop.xlane.xlu0 %3602
      %v3604 = vmul.f32 %v3603, %v1854
      %v3605 = vadd.f32 %v3604, 1e-05
      %v3606 = vrsqrt.pop %v3605
      %v3607 = vmul.f32 %v3599, %v3606
      %v3608 = vlaneseq
      %v3609 = vshrl.u32 %v3608, 7
      %v3610 = vsub.s32 1, %v3609
      %v3611 = vrot.slane %v881, %v3610
      %v3612 = vmul.f32 %v3607, %v3611
      %v3613 = vlaneseq
      %v3614 = vshrl.u32 %v3613, 7
      %v3615 = vsub.s32 2, %v3614
      %v3616 = vrot.slane %v881, %v3615
      %v3617 = vadd.f32 %v3612, %v3616
      %vm3618 = vcmp.gt.f32.partialorder %v3617, 0.0
      %v3619 = vmul.f32 %v3617, 0.01
      %v3620 = vsel %vm3618, %v3617, %v3619
      %v3621 = vpack.c.bf16 %v3620, %v3620
      %v3622 = vld [vmem:[%s15] sm:$0xf]
      %v3623 = vld [vmem:[%s15 + $0x4] sm:$0xf]
      %v3624 = vld [vmem:[%s15 + $0x8] sm:$0xf]
      %v3625 = vld [vmem:[%s15 + $0xc] sm:$0xf]
      %v3626 = vlaneseq
      %v3627 = vshrl.u32 %v3626, 7
      %v3628 = vsub.s32 3, %v3627
      %v3629 = vrot.slane %v881, %v3628
      %v3634 = vunpack.c.l.b16 %v3622
      %v3635 = vunpack.c.l.b16 %v3623
      %v3636 = vunpack.c.l.b16 %v3624
      %v3637 = vunpack.c.l.b16 %v3625
      %v3638 = vpack.c.b16 %v3635, %v3634
      %v3639 = vpack.c.b16 %v3637, %v3636
      %v3643 = vsel %vm1428, %v3621, 0
      %3645 = vmatprep.subr.bf16.mxu0 0
      %3646 = vmatpush1.bf16.msra.mxu0 %v3638
      %3647 = vmatprep.subr.bf16.mxu0 0
      %3648 = vmatpush1.bf16.msra.mxu0 %v3639
      %3649 = vmatprep.subr.bf16.mxu0 0
      %3650 = vmatpush1.bf16.msra.mxu0 0
      %3651 = vmatprep.subr.bf16.mxu0 0
      %3652 = vmatpush1.bf16.msra.mxu0 0
      %3653 = vmatprep.subr.bf16.mxu0 0
      %3654 = vmatpush1.bf16.msra.mxu0 0
      %3655 = vmatprep.subr.bf16.mxu0 0
      %3656 = vmatpush1.bf16.msra.mxu0 0
      %3657 = vmatprep.subr.bf16.mxu0 0
      %3658 = vmatpush1.bf16.msra.mxu0 0
      %3659 = vmatprep.subr.bf16.mxu0 0
      %3660 = vmatpush1.bf16.msra.mxu0 0
      %3661 = vmatprep.subr.bf16.mxu0 0
      %3662 = vmatpush1.bf16.msra.mxu0 0
      %3663 = vmatprep.subr.bf16.mxu0 0
      %3664 = vmatpush1.bf16.msra.mxu0 0
      %3665 = vmatprep.subr.bf16.mxu0 0
      %3666 = vmatpush1.bf16.msra.mxu0 0
      %3667 = vmatprep.subr.bf16.mxu0 0
      %3668 = vmatpush1.bf16.msra.mxu0 0
      %3669 = vmatprep.subr.bf16.mxu0 0
      %3670 = vmatpush1.bf16.msra.mxu0 0
      %3671 = vmatprep.subr.bf16.mxu0 0
      %3672 = vmatpush1.bf16.msra.mxu0 0
      %3673 = vmatprep.subr.bf16.mxu0 0
      %3674 = vmatpush1.bf16.msra.mxu0 0
      %3675 = vmatprep.subr.bf16.mxu0 0
      %3676 = vmatpush1.bf16.msra.mxu0 0
      %3677 = vmatprep.mubr.bf16.mxu0 0
      %3678 = vmatmul.mubr.bf16.gmra.mrb[0].mxu0 %v3643
      %v3679 = vpop.f32.mrb[0].mxu0
      %v3680 = vadd.f32 %v3629, %v3679
      %v3681 = vpop.f32.mrb[0].mxu0
      %v3682 = vpop.f32.mrb[0].mxu0
      %v3683 = vpop.f32.mrb[0].mxu0
      %3684 = vdwg.mxu0
      %v3685 = vsel %vm1428, %v3680, 0.0
      %3686 = vadd.xlane.f32.xlu0 %v3685
      %v3687 = vpop.xlane.xlu0 %3686
      %v3688 = vmul.f32 %v3687, %v1854
      %v3689 = vsub.f32 %v3680, %v3688
      %v3690 = vmul.f32 %v3689, %v3689
      %v3691 = vsel %vm1428, %v3690, 0.0
      %3692 = vadd.xlane.f32.xlu0 %v3691
      %v3693 = vpop.xlane.xlu0 %3692
      %v3694 = vmul.f32 %v3693, %v1854
      %v3695 = vadd.f32 %v3694, 1e-05
      %v3696 = vrsqrt.pop %v3695
      %v3697 = vmul.f32 %v3689, %v3696
      %v3698 = vlaneseq
      %v3699 = vshrl.u32 %v3698, 7
      %v3700 = vsub.s32 4, %v3699
      %v3701 = vrot.slane %v881, %v3700
      %v3702 = vmul.f32 %v3697, %v3701
      %v3703 = vlaneseq
      %v3704 = vshrl.u32 %v3703, 7
      %v3705 = vsub.s32 5, %v3704
      %v3706 = vrot.slane %v881, %v3705
      %v3707 = vadd.f32 %v3702, %v3706
      %v3708 = vmul.f32 %v3707, 0.5
      %v3709 = vmul.f32 %v3431, 0.5
      %v3710 = vadd.f32 %v3708, %v3709
      %v3711 = vsel %vm1428, %v3710, 0.0
      %3712 = vadd.xlane.f32.xlu0 %v3711
      %v3713 = vpop.xlane.xlu0 %3712
      %v3714 = vmul.f32 %v3713, %v1854
      %v3715 = vsub.f32 %v3710, %v3714
      %v3716 = vmul.f32 %v3715, %v3715
      %v3717 = vsel %vm1428, %v3716, 0.0
      %3718 = vadd.xlane.f32.xlu0 %v3717
      %v3719 = vpop.xlane.xlu0 %3718
      %v3720 = vmul.f32 %v3719, %v1854
      %v3721 = vadd.f32 %v3720, 1e-05
      %v3722 = vrsqrt.pop %v3721
      %v3723 = vmul.f32 %v3715, %v3722
      %v3724 = vlaneseq
      %v3725 = vshrl.u32 %v3724, 7
      %v3726 = vsub.s32 6, %v3725
      %v3727 = vrot.slane %v881, %v3726
      %v3728 = vmul.f32 %v3723, %v3727
      %v3729 = vlaneseq
      %v3730 = vshrl.u32 %v3729, 7
      %v3731 = vsub.s32 7, %v3730
      %v3732 = vrot.slane %v881, %v3731
      %v3733 = vadd.f32 %v3728, %v3732
      %3734 = vst.msk [vmem:[%s874] sm:$0xff] %vm1428, %v3733
      %v3735 = vld [vmem:[%s860] sm:$0xff]
      %v3736 = vmul.f32 %v3735, 0.25
      %v3737 = vmul.f32 %v877, 0.75
      %v3738 = vadd.f32 %v3736, %v3737
      %v3739 = vadd.f32 %v3738, %v3430
      %vm3740 = vcmask 23552
      %3741 = vst.msk [vmem:[%s867] sm:$0xff] %vm3740, %v3739
      %p3742 = scmp.lt.s32.totalorder %s36, 1
      %s3743 = scalar_select %p3742, %s36, 1
      %p3744 = scmp.lt.s32.totalorder %s37, 0
      %s3745 = scalar_select %p3744, %s37, 0
      %s3746 = sadd.s32 %s3745, %s3743
      %s3747 = smul.addr %s3746, 8
      %s3748 = scalar_lea.vmem %s19, %s3747
      %p3749 = scmp.lt.s32.totalorder %s36, 1
      %s3750 = scalar_select %p3749, %s36, 1
      %p3751 = scmp.lt.s32.totalorder %s37, 0
      %s3752 = scalar_select %p3751, %s37, 0
      %s3753 = sadd.s32 %s3752, %s3750
      %s3754 = smul.addr %s3753, 8
      %s3755 = scalar_lea.vmem %s20, %s3754
      // Predicated region
      $region97: #{pooling_3d_layer.2} parent=95 // pred_check
        %p3756 = pneg %p520
      $region98: #{pooling_3d_layer.2} parent=95 // pred_check_branch
        %3758 = sbr.rel (%p3756) target = $region100
      $region99: #{pooling_3d_layer.2} parent=95 // pred_region
        _
      $region100: #{pooling_3d_layer.2} parent=95 // pred_fallthru
        _
      // Predicated region
      $region101: #{pooling_3d_layer.2} parent=95 // pred_check
        %p3759 = pneg %p548
      $region102: #{pooling_3d_layer.2} parent=95 // pred_check_branch
        %3761 = sbr.rel (%p3759) target = $region104
      $region103: #{pooling_3d_layer.2} parent=95 // pred_region
        _
      $region104: #{pooling_3d_layer.2} parent=95 // pred_fallthru
        _
    $region96: #{pooling_3d_layer.2} parent=5 // pred_fallthru
      _
    %p3762 = scmp.le.s32.totalorder 2, %s27
    // Predicated region
    $region105: #{pooling_3d_layer.2} parent=5 // pred_check
      %p3763 = pneg %p3762
    $region106: #{pooling_3d_layer.2} parent=5 // pred_check_branch
      %3765 = sbr.rel (%p3763) target = $region108
    $region107: #{pooling_3d_layer.2} parent=5 // pred_region
      %s3766 = ssub.s32 %s27, 2
      // Predicated region
      $region109: #{pooling_3d_layer.2} parent=107 // pred_check
        %p3767 = pneg %p526
      $region110: #{pooling_3d_layer.2} parent=107 // pred_check_branch
        %3769 = sbr.rel (%p3767) target = $region112
      $region111: #{pooling_3d_layer.2} parent=107 // pred_region
        %p3770 = scmp.lt.s32.totalorder %s38, 1
        %s3771 = scalar_select %p3770, %s38, 1
        %p3772 = scmp.lt.s32.totalorder %s39, 0
        %s3773 = scalar_select %p3772, %s39, 0
        %s3774 = sadd.s32 %s3773, %s3771
        %s3775 = smul.addr %s3774, 8
        %s3776 = scalar_lea.vmem %s19, %s3775
      $region112: #{pooling_3d_layer.2} parent=107 // pred_fallthru
        _
      // Predicated region
      $region113: #{pooling_3d_layer.2} parent=107 // pred_check
        %p3777 = pneg %p554
      $region114: #{pooling_3d_layer.2} parent=107 // pred_check_branch
        %3779 = sbr.rel (%p3777) target = $region116
      $region115: #{pooling_3d_layer.2} parent=107 // pred_region
        %p3780 = scmp.lt.s32.totalorder %s38, 1
        %s3781 = scalar_select %p3780, %s38, 1
        %p3782 = scmp.lt.s32.totalorder %s39, 0
        %s3783 = scalar_select %p3782, %s39, 0
        %s3784 = sadd.s32 %s3783, %s3781
        %s3785 = smul.addr %s3784, 8
        %s3786 = scalar_lea.vmem %s20, %s3785
      $region116: #{pooling_3d_layer.2} parent=107 // pred_fallthru
        _
    $region108: #{pooling_3d_layer.2} parent=5 // pred_fallthru
      _
  $region6: #{pooling_3d_layer.2} parent=0 // loop_footer
    %s31 = sadd.s32 1, %s27
  $region7: #{pooling_3d_layer.2} parent=0 // loop_footer_branch
    %26 = sbr.rel target = $region3
  $region8: #{pooling_3d_layer.2} parent=0 // loop_exit
    _

</llo_original>
